<compile_context>
chip_gen: v5e
topology: v5e:2x2
jax: 0.10.0
libtpu: 0.0.40
codegen_flags: <defaults>
</compile_context>

<pallas_src>
import functools

import jax
import jax.numpy as jnp
from jax import lax
from jax.experimental import pallas as pl
from jax.experimental.pallas import tpu as pltpu

EPS = 1e-5  # nn.GroupNorm default


def _block_kernel(x_ref, w_ref, b_ref, a_ref, sc_ref, sh_ref, o_ref):
    # x_ref : (1, H+2, W+2, Cin)  zero-padded input for this batch element (bf16)
    # w_ref : (9, Cin, Ct)        conv weights for this Cout tile (bf16)
    # b_ref : (1, Ct)             conv bias (f32)
    # a_ref : (Ct, Ct)            block-diag group-averaging matrix (1/Cg within group)
    # sc_ref: (1, 1, Ct)          folded scale  = gamma * (scale + 1)
    # sh_ref: (1, 1, Ct)          folded shift  = beta * (scale + 1) + shift
    # o_ref : (1, H*W, Ct)
    H = x_ref.shape[1] - 2
    W = x_ref.shape[2] - 2
    Cin = x_ref.shape[3]
    HW = o_ref.shape[1]
    inv_hw = 1.0 / float(HW)

    # --- 3x3 conv: 9 shifted taps, each a (HW, Cin) @ (Cin, Ct) MXU matmul ---
    acc = None
    for dy in range(3):
        for dx in range(3):
            t = dy * 3 + dx
            tap = x_ref[0, dy:dy + H, dx:dx + W, :].reshape(HW, Cin)
            p = jnp.dot(tap, w_ref[t], preferred_element_type=jnp.float32)
            acc = p if acc is None else acc + p
    acc = acc + b_ref[...]                                   # (1, Ct) broadcast

    # --- GroupNorm: centered two-pass statistics (per sample, per group) ---
    mu_c = jnp.sum(acc, axis=0, keepdims=True) * inv_hw      # (1, Ct) channel means
    gmu = jnp.dot(mu_c, a_ref[...],
                  preferred_element_type=jnp.float32)        # per-group mean per channel
    d = acc - gmu
    var_c = jnp.sum(d * d, axis=0, keepdims=True) * inv_hw   # channel var around group mean
    gvar = jnp.dot(var_c, a_ref[...],
                   preferred_element_type=jnp.float32)       # per-group variance
    inv = lax.rsqrt(gvar + EPS)                              # (1, Ct)

    # --- folded affine + scale/shift, then SiLU ---
    y = d * (inv * sc_ref[0]) + sh_ref[0]
    y = y * lax.logistic(y)

    o_ref[0] = y.astype(o_ref.dtype)


def _pick_cout_tile(cout, cg):
    # Lane-dense Cout tiles that respect group boundaries; otherwise take all
    # channels at once (small-channel case, e.g. the demo shapes).
    for cand in (512, 256, 128):
        if cout % cand == 0 and cand % cg == 0:
            return cand
    return cout


@functools.partial(jax.jit, static_argnames=("groups",))
def block_forward(x, w, b, gamma, beta, scale, shift, *, groups):
    """x: (N, Cin, H, W) NCHW.  Returns (N, Cout, H, W) float32."""
    N, Cin, H, W = x.shape
    Cout = w.shape[0]
    Cg = Cout // groups
    HW = H * W

    # ---- layout plumbing (glue): NCHW -> NHWC, pad, bf16 MXU operands ----
    x_nhwc = jnp.transpose(x, (0, 2, 3, 1)).astype(jnp.bfloat16)
    xp = jnp.pad(x_nhwc, ((0, 0), (1, 1), (1, 1), (0, 0)))           # (N,H+2,W+2,Cin)
    w2 = jnp.transpose(w, (2, 3, 1, 0)).reshape(9, Cin, Cout).astype(jnp.bfloat16)
    b2 = b.reshape(1, Cout).astype(jnp.float32)

    # fold GN affine with the optional scale/shift (tiny (N,Cout) math in XLA):
    #   y = xhat*gamma + beta;  y = y*(scale+1) + shift
    #     = xhat * (gamma*(scale+1)) + (beta*(scale+1) + shift)
    sp1 = scale.reshape(N, Cout).astype(jnp.float32) + 1.0
    eff_scale = (gamma.reshape(1, Cout).astype(jnp.float32) * sp1).reshape(N, 1, Cout)
    eff_shift = (beta.reshape(1, Cout).astype(jnp.float32) * sp1
                 + shift.reshape(N, Cout).astype(jnp.float32)).reshape(N, 1, Cout)

    ct = _pick_cout_tile(Cout, Cg)
    n_ct = Cout // ct

    gid = jnp.arange(ct) // Cg
    A = (gid[:, None] == gid[None, :]).astype(jnp.float32) / float(Cg)  # (ct, ct)

    out = pl.pallas_call(
        _block_kernel,
        out_shape=jax.ShapeDtypeStruct((N, HW, Cout), jnp.float32),
        grid=(N, n_ct),
        in_specs=[
            pl.BlockSpec((1, H + 2, W + 2, Cin), lambda n, c: (n, 0, 0, 0)),
            pl.BlockSpec((9, Cin, ct), lambda n, c: (0, 0, c)),
            pl.BlockSpec((1, ct), lambda n, c: (0, c)),
            pl.BlockSpec((ct, ct), lambda n, c: (0, 0)),
            pl.BlockSpec((1, 1, ct), lambda n, c: (n, 0, c)),
            pl.BlockSpec((1, 1, ct), lambda n, c: (n, 0, c)),
        ],
        out_specs=pl.BlockSpec((1, HW, ct), lambda n, c: (n, 0, c)),
        compiler_params=pltpu.CompilerParams(
            dimension_semantics=("parallel", "parallel"),
            vmem_limit_bytes=64 * 1024 * 1024,
        ),
    )(xp, w2, b2, A, eff_scale, eff_shift)

    return jnp.transpose(out.reshape(N, H, W, Cout), (0, 3, 1, 2))      # back to NCHW


def block_apply(x, params, scale_shift=None, *, groups):
    """Mirrors Block.forward(x, scale_shift)."""
    N = x.shape[0]
    Cout = params["w"].shape[0]
    if scale_shift is None:
        scale = jnp.zeros((N, Cout), jnp.float32)
        shift = jnp.zeros((N, Cout), jnp.float32)
    else:
        scale, shift = scale_shift
        scale = scale.reshape(N, Cout)
        shift = shift.reshape(N, Cout)
    return block_forward(x, params["w"], params["b"], params["gamma"],
                         params["beta"], scale, shift, groups=groups)


# ---------------- pure-JAX reference (verification only) ----------------
def block_reference(x, params, scale_shift=None, *, groups, quantize_bf16=False):
    xw = x.astype(jnp.float32)
    ww = params["w"].astype(jnp.float32)
    if quantize_bf16:
        # Match the kernel's deliberate bf16 MXU-operand quantization.
        xw = xw.astype(jnp.bfloat16).astype(jnp.float32)
        ww = ww.astype(jnp.bfloat16).astype(jnp.float32)
    y = lax.conv_general_dilated(
        xw, ww, window_strides=(1, 1), padding="SAME",
        dimension_numbers=("NCHW", "OIHW", "NCHW"))
    y = y + params["b"][None, :, None, None]
    N, C, H, W = y.shape
    yg = y.reshape(N, groups, C // groups, H, W)
    mu = jnp.mean(yg, axis=(2, 3, 4), keepdims=True)
    var = jnp.mean((yg - mu) ** 2, axis=(2, 3, 4), keepdims=True)
    yn = ((yg - mu) / jnp.sqrt(var + EPS)).reshape(N, C, H, W)
    yn = yn * params["gamma"][None, :, None, None] + params["beta"][None, :, None, None]
    if scale_shift is not None:
        scale, shift = scale_shift
        yn = yn * (scale + 1.0) + shift
    return yn * jax.nn.sigmoid(yn)


if __name__ == "__main__":
    key = jax.random.PRNGKey(0)
    k1, k2, k3, k4, k5, k6, k7 = jax.random.split(key, 7)

    # small shapes consistent with Block(dim=4, dim_out=8, groups=8)
    N, Cin, Cout, H, W, groups = 2, 4, 8, 16, 16, 8

    params = {
        "w": jax.random.normal(k1, (Cout, Cin, 3, 3), jnp.float32) * 0.1,
        "b": jax.random.normal(k2, (Cout,), jnp.float32) * 0.1,
        "gamma": 1.0 + 0.1 * jax.random.normal(k3, (Cout,), jnp.float32),
        "beta": 0.1 * jax.random.normal(k4, (Cout,), jnp.float32),
    }
    x = jax.random.normal(k5, (N, Cin, H, W), jnp.float32)
    scale = 0.2 * jax.random.normal(k6, (N, Cout, 1, 1), jnp.float32)
    shift = 0.2 * jax.random.normal(k7, (N, Cout, 1, 1), jnp.float32)

    # with scale_shift
    out1 = jax.block_until_ready(block_apply(x, params, (scale, shift), groups=groups))
    assert out1.shape == (N, Cout, H, W)
    ref1_q = block_reference(x, params, (scale, shift), groups=groups, quantize_bf16=True)
    ref1_f = block_reference(x, params, (scale, shift), groups=groups, quantize_bf16=False)
    assert jnp.allclose(out1, ref1_q, atol=2e-3, rtol=2e-3), "mismatch (bf16-matched) with scale_shift"
    assert jnp.allclose(out1, ref1_f, atol=5e-2, rtol=5e-2), "mismatch (f32 ref) with scale_shift"

    # without scale_shift
    out2 = jax.block_until_ready(block_apply(x, params, None, groups=groups))
    ref2_q = block_reference(x, params, None, groups=groups, quantize_bf16=True)
    ref2_f = block_reference(x, params, None, groups=groups, quantize_bf16=False)
    assert jnp.allclose(out2, ref2_q, atol=2e-3, rtol=2e-3), "mismatch (bf16-matched) without scale_shift"
    assert jnp.allclose(out2, ref2_f, atol=5e-2, rtol=5e-2), "mismatch (f32 ref) without scale_shift"

    print("KERNEL_OK")
</pallas_src>

<mosaic_0001>
module attributes {stable_mosaic.version = 11 : i64} {
  func.func @_block_kernel(%arg0: i32, %arg1: i32, %arg2: memref<1x18x18x4xbf16, #tpu.memory_space<vmem>>, %arg3: memref<9x4x8xbf16, #tpu.memory_space<vmem>>, %arg4: memref<1x8xf32, #tpu.memory_space<vmem>>, %arg5: memref<8x8xf32, #tpu.memory_space<vmem>>, %arg6: memref<1x1x8xf32, #tpu.memory_space<vmem>>, %arg7: memref<1x1x8xf32, #tpu.memory_space<vmem>>, %arg8: memref<1x256x8xf32, #tpu.memory_space<vmem>>) attributes {dimension_semantics = [#tpu.dimension_semantics<parallel>, #tpu.dimension_semantics<parallel>], iteration_bounds = array<i64: 2, 1>, scalar_prefetch = 0 : i64, scratch_operands = 0 : i64, tpu.core_type = #tpu.core_type<tc>, window_params = [{transform_indices = @transform_0, window_bounds = array<i64: 1, 18, 18, 4>}, {transform_indices = @transform_1, window_bounds = array<i64: 9, 4, 8>}, {transform_indices = @transform_2, window_bounds = array<i64: 1, 8>}, {pipeline_mode = #tpu.pipeline_mode<synchronous>, transform_indices = @transform_3, window_bounds = array<i64: 8, 8>}, {transform_indices = @transform_4, window_bounds = array<i64: 1, 1, 8>}, {transform_indices = @transform_5, window_bounds = array<i64: 1, 1, 8>}, {transform_indices = @transform_6, window_bounds = array<i64: 1, 256, 8>}]} {
    %c0 = arith.constant 0 : index
    %c0_0 = arith.constant 0 : index
    %c0_1 = arith.constant 0 : index
    %c0_2 = arith.constant 0 : index
    %0 = vector.load %arg2[%c0, %c0_0, %c0_1, %c0_2] : memref<1x18x18x4xbf16, #tpu.memory_space<vmem>>, vector<1x16x16x4xbf16>
    %1 = vector.shape_cast %0 : vector<1x16x16x4xbf16> to vector<16x16x4xbf16>
    %2 = vector.shape_cast %1 : vector<16x16x4xbf16> to vector<256x4xbf16>
    %c0_3 = arith.constant 0 : index
    %c0_4 = arith.constant 0 : index
    %c0_5 = arith.constant 0 : index
    %3 = vector.load %arg3[%c0_3, %c0_4, %c0_5] : memref<9x4x8xbf16, #tpu.memory_space<vmem>>, vector<1x4x8xbf16>
    %4 = vector.shape_cast %3 : vector<1x4x8xbf16> to vector<4x8xbf16>
    %cst = arith.constant dense<0.000000e+00> : vector<256x8xf32>
    %5 = tpu.matmul %2, %4, %cst {dimension_numbers = #tpu.dot_dimension_numbers<[1], [0], [0], [1], [0, 0, 1, 1], [], []>} : vector<256x4xbf16>, vector<4x8xbf16>, vector<256x8xf32> -> vector<256x8xf32>
    %c0_6 = arith.constant 0 : index
    %c0_7 = arith.constant 0 : index
    %c1 = arith.constant 1 : index
    %c0_8 = arith.constant 0 : index
    %6 = vector.load %arg2[%c0_6, %c0_7, %c1, %c0_8] : memref<1x18x18x4xbf16, #tpu.memory_space<vmem>>, vector<1x16x16x4xbf16>
    %7 = vector.shape_cast %6 : vector<1x16x16x4xbf16> to vector<16x16x4xbf16>
    %8 = vector.shape_cast %7 : vector<16x16x4xbf16> to vector<256x4xbf16>
    %c1_9 = arith.constant 1 : index
    %c0_10 = arith.constant 0 : index
    %c0_11 = arith.constant 0 : index
    %9 = vector.load %arg3[%c1_9, %c0_10, %c0_11] : memref<9x4x8xbf16, #tpu.memory_space<vmem>>, vector<1x4x8xbf16>
    %10 = vector.shape_cast %9 : vector<1x4x8xbf16> to vector<4x8xbf16>
    %cst_12 = arith.constant dense<0.000000e+00> : vector<256x8xf32>
    %11 = tpu.matmul %8, %10, %cst_12 {dimension_numbers = #tpu.dot_dimension_numbers<[1], [0], [0], [1], [0, 0, 1, 1], [], []>} : vector<256x4xbf16>, vector<4x8xbf16>, vector<256x8xf32> -> vector<256x8xf32>
    %12 = arith.addf %5, %11 : vector<256x8xf32>
    %c0_13 = arith.constant 0 : index
    %c0_14 = arith.constant 0 : index
    %c2 = arith.constant 2 : index
    %c0_15 = arith.constant 0 : index
    %13 = vector.load %arg2[%c0_13, %c0_14, %c2, %c0_15] : memref<1x18x18x4xbf16, #tpu.memory_space<vmem>>, vector<1x16x16x4xbf16>
    %14 = vector.shape_cast %13 : vector<1x16x16x4xbf16> to vector<16x16x4xbf16>
    %15 = vector.shape_cast %14 : vector<16x16x4xbf16> to vector<256x4xbf16>
    %c2_16 = arith.constant 2 : index
    %c0_17 = arith.constant 0 : index
    %c0_18 = arith.constant 0 : index
    %16 = vector.load %arg3[%c2_16, %c0_17, %c0_18] : memref<9x4x8xbf16, #tpu.memory_space<vmem>>, vector<1x4x8xbf16>
    %17 = vector.shape_cast %16 : vector<1x4x8xbf16> to vector<4x8xbf16>
    %cst_19 = arith.constant dense<0.000000e+00> : vector<256x8xf32>
    %18 = tpu.matmul %15, %17, %cst_19 {dimension_numbers = #tpu.dot_dimension_numbers<[1], [0], [0], [1], [0, 0, 1, 1], [], []>} : vector<256x4xbf16>, vector<4x8xbf16>, vector<256x8xf32> -> vector<256x8xf32>
    %19 = arith.addf %12, %18 : vector<256x8xf32>
    %c0_20 = arith.constant 0 : index
    %c1_21 = arith.constant 1 : index
    %c0_22 = arith.constant 0 : index
    %c0_23 = arith.constant 0 : index
    %20 = vector.load %arg2[%c0_20, %c1_21, %c0_22, %c0_23] : memref<1x18x18x4xbf16, #tpu.memory_space<vmem>>, vector<1x16x16x4xbf16>
    %21 = vector.shape_cast %20 : vector<1x16x16x4xbf16> to vector<16x16x4xbf16>
    %22 = vector.shape_cast %21 : vector<16x16x4xbf16> to vector<256x4xbf16>
    %c3 = arith.constant 3 : index
    %c0_24 = arith.constant 0 : index
    %c0_25 = arith.constant 0 : index
    %23 = vector.load %arg3[%c3, %c0_24, %c0_25] : memref<9x4x8xbf16, #tpu.memory_space<vmem>>, vector<1x4x8xbf16>
    %24 = vector.shape_cast %23 : vector<1x4x8xbf16> to vector<4x8xbf16>
    %cst_26 = arith.constant dense<0.000000e+00> : vector<256x8xf32>
    %25 = tpu.matmul %22, %24, %cst_26 {dimension_numbers = #tpu.dot_dimension_numbers<[1], [0], [0], [1], [0, 0, 1, 1], [], []>} : vector<256x4xbf16>, vector<4x8xbf16>, vector<256x8xf32> -> vector<256x8xf32>
    %26 = arith.addf %19, %25 : vector<256x8xf32>
    %c0_27 = arith.constant 0 : index
    %c1_28 = arith.constant 1 : index
    %c1_29 = arith.constant 1 : index
    %c0_30 = arith.constant 0 : index
    %27 = vector.load %arg2[%c0_27, %c1_28, %c1_29, %c0_30] : memref<1x18x18x4xbf16, #tpu.memory_space<vmem>>, vector<1x16x16x4xbf16>
    %28 = vector.shape_cast %27 : vector<1x16x16x4xbf16> to vector<16x16x4xbf16>
    %29 = vector.shape_cast %28 : vector<16x16x4xbf16> to vector<256x4xbf16>
    %c4 = arith.constant 4 : index
    %c0_31 = arith.constant 0 : index
    %c0_32 = arith.constant 0 : index
    %30 = vector.load %arg3[%c4, %c0_31, %c0_32] : memref<9x4x8xbf16, #tpu.memory_space<vmem>>, vector<1x4x8xbf16>
    %31 = vector.shape_cast %30 : vector<1x4x8xbf16> to vector<4x8xbf16>
    %cst_33 = arith.constant dense<0.000000e+00> : vector<256x8xf32>
    %32 = tpu.matmul %29, %31, %cst_33 {dimension_numbers = #tpu.dot_dimension_numbers<[1], [0], [0], [1], [0, 0, 1, 1], [], []>} : vector<256x4xbf16>, vector<4x8xbf16>, vector<256x8xf32> -> vector<256x8xf32>
    %33 = arith.addf %26, %32 : vector<256x8xf32>
    %c0_34 = arith.constant 0 : index
    %c1_35 = arith.constant 1 : index
    %c2_36 = arith.constant 2 : index
    %c0_37 = arith.constant 0 : index
    %34 = vector.load %arg2[%c0_34, %c1_35, %c2_36, %c0_37] : memref<1x18x18x4xbf16, #tpu.memory_space<vmem>>, vector<1x16x16x4xbf16>
    %35 = vector.shape_cast %34 : vector<1x16x16x4xbf16> to vector<16x16x4xbf16>
    %36 = vector.shape_cast %35 : vector<16x16x4xbf16> to vector<256x4xbf16>
    %c5 = arith.constant 5 : index
    %c0_38 = arith.constant 0 : index
    %c0_39 = arith.constant 0 : index
    %37 = vector.load %arg3[%c5, %c0_38, %c0_39] : memref<9x4x8xbf16, #tpu.memory_space<vmem>>, vector<1x4x8xbf16>
    %38 = vector.shape_cast %37 : vector<1x4x8xbf16> to vector<4x8xbf16>
    %cst_40 = arith.constant dense<0.000000e+00> : vector<256x8xf32>
    %39 = tpu.matmul %36, %38, %cst_40 {dimension_numbers = #tpu.dot_dimension_numbers<[1], [0], [0], [1], [0, 0, 1, 1], [], []>} : vector<256x4xbf16>, vector<4x8xbf16>, vector<256x8xf32> -> vector<256x8xf32>
    %40 = arith.addf %33, %39 : vector<256x8xf32>
    %c0_41 = arith.constant 0 : index
    %c2_42 = arith.constant 2 : index
    %c0_43 = arith.constant 0 : index
    %c0_44 = arith.constant 0 : index
    %41 = vector.load %arg2[%c0_41, %c2_42, %c0_43, %c0_44] : memref<1x18x18x4xbf16, #tpu.memory_space<vmem>>, vector<1x16x16x4xbf16>
    %42 = vector.shape_cast %41 : vector<1x16x16x4xbf16> to vector<16x16x4xbf16>
    %43 = vector.shape_cast %42 : vector<16x16x4xbf16> to vector<256x4xbf16>
    %c6 = arith.constant 6 : index
    %c0_45 = arith.constant 0 : index
    %c0_46 = arith.constant 0 : index
    %44 = vector.load %arg3[%c6, %c0_45, %c0_46] : memref<9x4x8xbf16, #tpu.memory_space<vmem>>, vector<1x4x8xbf16>
    %45 = vector.shape_cast %44 : vector<1x4x8xbf16> to vector<4x8xbf16>
    %cst_47 = arith.constant dense<0.000000e+00> : vector<256x8xf32>
    %46 = tpu.matmul %43, %45, %cst_47 {dimension_numbers = #tpu.dot_dimension_numbers<[1], [0], [0], [1], [0, 0, 1, 1], [], []>} : vector<256x4xbf16>, vector<4x8xbf16>, vector<256x8xf32> -> vector<256x8xf32>
    %47 = arith.addf %40, %46 : vector<256x8xf32>
    %c0_48 = arith.constant 0 : index
    %c2_49 = arith.constant 2 : index
    %c1_50 = arith.constant 1 : index
    %c0_51 = arith.constant 0 : index
    %48 = vector.load %arg2[%c0_48, %c2_49, %c1_50, %c0_51] : memref<1x18x18x4xbf16, #tpu.memory_space<vmem>>, vector<1x16x16x4xbf16>
    %49 = vector.shape_cast %48 : vector<1x16x16x4xbf16> to vector<16x16x4xbf16>
    %50 = vector.shape_cast %49 : vector<16x16x4xbf16> to vector<256x4xbf16>
    %c7 = arith.constant 7 : index
    %c0_52 = arith.constant 0 : index
    %c0_53 = arith.constant 0 : index
    %51 = vector.load %arg3[%c7, %c0_52, %c0_53] : memref<9x4x8xbf16, #tpu.memory_space<vmem>>, vector<1x4x8xbf16>
    %52 = vector.shape_cast %51 : vector<1x4x8xbf16> to vector<4x8xbf16>
    %cst_54 = arith.constant dense<0.000000e+00> : vector<256x8xf32>
    %53 = tpu.matmul %50, %52, %cst_54 {dimension_numbers = #tpu.dot_dimension_numbers<[1], [0], [0], [1], [0, 0, 1, 1], [], []>} : vector<256x4xbf16>, vector<4x8xbf16>, vector<256x8xf32> -> vector<256x8xf32>
    %54 = arith.addf %47, %53 : vector<256x8xf32>
    %c0_55 = arith.constant 0 : index
    %c2_56 = arith.constant 2 : index
    %c2_57 = arith.constant 2 : index
    %c0_58 = arith.constant 0 : index
    %55 = vector.load %arg2[%c0_55, %c2_56, %c2_57, %c0_58] : memref<1x18x18x4xbf16, #tpu.memory_space<vmem>>, vector<1x16x16x4xbf16>
    %56 = vector.shape_cast %55 : vector<1x16x16x4xbf16> to vector<16x16x4xbf16>
    %57 = vector.shape_cast %56 : vector<16x16x4xbf16> to vector<256x4xbf16>
    %c8 = arith.constant 8 : index
    %c0_59 = arith.constant 0 : index
    %c0_60 = arith.constant 0 : index
    %58 = vector.load %arg3[%c8, %c0_59, %c0_60] : memref<9x4x8xbf16, #tpu.memory_space<vmem>>, vector<1x4x8xbf16>
    %59 = vector.shape_cast %58 : vector<1x4x8xbf16> to vector<4x8xbf16>
    %cst_61 = arith.constant dense<0.000000e+00> : vector<256x8xf32>
    %60 = tpu.matmul %57, %59, %cst_61 {dimension_numbers = #tpu.dot_dimension_numbers<[1], [0], [0], [1], [0, 0, 1, 1], [], []>} : vector<256x4xbf16>, vector<4x8xbf16>, vector<256x8xf32> -> vector<256x8xf32>
    %61 = arith.addf %54, %60 : vector<256x8xf32>
    %c0_62 = arith.constant 0 : index
    %c0_63 = arith.constant 0 : index
    %62 = vector.load %arg4[%c0_62, %c0_63] : memref<1x8xf32, #tpu.memory_space<vmem>>, vector<1x8xf32>
    %63 = vector.broadcast %62 : vector<1x8xf32> to vector<256x8xf32>
    %64 = arith.addf %61, %63 : vector<256x8xf32>
    %cst_64 = arith.constant dense<0.000000e+00> : vector<8xf32>
    %65 = vector.multi_reduction <add>, %64, %cst_64 [0] : vector<256x8xf32> to vector<8xf32>
    %66 = vector.shape_cast %65 : vector<8xf32> to vector<1x8xf32>
    %cst_65 = arith.constant 3.906250e-03 : f32
    %67 = vector.broadcast %cst_65 : f32 to vector<1x8xf32>
    %68 = arith.mulf %66, %67 : vector<1x8xf32>
    %c0_66 = arith.constant 0 : index
    %c0_67 = arith.constant 0 : index
    %69 = vector.load %arg5[%c0_66, %c0_67] : memref<8x8xf32, #tpu.memory_space<vmem>>, vector<8x8xf32>
    %cst_68 = arith.constant dense<0.000000e+00> : vector<1x8xf32>
    %70 = tpu.matmul %68, %69, %cst_68 {dimension_numbers = #tpu.dot_dimension_numbers<[1], [0], [0], [1], [0, 0, 1, 1], [], []>} : vector<1x8xf32>, vector<8x8xf32>, vector<1x8xf32> -> vector<1x8xf32>
    %71 = vector.broadcast %70 : vector<1x8xf32> to vector<256x8xf32>
    %72 = arith.subf %64, %71 : vector<256x8xf32>
    %73 = arith.mulf %72, %72 : vector<256x8xf32>
    %cst_69 = arith.constant dense<0.000000e+00> : vector<8xf32>
    %74 = vector.multi_reduction <add>, %73, %cst_69 [0] : vector<256x8xf32> to vector<8xf32>
    %75 = vector.shape_cast %74 : vector<8xf32> to vector<1x8xf32>
    %cst_70 = arith.constant 3.906250e-03 : f32
    %76 = vector.broadcast %cst_70 : f32 to vector<1x8xf32>
    %77 = arith.mulf %75, %76 : vector<1x8xf32>
    %c0_71 = arith.constant 0 : index
    %c0_72 = arith.constant 0 : index
    %78 = vector.load %arg5[%c0_71, %c0_72] : memref<8x8xf32, #tpu.memory_space<vmem>>, vector<8x8xf32>
    %cst_73 = arith.constant dense<0.000000e+00> : vector<1x8xf32>
    %79 = tpu.matmul %77, %78, %cst_73 {dimension_numbers = #tpu.dot_dimension_numbers<[1], [0], [0], [1], [0, 0, 1, 1], [], []>} : vector<1x8xf32>, vector<8x8xf32>, vector<1x8xf32> -> vector<1x8xf32>
    %cst_74 = arith.constant 9.99999974E-6 : f32
    %80 = vector.broadcast %cst_74 : f32 to vector<1x8xf32>
    %81 = arith.addf %79, %80 : vector<1x8xf32>
    %82 = math.rsqrt %81 : vector<1x8xf32>
    %c0_75 = arith.constant 0 : index
    %c0_76 = arith.constant 0 : index
    %c0_77 = arith.constant 0 : index
    %83 = vector.load %arg6[%c0_75, %c0_76, %c0_77] : memref<1x1x8xf32, #tpu.memory_space<vmem>>, vector<1x1x8xf32>
    %84 = vector.shape_cast %83 : vector<1x1x8xf32> to vector<1x8xf32>
    %85 = arith.mulf %82, %84 : vector<1x8xf32>
    %86 = vector.broadcast %85 : vector<1x8xf32> to vector<256x8xf32>
    %87 = arith.mulf %72, %86 : vector<256x8xf32>
    %c0_78 = arith.constant 0 : index
    %c0_79 = arith.constant 0 : index
    %c0_80 = arith.constant 0 : index
    %88 = vector.load %arg7[%c0_78, %c0_79, %c0_80] : memref<1x1x8xf32, #tpu.memory_space<vmem>>, vector<1x1x8xf32>
    %89 = vector.shape_cast %88 : vector<1x1x8xf32> to vector<1x8xf32>
    %90 = vector.broadcast %89 : vector<1x8xf32> to vector<256x8xf32>
    %91 = arith.addf %87, %90 : vector<256x8xf32>
    %92 = arith.negf %91 : vector<256x8xf32>
    %93 = math.exp %92 : vector<256x8xf32>
    %cst_81 = arith.constant 1.000000e+00 : f32
    %94 = vector.broadcast %cst_81 : f32 to vector<256x8xf32>
    %95 = arith.addf %94, %93 : vector<256x8xf32>
    %96 = arith.divf %94, %95 : vector<256x8xf32>
    %97 = arith.mulf %91, %96 : vector<256x8xf32>
    %c0_82 = arith.constant 0 : index
    %c0_83 = arith.constant 0 : index
    %c0_84 = arith.constant 0 : index
    %98 = vector.load %arg8[%c0_82, %c0_83, %c0_84] : memref<1x256x8xf32, #tpu.memory_space<vmem>>, vector<1x256x8xf32>
    %99 = vector.shape_cast %98 : vector<1x256x8xf32> to vector<256x8xf32>
    %100 = vector.shape_cast %97 : vector<256x8xf32> to vector<1x256x8xf32>
    tpu.vector_store %arg8[%c0_82, %c0_83, %c0_84], %100 {strides = array<i32>} : memref<1x256x8xf32, #tpu.memory_space<vmem>>, vector<1x256x8xf32>,
    return
  }
  func.func @transform_0(%arg0: i32, %arg1: i32) -> (i32, i32, i32, i32) {
    %c0_i32 = arith.constant 0 : i32
    %c0_i32_0 = arith.constant 0 : i32
    %c0_i32_1 = arith.constant 0 : i32
    %c0_i32_2 = arith.constant 0 : i32
    return %arg0, %c0_i32, %c0_i32_0, %c0_i32_1 : i32, i32, i32, i32
  }
  func.func @transform_1(%arg0: i32, %arg1: i32) -> (i32, i32, i32) {
    %c0_i32 = arith.constant 0 : i32
    %c0_i32_0 = arith.constant 0 : i32
    %c0_i32_1 = arith.constant 0 : i32
    return %c0_i32, %c0_i32_0, %arg1 : i32, i32, i32
  }
  func.func @transform_2(%arg0: i32, %arg1: i32) -> (i32, i32) {
    %c0_i32 = arith.constant 0 : i32
    %c0_i32_0 = arith.constant 0 : i32
    return %c0_i32, %arg1 : i32, i32
  }
  func.func @transform_3(%arg0: i32, %arg1: i32) -> (i32, i32) {
    %c0_i32 = arith.constant 0 : i32
    %c0_i32_0 = arith.constant 0 : i32
    %c0_i32_1 = arith.constant 0 : i32
    return %c0_i32, %c0_i32_0 : i32, i32
  }
  func.func @transform_4(%arg0: i32, %arg1: i32) -> (i32, i32, i32) {
    %c0_i32 = arith.constant 0 : i32
    %c0_i32_0 = arith.constant 0 : i32
    return %arg0, %c0_i32, %arg1 : i32, i32, i32
  }
  func.func @transform_5(%arg0: i32, %arg1: i32) -> (i32, i32, i32) {
    %c0_i32 = arith.constant 0 : i32
    %c0_i32_0 = arith.constant 0 : i32
    return %arg0, %c0_i32, %arg1 : i32, i32, i32
  }
  func.func @transform_6(%arg0: i32, %arg1: i32) -> (i32, i32, i32) {
    %c0_i32 = arith.constant 0 : i32
    %c0_i32_0 = arith.constant 0 : i32
    return %arg0, %c0_i32, %arg1 : i32, i32, i32
  }
}

</mosaic_0001>

<llo_original>
// kernel: block_forward.1
$region0: #{block_forward.1}
  #allocation0 [shape = 'u32[]', space=smem, size = 0x4, offset = 0x4, fixed_abs, tag = 'smem constant byte address 0x4 - core index']
  #allocation1 [shape = 'u32[72,128]{1,0:T(1,128)}', space=vmem, size = 0x9000, scoped, tag = 'internal scratch']
  %s0 = inlined_call_operand.vmem [shape: bf16[2,18,18,4], index: 0, kind: input, shape index: {}]
  %s1 = inlined_call_operand.vmem [shape: bf16[9,4,8], index: 1, kind: input, shape index: {}]
  %s2 = inlined_call_operand.vmem [shape: f32[1,8], index: 2, kind: input, shape index: {}]
  %s3 = inlined_call_operand.vmem [shape: f32[8,8], index: 3, kind: input, shape index: {}]
  %s4 = inlined_call_operand.vmem [shape: f32[2,1,8], index: 4, kind: input, shape index: {}]
  %s5 = inlined_call_operand.vmem [shape: f32[2,1,8], index: 5, kind: input, shape index: {}]
  %s6 = inlined_call_operand.vmem [shape: f32[2,256,8], index: 6, kind: output, shape index: {}]
  %s7 = sld [smem:[#allocation0]]
  $region57: #{block_forward.1} parent=0
    _
  %s9 = ssub.s32 1, %s7
  %s10 = scalar_select 0, %s9, %s7
  loop: start=0, step=1, limit=4
  $region2: #{block_forward.1} parent=0 // loop_pre_header
    _
  $region3: #{block_forward.1} parent=0 // loop_header
    %s12 = sphi 0, %s16
    %p13 = scmp.ge.s32.totalorder %s12, 4
    %s19 = sphi 0, %s31
    %s20 = sphi 0, %s27
    %s21 = sphi 0, %s19
    %s22 = sphi 0, %s20
    %s23 = sphi 0, %s21
    %s24 = sphi 0, %s22
    %s34 = sphi 0, %s36
    %s37 = sphi 0, %s34
    %s38 = sphi 0, %s37
    %s54 = sphi 0, %s38
    %s60 = sphi 0, %s62
    %s63 = sphi 0, %s60
    %s64 = sphi 0, %s63
    %s80 = sphi 0, %s64
    %s86 = sphi 0, %s88
    %s89 = sphi 0, %s86
    %s90 = sphi 0, %s89
    %s106 = sphi 0, %s90
    %s110 = sphi 0, %s110
    %s112 = sphi 0, %s110
    %s113 = sphi 0, %s112
    %s127 = sphi 0, %s113
    %s135 = sphi 0, %s137
    %s138 = sphi 0, %s135
    %s139 = sphi 0, %s138
    %s155 = sphi 0, %s139
    %s163 = sphi 0, %s165
    %s166 = sphi 0, %s163
    %s167 = sphi 0, %s166
    %s183 = sphi 0, %s167
    %s191 = sphi 0, %s193
    %s194 = sphi 0, %s191
    %s195 = sphi 0, %s194
    %s211 = sphi 0, %s195
  $region4: #{block_forward.1} parent=0 // loop_header_branch
    %15 = sbr.rel (%p13) target = $region8
  $region5: #{block_forward.1} parent=0 // loop_body
    %s17 = ssub.s32 %s12, 1
    %s18 = ssub.s32 %s12, 2
    %s25 = sadd.s32 1, %s20
    %p26 = scmp.ge.s32.totalorder %s25, 1
    %s27 = scalar_select %p26, 0, %s25
    %s28 = sadd.s32 1, %s19
    %s29 = scalar_select %p26, %s28, %s19
    %p30 = scmp.ge.s32.totalorder %s29, 2
    %s31 = scalar_select %p30, 0, %s29
    %s32 = ssub.s32 %s19, %s31
    %p33 = scmp.eq.s32.totalorder %s32, 0
    %s35 = sadd.s32 %s34, 1
    %s36 = scalar_select %p33, %s34, %s35
    %p39 = pneg %p33
    %p40 = scmp.eq.s32.totalorder %s12, 1
    %p41 = por %p39, %p40
    %p42 = scmp.ne.s32.totalorder %s34, %s37
    %p43 = scmp.eq.s32.totalorder %s12, 0
    %p44 = por %p42, %p43
    %p45 = scmp.ne.s32.totalorder %s34, %s37
    %p46 = scmp.eq.s32.totalorder %s17, 1
    %p47 = por %p45, %p46
    %p48 = scmp.ne.s32.totalorder %s37, %s38
    %p49 = scmp.eq.s32.totalorder %s17, 0
    %p50 = por %p48, %p49
    %p51 = scmp.ne.s32.totalorder %s37, %s38
    %p52 = scmp.eq.s32.totalorder %s18, 1
    %p53 = por %p51, %p52
    %p55 = scmp.ne.s32.totalorder %s38, %s54
    %p56 = scmp.eq.s32.totalorder %s18, 0
    %p57 = por %p55, %p56
    %s58 = ssub.s32 %s20, %s27
    %p59 = scmp.eq.s32.totalorder %s58, 0
    %s61 = sadd.s32 %s60, 1
    %s62 = scalar_select %p59, %s60, %s61
    %p65 = pneg %p59
    %p66 = scmp.eq.s32.totalorder %s12, 1
    %p67 = por %p65, %p66
    %p68 = scmp.ne.s32.totalorder %s60, %s63
    %p69 = scmp.eq.s32.totalorder %s12, 0
    %p70 = por %p68, %p69
    %p71 = scmp.ne.s32.totalorder %s60, %s63
    %p72 = scmp.eq.s32.totalorder %s17, 1
    %p73 = por %p71, %p72
    %p74 = scmp.ne.s32.totalorder %s63, %s64
    %p75 = scmp.eq.s32.totalorder %s17, 0
    %p76 = por %p74, %p75
    %p77 = scmp.ne.s32.totalorder %s63, %s64
    %p78 = scmp.eq.s32.totalorder %s18, 1
    %p79 = por %p77, %p78
    %p81 = scmp.ne.s32.totalorder %s64, %s80
    %p82 = scmp.eq.s32.totalorder %s18, 0
    %p83 = por %p81, %p82
    %s84 = ssub.s32 %s20, %s27
    %p85 = scmp.eq.s32.totalorder %s84, 0
    %s87 = sadd.s32 %s86, 1
    %s88 = scalar_select %p85, %s86, %s87
    %p91 = pneg %p85
    %p92 = scmp.eq.s32.totalorder %s12, 1
    %p93 = por %p91, %p92
    %p94 = scmp.ne.s32.totalorder %s86, %s89
    %p95 = scmp.eq.s32.totalorder %s12, 0
    %p96 = por %p94, %p95
    %p97 = scmp.ne.s32.totalorder %s86, %s89
    %p98 = scmp.eq.s32.totalorder %s17, 1
    %p99 = por %p97, %p98
    %p100 = scmp.ne.s32.totalorder %s89, %s90
    %p101 = scmp.eq.s32.totalorder %s17, 0
    %p102 = por %p100, %p101
    %p103 = scmp.ne.s32.totalorder %s89, %s90
    %p104 = scmp.eq.s32.totalorder %s18, 1
    %p105 = por %p103, %p104
    %p107 = scmp.ne.s32.totalorder %s90, %s106
    %p108 = scmp.eq.s32.totalorder %s18, 0
    %p109 = por %p107, %p108
    %s111 = sadd.s32 %s110, 1
    %p114 = scmp.eq.s32.totalorder %s12, 1
    %p115 = scmp.ne.s32.totalorder %s110, %s112
    %p116 = scmp.eq.s32.totalorder %s12, 0
    %p117 = por %p115, %p116
    %p118 = scmp.ne.s32.totalorder %s110, %s112
    %p119 = scmp.eq.s32.totalorder %s17, 1
    %p120 = por %p118, %p119
    %p121 = scmp.ne.s32.totalorder %s112, %s113
    %p122 = scmp.eq.s32.totalorder %s17, 0
    %p123 = por %p121, %p122
    %p124 = scmp.ne.s32.totalorder %s112, %s113
    %p125 = scmp.eq.s32.totalorder %s18, 1
    %p126 = por %p124, %p125
    %p128 = scmp.ne.s32.totalorder %s113, %s127
    %p129 = scmp.eq.s32.totalorder %s18, 0
    %p130 = por %p128, %p129
    %s131 = ssub.s32 %s19, %s31
    %s132 = ssub.s32 %s20, %s27
    %s133 = sor.u32 %s131, %s132
    %p134 = scmp.eq.s32.totalorder %s133, 0
    %s136 = sadd.s32 %s135, 1
    %s137 = scalar_select %p134, %s135, %s136
    %p140 = pneg %p134
    %p141 = scmp.eq.s32.totalorder %s12, 1
    %p142 = por %p140, %p141
    %p143 = scmp.ne.s32.totalorder %s135, %s138
    %p144 = scmp.eq.s32.totalorder %s12, 0
    %p145 = por %p143, %p144
    %p146 = scmp.ne.s32.totalorder %s135, %s138
    %p147 = scmp.eq.s32.totalorder %s17, 1
    %p148 = por %p146, %p147
    %p149 = scmp.ne.s32.totalorder %s138, %s139
    %p150 = scmp.eq.s32.totalorder %s17, 0
    %p151 = por %p149, %p150
    %p152 = scmp.ne.s32.totalorder %s138, %s139
    %p153 = scmp.eq.s32.totalorder %s18, 1
    %p154 = por %p152, %p153
    %p156 = scmp.ne.s32.totalorder %s139, %s155
    %p157 = scmp.eq.s32.totalorder %s18, 0
    %p158 = por %p156, %p157
    %s159 = ssub.s32 %s19, %s31
    %s160 = ssub.s32 %s20, %s27
    %s161 = sor.u32 %s159, %s160
    %p162 = scmp.eq.s32.totalorder %s161, 0
    %s164 = sadd.s32 %s163, 1
    %s165 = scalar_select %p162, %s163, %s164
    %p168 = pneg %p162
    %p169 = scmp.eq.s32.totalorder %s12, 1
    %p170 = por %p168, %p169
    %p171 = scmp.ne.s32.totalorder %s163, %s166
    %p172 = scmp.eq.s32.totalorder %s12, 0
    %p173 = por %p171, %p172
    %p174 = scmp.ne.s32.totalorder %s163, %s166
    %p175 = scmp.eq.s32.totalorder %s17, 1
    %p176 = por %p174, %p175
    %p177 = scmp.ne.s32.totalorder %s166, %s167
    %p178 = scmp.eq.s32.totalorder %s17, 0
    %p179 = por %p177, %p178
    %p180 = scmp.ne.s32.totalorder %s166, %s167
    %p181 = scmp.eq.s32.totalorder %s18, 1
    %p182 = por %p180, %p181
    %p184 = scmp.ne.s32.totalorder %s167, %s183
    %p185 = scmp.eq.s32.totalorder %s18, 0
    %p186 = por %p184, %p185
    %s187 = ssub.s32 %s19, %s31
    %s188 = ssub.s32 %s20, %s27
    %s189 = sor.u32 %s187, %s188
    %p190 = scmp.eq.s32.totalorder %s189, 0
    %s192 = sadd.s32 %s191, 1
    %s193 = scalar_select %p190, %s191, %s192
    %p196 = pneg %p190
    %p197 = scmp.eq.s32.totalorder %s12, 1
    %p198 = por %p196, %p197
    %p199 = scmp.ne.s32.totalorder %s191, %s194
    %p200 = scmp.eq.s32.totalorder %s12, 0
    %p201 = por %p199, %p200
    %p202 = scmp.ne.s32.totalorder %s191, %s194
    %p203 = scmp.eq.s32.totalorder %s17, 1
    %p204 = por %p202, %p203
    %p205 = scmp.ne.s32.totalorder %s194, %s195
    %p206 = scmp.eq.s32.totalorder %s17, 0
    %p207 = por %p205, %p206
    %p208 = scmp.ne.s32.totalorder %s194, %s195
    %p209 = scmp.eq.s32.totalorder %s18, 1
    %p210 = por %p208, %p209
    %p212 = scmp.ne.s32.totalorder %s195, %s211
    %p213 = scmp.eq.s32.totalorder %s18, 0
    %p214 = por %p212, %p213
    %p215 = scmp.le.s32.totalorder 1, %s12
    %p216 = scmp.lt.s32.totalorder %s12, 3
    %p217 = pnand %p215, %p216
    %p218 = pneg %p217
    // Predicated region
    $region9: #{block_forward.1} parent=5 // pred_check
      _
    $region10: #{block_forward.1} parent=5 // pred_check_branch
      %220 = sbr.rel (%p217) target = $region12
    $region11: #{block_forward.1} parent=5 // pred_region
      %s221 = ssub.s32 %s12, 1
      // Predicated region
      $region13: #{block_forward.1} parent=11 // pred_check
        %p222 = pneg %p76
      $region14: #{block_forward.1} parent=11 // pred_check_branch
        %224 = sbr.rel (%p222) target = $region16
      $region15: #{block_forward.1} parent=11 // pred_region
        %p225 = scmp.lt.s32.totalorder %s22, 0
        %s226 = scalar_select %p225, %s22, 0
        %s227 = smul.addr %s226, 2
        %s228 = scalar_lea.vmem %s1, %s227
      $region16: #{block_forward.1} parent=11 // pred_fallthru
        _
      // Predicated region
      $region17: #{block_forward.1} parent=11 // pred_check
        %p229 = pneg %p102
      $region18: #{block_forward.1} parent=11 // pred_check_branch
        %231 = sbr.rel (%p229) target = $region20
      $region19: #{block_forward.1} parent=11 // pred_region
        %p232 = scmp.lt.s32.totalorder %s22, 0
        %s233 = scalar_select %p232, %s22, 0
        %s234 = scalar_lea.vmem %s2, %s233
      $region20: #{block_forward.1} parent=11 // pred_fallthru
        _
      // Predicated region
      $region21: #{block_forward.1} parent=11 // pred_check
        %p235 = pneg %p123
      $region22: #{block_forward.1} parent=11 // pred_check_branch
        %237 = sbr.rel (%p235) target = $region24
      $region23: #{block_forward.1} parent=11 // pred_region
        _
      $region24: #{block_forward.1} parent=11 // pred_fallthru
        _
    $region12: #{block_forward.1} parent=5 // pred_fallthru
      _
    %p238 = scmp.lt.s32.totalorder %s12, 2
    // Predicated region
    $region25: #{block_forward.1} parent=5 // pred_check
      %p239 = pneg %p238
    $region26: #{block_forward.1} parent=5 // pred_check_branch
      %241 = sbr.rel (%p239) target = $region28
    $region27: #{block_forward.1} parent=5 // pred_region
      // Predicated region
      $region29: #{block_forward.1} parent=27 // pred_check
        %p242 = pneg %p44
      $region30: #{block_forward.1} parent=27 // pred_check_branch
        %244 = sbr.rel (%p242) target = $region32
      $region31: #{block_forward.1} parent=27 // pred_region
        %p245 = scmp.lt.s32.totalorder %s19, 1
        %s246 = scalar_select %p245, %s19, 1
        %s247 = smul.addr %s246, 54
        %s248 = smul.addr %s247, 4
        %s249 = scalar_lea.vmem %s0, %s248
      $region32: #{block_forward.1} parent=27 // pred_fallthru
        _
      // Predicated region
      $region33: #{block_forward.1} parent=27 // pred_check
        %p250 = pneg %p145
      $region34: #{block_forward.1} parent=27 // pred_check_branch
        %252 = sbr.rel (%p250) target = $region36
      $region35: #{block_forward.1} parent=27 // pred_region
        %p253 = scmp.lt.s32.totalorder %s19, 1
        %s254 = scalar_select %p253, %s19, 1
        %p255 = scmp.lt.s32.totalorder %s20, 0
        %s256 = scalar_select %p255, %s20, 0
        %s257 = sadd.s32 %s256, %s254
        %s258 = scalar_lea.vmem %s4, %s257
      $region36: #{block_forward.1} parent=27 // pred_fallthru
        _
      // Predicated region
      $region37: #{block_forward.1} parent=27 // pred_check
        %p259 = pneg %p173
      $region38: #{block_forward.1} parent=27 // pred_check_branch
        %261 = sbr.rel (%p259) target = $region40
      $region39: #{block_forward.1} parent=27 // pred_region
        %p262 = scmp.lt.s32.totalorder %s19, 1
        %s263 = scalar_select %p262, %s19, 1
        %p264 = scmp.lt.s32.totalorder %s20, 0
        %s265 = scalar_select %p264, %s20, 0
        %s266 = sadd.s32 %s265, %s263
        %s267 = scalar_lea.vmem %s5, %s266
      $region40: #{block_forward.1} parent=27 // pred_fallthru
        _
    $region28: #{block_forward.1} parent=5 // pred_fallthru
      _
    %p268 = scmp.le.s32.totalorder 1, %s12
    %p269 = scmp.lt.s32.totalorder %s12, 3
    %p270 = pnand %p268, %p269
    %p271 = pneg %p270
    // Predicated region
    $region41: #{block_forward.1} parent=5 // pred_check
      _
    $region42: #{block_forward.1} parent=5 // pred_check_branch
      %273 = sbr.rel (%p270) target = $region44
    $region43: #{block_forward.1} parent=5 // pred_region
      %s274 = ssub.s32 %s12, 1
      %p275 = scmp.lt.s32.totalorder %s21, 1
      %s276 = scalar_select %p275, %s21, 1
      %s277 = smul.addr %s276, 54
      %s278 = smul.addr %s277, 4
      %s279 = scalar_lea.vmem %s0, %s278
      %p280 = pneg %p50
      %p281 = pneg %p47
      %p282 = scmp.lt.s32.totalorder %s22, 0
      %s283 = scalar_select %p282, %s22, 0
      %s284 = smul.addr %s283, 2
      %s285 = scalar_lea.vmem %s1, %s284
      %p286 = pneg %p76
      %p287 = pneg %p73
      %p288 = scmp.lt.s32.totalorder %s22, 0
      %s289 = scalar_select %p288, %s22, 0
      %s290 = scalar_lea.vmem %s2, %s289
      %p291 = pneg %p102
      %p292 = pneg %p99
      %p293 = pneg %p123
      %p294 = pneg %p120
      %p295 = scmp.lt.s32.totalorder %s21, 1
      %s296 = scalar_select %p295, %s21, 1
      %p297 = scmp.lt.s32.totalorder %s22, 0
      %s298 = scalar_select %p297, %s22, 0
      %s299 = sadd.s32 %s298, %s296
      %s300 = scalar_lea.vmem %s4, %s299
      %p301 = pneg %p151
      %p302 = pneg %p148
      %p303 = scmp.lt.s32.totalorder %s21, 1
      %s304 = scalar_select %p303, %s21, 1
      %p305 = scmp.lt.s32.totalorder %s22, 0
      %s306 = scalar_select %p305, %s22, 0
      %s307 = sadd.s32 %s306, %s304
      %s308 = scalar_lea.vmem %s5, %s307
      %p309 = pneg %p179
      %p310 = pneg %p176
      %p311 = pneg %p207
      %p312 = pneg %p204
      %p313 = scmp.lt.s32.totalorder %s21, 1
      %s314 = scalar_select %p313, %s21, 1
      %p315 = scmp.lt.s32.totalorder %s22, 0
      %s316 = scalar_select %p315, %s22, 0
      %s317 = smul.addr %s314, 32
      %s318 = sadd.s32 %s316, %s317
      %s319 = smul.addr %s318, 8
      %s320 = scalar_lea.vmem %s6, %s319
      %p321 = scmp.lt.s32.totalorder %s21, 1
      %s322 = scalar_select %p321, %s21, 1
      %s323 = smul.addr %s322, 54
      %s324 = smul.addr %s323, 4
      %s325 = scalar_lea.vmem %s0, %s324
      %p326 = scmp.lt.s32.totalorder %s22, 0
      %s327 = scalar_select %p326, %s22, 0
      %s328 = smul.addr %s327, 2
      %s329 = scalar_lea.vmem %s1, %s328
      %p330 = scmp.lt.s32.totalorder %s22, 0
      %s331 = scalar_select %p330, %s22, 0
      %s332 = scalar_lea.vmem %s2, %s331
      %p333 = scmp.lt.s32.totalorder %s21, 1
      %s334 = scalar_select %p333, %s21, 1
      %p335 = scmp.lt.s32.totalorder %s22, 0
      %s336 = scalar_select %p335, %s22, 0
      %s337 = sadd.s32 %s336, %s334
      %s338 = scalar_lea.vmem %s4, %s337
      %p339 = scmp.lt.s32.totalorder %s21, 1
      %s340 = scalar_select %p339, %s21, 1
      %p341 = scmp.lt.s32.totalorder %s22, 0
      %s342 = scalar_select %p341, %s22, 0
      %s343 = sadd.s32 %s342, %s340
      %s344 = scalar_lea.vmem %s5, %s343
      %p345 = scmp.lt.s32.totalorder %s21, 1
      %s346 = scalar_select %p345, %s21, 1
      %p347 = scmp.lt.s32.totalorder %s22, 0
      %s348 = scalar_select %p347, %s22, 0
      %s349 = smul.addr %s346, 32
      %s350 = sadd.s32 %s348, %s349
      %s351 = smul.addr %s350, 8
      %s352 = scalar_lea.vmem %s6, %s351
      %v354 = vld [vmem:[%s325] sm:$0xf]
      %v355 = vld [vmem:[%s325 + $0x4] sm:$0xf]
      %v356 = vld [vmem:[%s325 + $0xc] sm:$0xf]
      %v357 = vld [vmem:[%s325 + $0x10] sm:$0xf]
      %v358 = vld [vmem:[%s325 + $0x18] sm:$0xf]
      %v359 = vld [vmem:[%s325 + $0x1c] sm:$0xf]
      %v360 = vld [vmem:[%s325 + $0x24] sm:$0xf]
      %v361 = vld [vmem:[%s325 + $0x28] sm:$0xf]
      %v362 = vld [vmem:[%s325 + $0x30] sm:$0xf]
      %v363 = vld [vmem:[%s325 + $0x34] sm:$0xf]
      %v364 = vld [vmem:[%s325 + $0x3c] sm:$0xf]
      %v365 = vld [vmem:[%s325 + $0x40] sm:$0xf]
      %v366 = vld [vmem:[%s325 + $0x48] sm:$0xf]
      %v367 = vld [vmem:[%s325 + $0x4c] sm:$0xf]
      %v368 = vld [vmem:[%s325 + $0x54] sm:$0xf]
      %v369 = vld [vmem:[%s325 + $0x58] sm:$0xf]
      %v370 = vld [vmem:[%s325 + $0x60] sm:$0xf]
      %v371 = vld [vmem:[%s325 + $0x64] sm:$0xf]
      %v372 = vld [vmem:[%s325 + $0x6c] sm:$0xf]
      %v373 = vld [vmem:[%s325 + $0x70] sm:$0xf]
      %v374 = vld [vmem:[%s325 + $0x78] sm:$0xf]
      %v375 = vld [vmem:[%s325 + $0x7c] sm:$0xf]
      %v376 = vld [vmem:[%s325 + $0x84] sm:$0xf]
      %v377 = vld [vmem:[%s325 + $0x88] sm:$0xf]
      %v378 = vld [vmem:[%s325 + $0x90] sm:$0xf]
      %v379 = vld [vmem:[%s325 + $0x94] sm:$0xf]
      %v380 = vld [vmem:[%s325 + $0x9c] sm:$0xf]
      %v381 = vld [vmem:[%s325 + $0xa0] sm:$0xf]
      %v382 = vld [vmem:[%s325 + $0xa8] sm:$0xf]
      %v383 = vld [vmem:[%s325 + $0xac] sm:$0xf]
      %v384 = vld [vmem:[%s325 + $0xb4] sm:$0xf]
      %v385 = vld [vmem:[%s325 + $0xb8] sm:$0xf]
      %v386 = vld [vmem:[%s329] sm:$0x3]
      %v387 = vld [vmem:[%s325 + $0x8] sm:$0x1]
      %v388 = vld [vmem:[%s325 + $0x14] sm:$0x1]
      %v389 = vld [vmem:[%s325 + $0x20] sm:$0x1]
      %v390 = vld [vmem:[%s325 + $0x2c] sm:$0x1]
      %v391 = vld [vmem:[%s325 + $0x38] sm:$0x1]
      %v392 = vld [vmem:[%s325 + $0x44] sm:$0x1]
      %v393 = vld [vmem:[%s325 + $0x50] sm:$0x1]
      %v394 = vld [vmem:[%s325 + $0x5c] sm:$0x1]
      %v395 = vld [vmem:[%s325 + $0x68] sm:$0x1]
      %v396 = vld [vmem:[%s325 + $0x74] sm:$0x1]
      %v397 = vld [vmem:[%s325 + $0x80] sm:$0x1]
      %v398 = vld [vmem:[%s325 + $0x8c] sm:$0x1]
      %v399 = vld [vmem:[%s325 + $0x98] sm:$0x1]
      %v400 = vld [vmem:[%s325 + $0xa4] sm:$0x1]
      %v401 = vld [vmem:[%s325 + $0xb0] sm:$0x1]
      %v402 = vld [vmem:[%s325 + $0xbc] sm:$0x1]
      %vm403 = vsmask.f32 3328
      %vm404 = vsmask.f32 7440
      %vm405 = vmor %vm403, %vm404
      %v407 = vshrl.u32 %v354, 16
      %v409 = vrot.slane %v407, 4
      %v410 = vshll.u32 %v354, 16
      %v412 = vrot.slane %v410, 5
      %v413 = vor.u32 %v409, %v412
      %v414 = vrot.slane %v413, 4
      %v416 = vshll.u32 %v355, 16
      %v418 = vrot.slane %v416, 5
      %v419 = vsel %vm405, %v414, %v418
      %v420 = vshrl.u32 %v355, 16
      %v422 = vrot.slane %v420, 4
      %v423 = vor.u32 %v422, %v418
      %v424 = vrot.slane %v423, 4
      %v426 = vshll.u32 %v387, 16
      %v428 = vrot.slane %v426, 5
      %v429 = vsel %vm405, %v424, %v428
      %v431 = vshrl.u32 %v356, 16
      %v433 = vrot.slane %v431, 4
      %v434 = vshll.u32 %v356, 16
      %v436 = vrot.slane %v434, 5
      %v437 = vor.u32 %v433, %v436
      %v438 = vrot.slane %v437, 4
      %v440 = vshll.u32 %v357, 16
      %v442 = vrot.slane %v440, 5
      %v443 = vsel %vm405, %v438, %v442
      %v444 = vshrl.u32 %v357, 16
      %v446 = vrot.slane %v444, 4
      %v447 = vor.u32 %v446, %v442
      %v448 = vrot.slane %v447, 4
      %v450 = vshll.u32 %v388, 16
      %v452 = vrot.slane %v450, 5
      %v453 = vsel %vm405, %v448, %v452
      %v455 = vshrl.u32 %v358, 16
      %v457 = vrot.slane %v455, 4
      %v458 = vshll.u32 %v358, 16
      %v460 = vrot.slane %v458, 5
      %v461 = vor.u32 %v457, %v460
      %v462 = vrot.slane %v461, 4
      %v464 = vshll.u32 %v359, 16
      %v466 = vrot.slane %v464, 5
      %v467 = vsel %vm405, %v462, %v466
      %v468 = vshrl.u32 %v359, 16
      %v470 = vrot.slane %v468, 4
      %v471 = vor.u32 %v470, %v466
      %v472 = vrot.slane %v471, 4
      %v474 = vshll.u32 %v389, 16
      %v476 = vrot.slane %v474, 5
      %v477 = vsel %vm405, %v472, %v476
      %v479 = vshrl.u32 %v360, 16
      %v481 = vrot.slane %v479, 4
      %v482 = vshll.u32 %v360, 16
      %v484 = vrot.slane %v482, 5
      %v485 = vor.u32 %v481, %v484
      %v486 = vrot.slane %v485, 4
      %v488 = vshll.u32 %v361, 16
      %v490 = vrot.slane %v488, 5
      %v491 = vsel %vm405, %v486, %v490
      %v492 = vshrl.u32 %v361, 16
      %v494 = vrot.slane %v492, 4
      %v495 = vor.u32 %v494, %v490
      %v496 = vrot.slane %v495, 4
      %v498 = vshll.u32 %v390, 16
      %v500 = vrot.slane %v498, 5
      %v501 = vsel %vm405, %v496, %v500
      %v503 = vshrl.u32 %v362, 16
      %v505 = vrot.slane %v503, 4
      %v506 = vshll.u32 %v362, 16
      %v508 = vrot.slane %v506, 5
      %v509 = vor.u32 %v505, %v508
      %v510 = vrot.slane %v509, 4
      %v512 = vshll.u32 %v363, 16
      %v514 = vrot.slane %v512, 5
      %v515 = vsel %vm405, %v510, %v514
      %v516 = vshrl.u32 %v363, 16
      %v518 = vrot.slane %v516, 4
      %v519 = vor.u32 %v518, %v514
      %v520 = vrot.slane %v519, 4
      %v522 = vshll.u32 %v391, 16
      %v524 = vrot.slane %v522, 5
      %v525 = vsel %vm405, %v520, %v524
      %v527 = vshrl.u32 %v364, 16
      %v529 = vrot.slane %v527, 4
      %v530 = vshll.u32 %v364, 16
      %v532 = vrot.slane %v530, 5
      %v533 = vor.u32 %v529, %v532
      %v534 = vrot.slane %v533, 4
      %v536 = vshll.u32 %v365, 16
      %v538 = vrot.slane %v536, 5
      %v539 = vsel %vm405, %v534, %v538
      %v540 = vshrl.u32 %v365, 16
      %v542 = vrot.slane %v540, 4
      %v543 = vor.u32 %v542, %v538
      %v544 = vrot.slane %v543, 4
      %v546 = vshll.u32 %v392, 16
      %v548 = vrot.slane %v546, 5
      %v549 = vsel %vm405, %v544, %v548
      %v551 = vshrl.u32 %v366, 16
      %v553 = vrot.slane %v551, 4
      %v554 = vshll.u32 %v366, 16
      %v556 = vrot.slane %v554, 5
      %v557 = vor.u32 %v553, %v556
      %v558 = vrot.slane %v557, 4
      %v560 = vshll.u32 %v367, 16
      %v562 = vrot.slane %v560, 5
      %v563 = vsel %vm405, %v558, %v562
      %v564 = vshrl.u32 %v367, 16
      %v566 = vrot.slane %v564, 4
      %v567 = vor.u32 %v566, %v562
      %v568 = vrot.slane %v567, 4
      %v570 = vshll.u32 %v393, 16
      %v572 = vrot.slane %v570, 5
      %v573 = vsel %vm405, %v568, %v572
      %v575 = vshrl.u32 %v368, 16
      %v577 = vrot.slane %v575, 4
      %v578 = vshll.u32 %v368, 16
      %v580 = vrot.slane %v578, 5
      %v581 = vor.u32 %v577, %v580
      %v582 = vrot.slane %v581, 4
      %v584 = vshll.u32 %v369, 16
      %v586 = vrot.slane %v584, 5
      %v587 = vsel %vm405, %v582, %v586
      %v588 = vshrl.u32 %v369, 16
      %v590 = vrot.slane %v588, 4
      %v591 = vor.u32 %v590, %v586
      %v592 = vrot.slane %v591, 4
      %v594 = vshll.u32 %v394, 16
      %v596 = vrot.slane %v594, 5
      %v597 = vsel %vm405, %v592, %v596
      %v599 = vshrl.u32 %v370, 16
      %v601 = vrot.slane %v599, 4
      %v602 = vshll.u32 %v370, 16
      %v604 = vrot.slane %v602, 5
      %v605 = vor.u32 %v601, %v604
      %v606 = vrot.slane %v605, 4
      %v608 = vshll.u32 %v371, 16
      %v610 = vrot.slane %v608, 5
      %v611 = vsel %vm405, %v606, %v610
      %v612 = vshrl.u32 %v371, 16
      %v614 = vrot.slane %v612, 4
      %v615 = vor.u32 %v614, %v610
      %v616 = vrot.slane %v615, 4
      %v618 = vshll.u32 %v395, 16
      %v620 = vrot.slane %v618, 5
      %v621 = vsel %vm405, %v616, %v620
      %v623 = vshrl.u32 %v372, 16
      %v625 = vrot.slane %v623, 4
      %v626 = vshll.u32 %v372, 16
      %v628 = vrot.slane %v626, 5
      %v629 = vor.u32 %v625, %v628
      %v630 = vrot.slane %v629, 4
      %v632 = vshll.u32 %v373, 16
      %v634 = vrot.slane %v632, 5
      %v635 = vsel %vm405, %v630, %v634
      %v636 = vshrl.u32 %v373, 16
      %v638 = vrot.slane %v636, 4
      %v639 = vor.u32 %v638, %v634
      %v640 = vrot.slane %v639, 4
      %v642 = vshll.u32 %v396, 16
      %v644 = vrot.slane %v642, 5
      %v645 = vsel %vm405, %v640, %v644
      %v647 = vshrl.u32 %v374, 16
      %v649 = vrot.slane %v647, 4
      %v650 = vshll.u32 %v374, 16
      %v652 = vrot.slane %v650, 5
      %v653 = vor.u32 %v649, %v652
      %v654 = vrot.slane %v653, 4
      %v656 = vshll.u32 %v375, 16
      %v658 = vrot.slane %v656, 5
      %v659 = vsel %vm405, %v654, %v658
      %v660 = vshrl.u32 %v375, 16
      %v662 = vrot.slane %v660, 4
      %v663 = vor.u32 %v662, %v658
      %v664 = vrot.slane %v663, 4
      %v666 = vshll.u32 %v397, 16
      %v668 = vrot.slane %v666, 5
      %v669 = vsel %vm405, %v664, %v668
      %v671 = vshrl.u32 %v376, 16
      %v673 = vrot.slane %v671, 4
      %v674 = vshll.u32 %v376, 16
      %v676 = vrot.slane %v674, 5
      %v677 = vor.u32 %v673, %v676
      %v678 = vrot.slane %v677, 4
      %v680 = vshll.u32 %v377, 16
      %v682 = vrot.slane %v680, 5
      %v683 = vsel %vm405, %v678, %v682
      %v684 = vshrl.u32 %v377, 16
      %v686 = vrot.slane %v684, 4
      %v687 = vor.u32 %v686, %v682
      %v688 = vrot.slane %v687, 4
      %v690 = vshll.u32 %v398, 16
      %v692 = vrot.slane %v690, 5
      %v693 = vsel %vm405, %v688, %v692
      %v695 = vshrl.u32 %v378, 16
      %v697 = vrot.slane %v695, 4
      %v698 = vshll.u32 %v378, 16
      %v700 = vrot.slane %v698, 5
      %v701 = vor.u32 %v697, %v700
      %v702 = vrot.slane %v701, 4
      %v704 = vshll.u32 %v379, 16
      %v706 = vrot.slane %v704, 5
      %v707 = vsel %vm405, %v702, %v706
      %v708 = vshrl.u32 %v379, 16
      %v710 = vrot.slane %v708, 4
      %v711 = vor.u32 %v710, %v706
      %v712 = vrot.slane %v711, 4
      %v714 = vshll.u32 %v399, 16
      %v716 = vrot.slane %v714, 5
      %v717 = vsel %vm405, %v712, %v716
      %v719 = vshrl.u32 %v380, 16
      %v721 = vrot.slane %v719, 4
      %v722 = vshll.u32 %v380, 16
      %v724 = vrot.slane %v722, 5
      %v725 = vor.u32 %v721, %v724
      %v726 = vrot.slane %v725, 4
      %v728 = vshll.u32 %v381, 16
      %v730 = vrot.slane %v728, 5
      %v731 = vsel %vm405, %v726, %v730
      %v732 = vshrl.u32 %v381, 16
      %v734 = vrot.slane %v732, 4
      %v735 = vor.u32 %v734, %v730
      %v736 = vrot.slane %v735, 4
      %v738 = vshll.u32 %v400, 16
      %v740 = vrot.slane %v738, 5
      %v741 = vsel %vm405, %v736, %v740
      %v743 = vshrl.u32 %v382, 16
      %v745 = vrot.slane %v743, 4
      %v746 = vshll.u32 %v382, 16
      %v748 = vrot.slane %v746, 5
      %v749 = vor.u32 %v745, %v748
      %v750 = vrot.slane %v749, 4
      %v752 = vshll.u32 %v383, 16
      %v754 = vrot.slane %v752, 5
      %v755 = vsel %vm405, %v750, %v754
      %v756 = vshrl.u32 %v383, 16
      %v758 = vrot.slane %v756, 4
      %v759 = vor.u32 %v758, %v754
      %v760 = vrot.slane %v759, 4
      %v762 = vshll.u32 %v401, 16
      %v764 = vrot.slane %v762, 5
      %v765 = vsel %vm405, %v760, %v764
      %v767 = vshrl.u32 %v384, 16
      %v769 = vrot.slane %v767, 4
      %v770 = vshll.u32 %v384, 16
      %v772 = vrot.slane %v770, 5
      %v773 = vor.u32 %v769, %v772
      %v774 = vrot.slane %v773, 4
      %v776 = vshll.u32 %v385, 16
      %v778 = vrot.slane %v776, 5
      %v779 = vsel %vm405, %v774, %v778
      %v780 = vshrl.u32 %v385, 16
      %v782 = vrot.slane %v780, 4
      %v783 = vor.u32 %v782, %v778
      %v784 = vrot.slane %v783, 4
      %v786 = vshll.u32 %v402, 16
      %v788 = vrot.slane %v786, 5
      %v789 = vsel %vm405, %v784, %v788
      %s790 = scalar_lea.vmem %s329, 2
      %v791 = vld [vmem:[%s790] sm:$0x3]
      %v792 = vunpack.c.l.b16 %v419
      %v793 = vunpack.c.l.b16 %v429
      %v794 = vunpack.c.l.b16 %v443
      %v795 = vunpack.c.l.b16 %v453
      %v796 = vunpack.c.l.b16 %v467
      %v797 = vunpack.c.l.b16 %v477
      %v798 = vunpack.c.l.b16 %v491
      %v799 = vunpack.c.l.b16 %v501
      %v800 = vunpack.c.l.b16 %v515
      %v801 = vunpack.c.l.b16 %v525
      %v802 = vunpack.c.l.b16 %v539
      %v803 = vunpack.c.l.b16 %v549
      %v804 = vunpack.c.l.b16 %v563
      %v805 = vunpack.c.l.b16 %v573
      %v806 = vunpack.c.l.b16 %v587
      %v807 = vunpack.c.l.b16 %v597
      %v808 = vunpack.c.l.b16 %v611
      %v809 = vunpack.c.l.b16 %v621
      %v810 = vunpack.c.l.b16 %v635
      %v811 = vunpack.c.l.b16 %v645
      %v812 = vunpack.c.l.b16 %v659
      %v813 = vunpack.c.l.b16 %v669
      %v814 = vunpack.c.l.b16 %v683
      %v815 = vunpack.c.l.b16 %v693
      %v816 = vunpack.c.l.b16 %v707
      %v817 = vunpack.c.l.b16 %v717
      %v818 = vunpack.c.l.b16 %v731
      %v819 = vunpack.c.l.b16 %v741
      %v820 = vunpack.c.l.b16 %v755
      %v821 = vunpack.c.l.b16 %v765
      %v822 = vunpack.c.l.b16 %v779
      %v823 = vunpack.c.l.b16 %v789
      %v824 = vpack.c.b16 %v793, %v792
      %v825 = vpack.c.b16 %v795, %v794
      %v826 = vpack.c.b16 %v797, %v796
      %v827 = vpack.c.b16 %v799, %v798
      %v828 = vpack.c.b16 %v801, %v800
      %v829 = vpack.c.b16 %v803, %v802
      %v830 = vpack.c.b16 %v805, %v804
      %v831 = vpack.c.b16 %v807, %v806
      %v832 = vpack.c.b16 %v809, %v808
      %v833 = vpack.c.b16 %v811, %v810
      %v834 = vpack.c.b16 %v813, %v812
      %v835 = vpack.c.b16 %v815, %v814
      %v836 = vpack.c.b16 %v817, %v816
      %v837 = vpack.c.b16 %v819, %v818
      %v838 = vpack.c.b16 %v821, %v820
      %v839 = vpack.c.b16 %v823, %v822
      %vm840 = vcmask 31744
      %v842 = vsel %vm840, %v824, 0
      %v845 = vsel %vm840, %v825, 0
      %v848 = vsel %vm840, %v826, 0
      %v851 = vsel %vm840, %v827, 0
      %v854 = vsel %vm840, %v828, 0
      %v857 = vsel %vm840, %v829, 0
      %v860 = vsel %vm840, %v830, 0
      %v863 = vsel %vm840, %v831, 0
      %v866 = vsel %vm840, %v832, 0
      %v869 = vsel %vm840, %v833, 0
      %v872 = vsel %vm840, %v834, 0
      %v875 = vsel %vm840, %v835, 0
      %v878 = vsel %vm840, %v836, 0
      %v881 = vsel %vm840, %v837, 0
      %v884 = vsel %vm840, %v838, 0
      %v887 = vsel %vm840, %v839, 0
      %vm889 = vcmask 1041408
      %v891 = vsel %vm889, %v791, 0
      %893 = vmatpush.bf16.msra.mxu0 0
      %894 = vmatpush.bf16.msra.mxu0 0
      %895 = vmatpush.bf16.msra.mxu0 0
      %896 = vmatpush.bf16.msra.mxu0 0
      %897 = vmatpush.bf16.msra.mxu0 0
      %898 = vmatpush.bf16.msra.mxu0 0
      %899 = vmatpush.bf16.msra.mxu0 0
      %900 = vmatpush.bf16.msra.mxu0 %v891
      %901 = vmatmul.bf16.gmra.mxu0 %v842
      %v902 = vpop.f32.mrf.mxu0
      %v903 = vadd.f32 0.0, %v902
      %v904 = vpop.f32.mrf.mxu0
      %v905 = vadd.f32 0.0, %v904
      %906 = vmatmul.bf16.gmra.mxu0 %v845
      %v907 = vpop.f32.mrf.mxu0
      %v908 = vadd.f32 0.0, %v907
      %v909 = vpop.f32.mrf.mxu0
      %v910 = vadd.f32 0.0, %v909
      %911 = vmatmul.bf16.gmra.mxu0 %v848
      %v912 = vpop.f32.mrf.mxu0
      %v913 = vadd.f32 0.0, %v912
      %v914 = vpop.f32.mrf.mxu0
      %v915 = vadd.f32 0.0, %v914
      %916 = vmatmul.bf16.gmra.mxu0 %v851
      %v917 = vpop.f32.mrf.mxu0
      %v918 = vadd.f32 0.0, %v917
      %v919 = vpop.f32.mrf.mxu0
      %v920 = vadd.f32 0.0, %v919
      %921 = vmatmul.bf16.gmra.mxu0 %v854
      %v922 = vpop.f32.mrf.mxu0
      %v923 = vadd.f32 0.0, %v922
      %v924 = vpop.f32.mrf.mxu0
      %v925 = vadd.f32 0.0, %v924
      %926 = vmatmul.bf16.gmra.mxu0 %v857
      %v927 = vpop.f32.mrf.mxu0
      %v928 = vadd.f32 0.0, %v927
      %v929 = vpop.f32.mrf.mxu0
      %v930 = vadd.f32 0.0, %v929
      %931 = vmatmul.bf16.gmra.mxu0 %v860
      %v932 = vpop.f32.mrf.mxu0
      %v933 = vadd.f32 0.0, %v932
      %v934 = vpop.f32.mrf.mxu0
      %v935 = vadd.f32 0.0, %v934
      %936 = vmatmul.bf16.gmra.mxu0 %v863
      %v937 = vpop.f32.mrf.mxu0
      %v938 = vadd.f32 0.0, %v937
      %v939 = vpop.f32.mrf.mxu0
      %v940 = vadd.f32 0.0, %v939
      %941 = vmatmul.bf16.gmra.mxu0 %v866
      %v942 = vpop.f32.mrf.mxu0
      %v943 = vadd.f32 0.0, %v942
      %v944 = vpop.f32.mrf.mxu0
      %v945 = vadd.f32 0.0, %v944
      %946 = vmatmul.bf16.gmra.mxu0 %v869
      %v947 = vpop.f32.mrf.mxu0
      %v948 = vadd.f32 0.0, %v947
      %v949 = vpop.f32.mrf.mxu0
      %v950 = vadd.f32 0.0, %v949
      %951 = vmatmul.bf16.gmra.mxu0 %v872
      %v952 = vpop.f32.mrf.mxu0
      %v953 = vadd.f32 0.0, %v952
      %v954 = vpop.f32.mrf.mxu0
      %v955 = vadd.f32 0.0, %v954
      %956 = vmatmul.bf16.gmra.mxu0 %v875
      %v957 = vpop.f32.mrf.mxu0
      %v958 = vadd.f32 0.0, %v957
      %v959 = vpop.f32.mrf.mxu0
      %v960 = vadd.f32 0.0, %v959
      %961 = vmatmul.bf16.gmra.mxu0 %v878
      %v962 = vpop.f32.mrf.mxu0
      %v963 = vadd.f32 0.0, %v962
      %v964 = vpop.f32.mrf.mxu0
      %v965 = vadd.f32 0.0, %v964
      %966 = vmatmul.bf16.gmra.mxu0 %v881
      %v967 = vpop.f32.mrf.mxu0
      %v968 = vadd.f32 0.0, %v967
      %v969 = vpop.f32.mrf.mxu0
      %v970 = vadd.f32 0.0, %v969
      %971 = vmatmul.bf16.gmra.mxu0 %v884
      %v972 = vpop.f32.mrf.mxu0
      %v973 = vadd.f32 0.0, %v972
      %v974 = vpop.f32.mrf.mxu0
      %v975 = vadd.f32 0.0, %v974
      %976 = vmatmul.bf16.gmra.mxu0 %v887
      %v977 = vpop.f32.mrf.mxu0
      %v978 = vadd.f32 0.0, %v977
      %v979 = vpop.f32.mrf.mxu0
      %v980 = vadd.f32 0.0, %v979
      %981 = vdwg.mxu0
      %v1014 = vunpack.c.l.b16 %v354
      %v1015 = vunpack.c.l.b16 %v355
      %v1016 = vunpack.c.l.b16 %v356
      %v1017 = vunpack.c.l.b16 %v357
      %v1018 = vunpack.c.l.b16 %v358
      %v1019 = vunpack.c.l.b16 %v359
      %v1020 = vunpack.c.l.b16 %v360
      %v1021 = vunpack.c.l.b16 %v361
      %v1022 = vunpack.c.l.b16 %v362
      %v1023 = vunpack.c.l.b16 %v363
      %v1024 = vunpack.c.l.b16 %v364
      %v1025 = vunpack.c.l.b16 %v365
      %v1026 = vunpack.c.l.b16 %v366
      %v1027 = vunpack.c.l.b16 %v367
      %v1028 = vunpack.c.l.b16 %v368
      %v1029 = vunpack.c.l.b16 %v369
      %v1030 = vunpack.c.l.b16 %v370
      %v1031 = vunpack.c.l.b16 %v371
      %v1032 = vunpack.c.l.b16 %v372
      %v1033 = vunpack.c.l.b16 %v373
      %v1034 = vunpack.c.l.b16 %v374
      %v1035 = vunpack.c.l.b16 %v375
      %v1036 = vunpack.c.l.b16 %v376
      %v1037 = vunpack.c.l.b16 %v377
      %v1038 = vunpack.c.l.b16 %v378
      %v1039 = vunpack.c.l.b16 %v379
      %v1040 = vunpack.c.l.b16 %v380
      %v1041 = vunpack.c.l.b16 %v381
      %v1042 = vunpack.c.l.b16 %v382
      %v1043 = vunpack.c.l.b16 %v383
      %v1044 = vunpack.c.l.b16 %v384
      %v1045 = vunpack.c.l.b16 %v385
      %v1046 = vpack.c.b16 %v1015, %v1014
      %v1047 = vpack.c.b16 %v1017, %v1016
      %v1048 = vpack.c.b16 %v1019, %v1018
      %v1049 = vpack.c.b16 %v1021, %v1020
      %v1050 = vpack.c.b16 %v1023, %v1022
      %v1051 = vpack.c.b16 %v1025, %v1024
      %v1052 = vpack.c.b16 %v1027, %v1026
      %v1053 = vpack.c.b16 %v1029, %v1028
      %v1054 = vpack.c.b16 %v1031, %v1030
      %v1055 = vpack.c.b16 %v1033, %v1032
      %v1056 = vpack.c.b16 %v1035, %v1034
      %v1057 = vpack.c.b16 %v1037, %v1036
      %v1058 = vpack.c.b16 %v1039, %v1038
      %v1059 = vpack.c.b16 %v1041, %v1040
      %v1060 = vpack.c.b16 %v1043, %v1042
      %v1061 = vpack.c.b16 %v1045, %v1044
      %v1063 = vsel %vm840, %v1046, 0
      %v1066 = vsel %vm840, %v1047, 0
      %v1069 = vsel %vm840, %v1048, 0
      %v1072 = vsel %vm840, %v1049, 0
      %v1075 = vsel %vm840, %v1050, 0
      %v1078 = vsel %vm840, %v1051, 0
      %v1081 = vsel %vm840, %v1052, 0
      %v1084 = vsel %vm840, %v1053, 0
      %v1087 = vsel %vm840, %v1054, 0
      %v1090 = vsel %vm840, %v1055, 0
      %v1093 = vsel %vm840, %v1056, 0
      %v1096 = vsel %vm840, %v1057, 0
      %v1099 = vsel %vm840, %v1058, 0
      %v1102 = vsel %vm840, %v1059, 0
      %v1105 = vsel %vm840, %v1060, 0
      %v1108 = vsel %vm840, %v1061, 0
      %v1111 = vsel %vm889, %v386, 0
      %1113 = vmatpush.bf16.msra.mxu0 0
      %1114 = vmatpush.bf16.msra.mxu0 0
      %1115 = vmatpush.bf16.msra.mxu0 0
      %1116 = vmatpush.bf16.msra.mxu0 0
      %1117 = vmatpush.bf16.msra.mxu0 0
      %1118 = vmatpush.bf16.msra.mxu0 0
      %1119 = vmatpush.bf16.msra.mxu0 0
      %1120 = vmatpush.bf16.msra.mxu0 %v1111
      %1121 = vmatmul.bf16.gmra.mxu0 %v1063
      %v1122 = vpop.f32.mrf.mxu0
      %v1123 = vadd.f32 %v903, %v1122
      %v1124 = vpop.f32.mrf.mxu0
      %v1125 = vadd.f32 %v905, %v1124
      %1126 = vmatmul.bf16.gmra.mxu0 %v1066
      %v1127 = vpop.f32.mrf.mxu0
      %v1128 = vadd.f32 %v908, %v1127
      %v1129 = vpop.f32.mrf.mxu0
      %v1130 = vadd.f32 %v910, %v1129
      %1131 = vmatmul.bf16.gmra.mxu0 %v1069
      %v1132 = vpop.f32.mrf.mxu0
      %v1133 = vadd.f32 %v913, %v1132
      %v1134 = vpop.f32.mrf.mxu0
      %v1135 = vadd.f32 %v915, %v1134
      %1136 = vmatmul.bf16.gmra.mxu0 %v1072
      %v1137 = vpop.f32.mrf.mxu0
      %v1138 = vadd.f32 %v918, %v1137
      %v1139 = vpop.f32.mrf.mxu0
      %v1140 = vadd.f32 %v920, %v1139
      %1141 = vmatmul.bf16.gmra.mxu0 %v1075
      %v1142 = vpop.f32.mrf.mxu0
      %v1143 = vadd.f32 %v923, %v1142
      %v1144 = vpop.f32.mrf.mxu0
      %v1145 = vadd.f32 %v925, %v1144
      %1146 = vmatmul.bf16.gmra.mxu0 %v1078
      %v1147 = vpop.f32.mrf.mxu0
      %v1148 = vadd.f32 %v928, %v1147
      %v1149 = vpop.f32.mrf.mxu0
      %v1150 = vadd.f32 %v930, %v1149
      %1151 = vmatmul.bf16.gmra.mxu0 %v1081
      %v1152 = vpop.f32.mrf.mxu0
      %v1153 = vadd.f32 %v933, %v1152
      %v1154 = vpop.f32.mrf.mxu0
      %v1155 = vadd.f32 %v935, %v1154
      %1156 = vmatmul.bf16.gmra.mxu0 %v1084
      %v1157 = vpop.f32.mrf.mxu0
      %v1158 = vadd.f32 %v938, %v1157
      %v1159 = vpop.f32.mrf.mxu0
      %v1160 = vadd.f32 %v940, %v1159
      %1161 = vmatmul.bf16.gmra.mxu0 %v1087
      %v1162 = vpop.f32.mrf.mxu0
      %v1163 = vadd.f32 %v943, %v1162
      %v1164 = vpop.f32.mrf.mxu0
      %v1165 = vadd.f32 %v945, %v1164
      %1166 = vmatmul.bf16.gmra.mxu0 %v1090
      %v1167 = vpop.f32.mrf.mxu0
      %v1168 = vadd.f32 %v948, %v1167
      %v1169 = vpop.f32.mrf.mxu0
      %v1170 = vadd.f32 %v950, %v1169
      %1171 = vmatmul.bf16.gmra.mxu0 %v1093
      %v1172 = vpop.f32.mrf.mxu0
      %v1173 = vadd.f32 %v953, %v1172
      %v1174 = vpop.f32.mrf.mxu0
      %v1175 = vadd.f32 %v955, %v1174
      %1176 = vmatmul.bf16.gmra.mxu0 %v1096
      %v1177 = vpop.f32.mrf.mxu0
      %v1178 = vadd.f32 %v958, %v1177
      %v1179 = vpop.f32.mrf.mxu0
      %v1180 = vadd.f32 %v960, %v1179
      %1181 = vmatmul.bf16.gmra.mxu0 %v1099
      %v1182 = vpop.f32.mrf.mxu0
      %v1183 = vadd.f32 %v963, %v1182
      %v1184 = vpop.f32.mrf.mxu0
      %v1185 = vadd.f32 %v965, %v1184
      %1186 = vmatmul.bf16.gmra.mxu0 %v1102
      %v1187 = vpop.f32.mrf.mxu0
      %v1188 = vadd.f32 %v968, %v1187
      %v1189 = vpop.f32.mrf.mxu0
      %v1190 = vadd.f32 %v970, %v1189
      %1191 = vmatmul.bf16.gmra.mxu0 %v1105
      %v1192 = vpop.f32.mrf.mxu0
      %v1193 = vadd.f32 %v973, %v1192
      %v1194 = vpop.f32.mrf.mxu0
      %v1195 = vadd.f32 %v975, %v1194
      %1196 = vmatmul.bf16.gmra.mxu0 %v1108
      %v1197 = vpop.f32.mrf.mxu0
      %v1198 = vadd.f32 %v978, %v1197
      %v1199 = vpop.f32.mrf.mxu0
      %v1200 = vadd.f32 %v980, %v1199
      %1201 = vdwg.mxu0
      %v1202 = vld [vmem:[%s325] sm:$0xe]
      %v1203 = vld [vmem:[%s325 + $0xc] sm:$0xe]
      %v1204 = vld [vmem:[%s325 + $0x18] sm:$0xe]
      %v1205 = vld [vmem:[%s325 + $0x24] sm:$0xe]
      %v1206 = vld [vmem:[%s325 + $0x30] sm:$0xe]
      %v1207 = vld [vmem:[%s325 + $0x3c] sm:$0xe]
      %v1208 = vld [vmem:[%s325 + $0x48] sm:$0xe]
      %v1209 = vld [vmem:[%s325 + $0x54] sm:$0xe]
      %v1210 = vld [vmem:[%s325 + $0x60] sm:$0xe]
      %v1211 = vld [vmem:[%s325 + $0x6c] sm:$0xe]
      %v1212 = vld [vmem:[%s325 + $0x78] sm:$0xe]
      %v1213 = vld [vmem:[%s325 + $0x84] sm:$0xe]
      %v1214 = vld [vmem:[%s325 + $0x90] sm:$0xe]
      %v1215 = vld [vmem:[%s325 + $0x9c] sm:$0xe]
      %v1216 = vld [vmem:[%s325 + $0xa8] sm:$0xe]
      %v1217 = vld [vmem:[%s325 + $0xb4] sm:$0xe]
      %vm1250 = vcmask 1042432
      %vm1251 = vcmask 1046532
      %vm1252 = vmor %vm1250, %vm1251
      %v1253 = vrot.slane %v1202, 5
      %v1254 = vrot.slane %v1253, 4
      %v1255 = vrot.slane %v355, 5
      %v1256 = vsel %vm1252, %v1254, %v1255
      %v1257 = vrot.slane %v1255, 4
      %v1258 = vrot.slane %v387, 5
      %v1259 = vsel %vm1252, %v1257, %v1258
      %v1260 = vrot.slane %v1203, 5
      %v1261 = vrot.slane %v1260, 4
      %v1262 = vrot.slane %v357, 5
      %v1263 = vsel %vm1252, %v1261, %v1262
      %v1264 = vrot.slane %v1262, 4
      %v1265 = vrot.slane %v388, 5
      %v1266 = vsel %vm1252, %v1264, %v1265
      %v1267 = vrot.slane %v1204, 5
      %v1268 = vrot.slane %v1267, 4
      %v1269 = vrot.slane %v359, 5
      %v1270 = vsel %vm1252, %v1268, %v1269
      %v1271 = vrot.slane %v1269, 4
      %v1272 = vrot.slane %v389, 5
      %v1273 = vsel %vm1252, %v1271, %v1272
      %v1274 = vrot.slane %v1205, 5
      %v1275 = vrot.slane %v1274, 4
      %v1276 = vrot.slane %v361, 5
      %v1277 = vsel %vm1252, %v1275, %v1276
      %v1278 = vrot.slane %v1276, 4
      %v1279 = vrot.slane %v390, 5
      %v1280 = vsel %vm1252, %v1278, %v1279
      %v1281 = vrot.slane %v1206, 5
      %v1282 = vrot.slane %v1281, 4
      %v1283 = vrot.slane %v363, 5
      %v1284 = vsel %vm1252, %v1282, %v1283
      %v1285 = vrot.slane %v1283, 4
      %v1286 = vrot.slane %v391, 5
      %v1287 = vsel %vm1252, %v1285, %v1286
      %v1288 = vrot.slane %v1207, 5
      %v1289 = vrot.slane %v1288, 4
      %v1290 = vrot.slane %v365, 5
      %v1291 = vsel %vm1252, %v1289, %v1290
      %v1292 = vrot.slane %v1290, 4
      %v1293 = vrot.slane %v392, 5
      %v1294 = vsel %vm1252, %v1292, %v1293
      %v1295 = vrot.slane %v1208, 5
      %v1296 = vrot.slane %v1295, 4
      %v1297 = vrot.slane %v367, 5
      %v1298 = vsel %vm1252, %v1296, %v1297
      %v1299 = vrot.slane %v1297, 4
      %v1300 = vrot.slane %v393, 5
      %v1301 = vsel %vm1252, %v1299, %v1300
      %v1302 = vrot.slane %v1209, 5
      %v1303 = vrot.slane %v1302, 4
      %v1304 = vrot.slane %v369, 5
      %v1305 = vsel %vm1252, %v1303, %v1304
      %v1306 = vrot.slane %v1304, 4
      %v1307 = vrot.slane %v394, 5
      %v1308 = vsel %vm1252, %v1306, %v1307
      %v1309 = vrot.slane %v1210, 5
      %v1310 = vrot.slane %v1309, 4
      %v1311 = vrot.slane %v371, 5
      %v1312 = vsel %vm1252, %v1310, %v1311
      %v1313 = vrot.slane %v1311, 4
      %v1314 = vrot.slane %v395, 5
      %v1315 = vsel %vm1252, %v1313, %v1314
      %v1316 = vrot.slane %v1211, 5
      %v1317 = vrot.slane %v1316, 4
      %v1318 = vrot.slane %v373, 5
      %v1319 = vsel %vm1252, %v1317, %v1318
      %v1320 = vrot.slane %v1318, 4
      %v1321 = vrot.slane %v396, 5
      %v1322 = vsel %vm1252, %v1320, %v1321
      %v1323 = vrot.slane %v1212, 5
      %v1324 = vrot.slane %v1323, 4
      %v1325 = vrot.slane %v375, 5
      %v1326 = vsel %vm1252, %v1324, %v1325
      %v1327 = vrot.slane %v1325, 4
      %v1328 = vrot.slane %v397, 5
      %v1329 = vsel %vm1252, %v1327, %v1328
      %v1330 = vrot.slane %v1213, 5
      %v1331 = vrot.slane %v1330, 4
      %v1332 = vrot.slane %v377, 5
      %v1333 = vsel %vm1252, %v1331, %v1332
      %v1334 = vrot.slane %v1332, 4
      %v1335 = vrot.slane %v398, 5
      %v1336 = vsel %vm1252, %v1334, %v1335
      %v1337 = vrot.slane %v1214, 5
      %v1338 = vrot.slane %v1337, 4
      %v1339 = vrot.slane %v379, 5
      %v1340 = vsel %vm1252, %v1338, %v1339
      %v1341 = vrot.slane %v1339, 4
      %v1342 = vrot.slane %v399, 5
      %v1343 = vsel %vm1252, %v1341, %v1342
      %v1344 = vrot.slane %v1215, 5
      %v1345 = vrot.slane %v1344, 4
      %v1346 = vrot.slane %v381, 5
      %v1347 = vsel %vm1252, %v1345, %v1346
      %v1348 = vrot.slane %v1346, 4
      %v1349 = vrot.slane %v400, 5
      %v1350 = vsel %vm1252, %v1348, %v1349
      %v1351 = vrot.slane %v1216, 5
      %v1352 = vrot.slane %v1351, 4
      %v1353 = vrot.slane %v383, 5
      %v1354 = vsel %vm1252, %v1352, %v1353
      %v1355 = vrot.slane %v1353, 4
      %v1356 = vrot.slane %v401, 5
      %v1357 = vsel %vm1252, %v1355, %v1356
      %v1358 = vrot.slane %v1217, 5
      %v1359 = vrot.slane %v1358, 4
      %v1360 = vrot.slane %v385, 5
      %v1361 = vsel %vm1252, %v1359, %v1360
      %v1362 = vrot.slane %v1360, 4
      %v1363 = vrot.slane %v402, 5
      %v1364 = vsel %vm1252, %v1362, %v1363
      %s1365 = scalar_lea.vmem %s329, 4
      %v1366 = vld [vmem:[%s1365] sm:$0x3]
      %v1367 = vunpack.c.l.b16 %v1256
      %v1368 = vunpack.c.l.b16 %v1259
      %v1369 = vunpack.c.l.b16 %v1263
      %v1370 = vunpack.c.l.b16 %v1266
      %v1371 = vunpack.c.l.b16 %v1270
      %v1372 = vunpack.c.l.b16 %v1273
      %v1373 = vunpack.c.l.b16 %v1277
      %v1374 = vunpack.c.l.b16 %v1280
      %v1375 = vunpack.c.l.b16 %v1284
      %v1376 = vunpack.c.l.b16 %v1287
      %v1377 = vunpack.c.l.b16 %v1291
      %v1378 = vunpack.c.l.b16 %v1294
      %v1379 = vunpack.c.l.b16 %v1298
      %v1380 = vunpack.c.l.b16 %v1301
      %v1381 = vunpack.c.l.b16 %v1305
      %v1382 = vunpack.c.l.b16 %v1308
      %v1383 = vunpack.c.l.b16 %v1312
      %v1384 = vunpack.c.l.b16 %v1315
      %v1385 = vunpack.c.l.b16 %v1319
      %v1386 = vunpack.c.l.b16 %v1322
      %v1387 = vunpack.c.l.b16 %v1326
      %v1388 = vunpack.c.l.b16 %v1329
      %v1389 = vunpack.c.l.b16 %v1333
      %v1390 = vunpack.c.l.b16 %v1336
      %v1391 = vunpack.c.l.b16 %v1340
      %v1392 = vunpack.c.l.b16 %v1343
      %v1393 = vunpack.c.l.b16 %v1347
      %v1394 = vunpack.c.l.b16 %v1350
      %v1395 = vunpack.c.l.b16 %v1354
      %v1396 = vunpack.c.l.b16 %v1357
      %v1397 = vunpack.c.l.b16 %v1361
      %v1398 = vunpack.c.l.b16 %v1364
      %v1399 = vpack.c.b16 %v1368, %v1367
      %v1400 = vpack.c.b16 %v1370, %v1369
      %v1401 = vpack.c.b16 %v1372, %v1371
      %v1402 = vpack.c.b16 %v1374, %v1373
      %v1403 = vpack.c.b16 %v1376, %v1375
      %v1404 = vpack.c.b16 %v1378, %v1377
      %v1405 = vpack.c.b16 %v1380, %v1379
      %v1406 = vpack.c.b16 %v1382, %v1381
      %v1407 = vpack.c.b16 %v1384, %v1383
      %v1408 = vpack.c.b16 %v1386, %v1385
      %v1409 = vpack.c.b16 %v1388, %v1387
      %v1410 = vpack.c.b16 %v1390, %v1389
      %v1411 = vpack.c.b16 %v1392, %v1391
      %v1412 = vpack.c.b16 %v1394, %v1393
      %v1413 = vpack.c.b16 %v1396, %v1395
      %v1414 = vpack.c.b16 %v1398, %v1397
      %v1416 = vsel %vm840, %v1399, 0
      %v1419 = vsel %vm840, %v1400, 0
      %v1422 = vsel %vm840, %v1401, 0
      %v1425 = vsel %vm840, %v1402, 0
      %v1428 = vsel %vm840, %v1403, 0
      %v1431 = vsel %vm840, %v1404, 0
      %v1434 = vsel %vm840, %v1405, 0
      %v1437 = vsel %vm840, %v1406, 0
      %v1440 = vsel %vm840, %v1407, 0
      %v1443 = vsel %vm840, %v1408, 0
      %v1446 = vsel %vm840, %v1409, 0
      %v1449 = vsel %vm840, %v1410, 0
      %v1452 = vsel %vm840, %v1411, 0
      %v1455 = vsel %vm840, %v1412, 0
      %v1458 = vsel %vm840, %v1413, 0
      %v1461 = vsel %vm840, %v1414, 0
      %v1464 = vsel %vm889, %v1366, 0
      %1466 = vmatpush.bf16.msra.mxu0 0
      %1467 = vmatpush.bf16.msra.mxu0 0
      %1468 = vmatpush.bf16.msra.mxu0 0
      %1469 = vmatpush.bf16.msra.mxu0 0
      %1470 = vmatpush.bf16.msra.mxu0 0
      %1471 = vmatpush.bf16.msra.mxu0 0
      %1472 = vmatpush.bf16.msra.mxu0 0
      %1473 = vmatpush.bf16.msra.mxu0 %v1464
      %1474 = vmatmul.bf16.gmra.mxu0 %v1416
      %v1475 = vpop.f32.mrf.mxu0
      %v1476 = vadd.f32 0.0, %v1475
      %v1477 = vpop.f32.mrf.mxu0
      %v1478 = vadd.f32 0.0, %v1477
      %1479 = vmatmul.bf16.gmra.mxu0 %v1419
      %v1480 = vpop.f32.mrf.mxu0
      %v1481 = vadd.f32 0.0, %v1480
      %v1482 = vpop.f32.mrf.mxu0
      %v1483 = vadd.f32 0.0, %v1482
      %1484 = vmatmul.bf16.gmra.mxu0 %v1422
      %v1485 = vpop.f32.mrf.mxu0
      %v1486 = vadd.f32 0.0, %v1485
      %v1487 = vpop.f32.mrf.mxu0
      %v1488 = vadd.f32 0.0, %v1487
      %1489 = vmatmul.bf16.gmra.mxu0 %v1425
      %v1490 = vpop.f32.mrf.mxu0
      %v1491 = vadd.f32 0.0, %v1490
      %v1492 = vpop.f32.mrf.mxu0
      %v1493 = vadd.f32 0.0, %v1492
      %1494 = vmatmul.bf16.gmra.mxu0 %v1428
      %v1495 = vpop.f32.mrf.mxu0
      %v1496 = vadd.f32 0.0, %v1495
      %v1497 = vpop.f32.mrf.mxu0
      %v1498 = vadd.f32 0.0, %v1497
      %1499 = vmatmul.bf16.gmra.mxu0 %v1431
      %v1500 = vpop.f32.mrf.mxu0
      %v1501 = vadd.f32 0.0, %v1500
      %v1502 = vpop.f32.mrf.mxu0
      %v1503 = vadd.f32 0.0, %v1502
      %1504 = vmatmul.bf16.gmra.mxu0 %v1434
      %v1505 = vpop.f32.mrf.mxu0
      %v1506 = vadd.f32 0.0, %v1505
      %v1507 = vpop.f32.mrf.mxu0
      %v1508 = vadd.f32 0.0, %v1507
      %1509 = vmatmul.bf16.gmra.mxu0 %v1437
      %v1510 = vpop.f32.mrf.mxu0
      %v1511 = vadd.f32 0.0, %v1510
      %v1512 = vpop.f32.mrf.mxu0
      %v1513 = vadd.f32 0.0, %v1512
      %1514 = vmatmul.bf16.gmra.mxu0 %v1440
      %v1515 = vpop.f32.mrf.mxu0
      %v1516 = vadd.f32 0.0, %v1515
      %v1517 = vpop.f32.mrf.mxu0
      %v1518 = vadd.f32 0.0, %v1517
      %1519 = vmatmul.bf16.gmra.mxu0 %v1443
      %v1520 = vpop.f32.mrf.mxu0
      %v1521 = vadd.f32 0.0, %v1520
      %v1522 = vpop.f32.mrf.mxu0
      %v1523 = vadd.f32 0.0, %v1522
      %1524 = vmatmul.bf16.gmra.mxu0 %v1446
      %v1525 = vpop.f32.mrf.mxu0
      %v1526 = vadd.f32 0.0, %v1525
      %v1527 = vpop.f32.mrf.mxu0
      %v1528 = vadd.f32 0.0, %v1527
      %1529 = vmatmul.bf16.gmra.mxu0 %v1449
      %v1530 = vpop.f32.mrf.mxu0
      %v1531 = vadd.f32 0.0, %v1530
      %v1532 = vpop.f32.mrf.mxu0
      %v1533 = vadd.f32 0.0, %v1532
      %1534 = vmatmul.bf16.gmra.mxu0 %v1452
      %v1535 = vpop.f32.mrf.mxu0
      %v1536 = vadd.f32 0.0, %v1535
      %v1537 = vpop.f32.mrf.mxu0
      %v1538 = vadd.f32 0.0, %v1537
      %1539 = vmatmul.bf16.gmra.mxu0 %v1455
      %v1540 = vpop.f32.mrf.mxu0
      %v1541 = vadd.f32 0.0, %v1540
      %v1542 = vpop.f32.mrf.mxu0
      %v1543 = vadd.f32 0.0, %v1542
      %1544 = vmatmul.bf16.gmra.mxu0 %v1458
      %v1545 = vpop.f32.mrf.mxu0
      %v1546 = vadd.f32 0.0, %v1545
      %v1547 = vpop.f32.mrf.mxu0
      %v1548 = vadd.f32 0.0, %v1547
      %1549 = vmatmul.bf16.gmra.mxu0 %v1461
      %v1550 = vpop.f32.mrf.mxu0
      %v1551 = vadd.f32 0.0, %v1550
      %v1552 = vpop.f32.mrf.mxu0
      %v1553 = vadd.f32 0.0, %v1552
      %1554 = vdwg.mxu0
      %v1555 = vadd.f32 %v1123, %v1476
      %v1556 = vadd.f32 %v1125, %v1478
      %v1557 = vadd.f32 %v1128, %v1481
      %v1558 = vadd.f32 %v1130, %v1483
      %v1559 = vadd.f32 %v1133, %v1486
      %v1560 = vadd.f32 %v1135, %v1488
      %v1561 = vadd.f32 %v1138, %v1491
      %v1562 = vadd.f32 %v1140, %v1493
      %v1563 = vadd.f32 %v1143, %v1496
      %v1564 = vadd.f32 %v1145, %v1498
      %v1565 = vadd.f32 %v1148, %v1501
      %v1566 = vadd.f32 %v1150, %v1503
      %v1567 = vadd.f32 %v1153, %v1506
      %v1568 = vadd.f32 %v1155, %v1508
      %v1569 = vadd.f32 %v1158, %v1511
      %v1570 = vadd.f32 %v1160, %v1513
      %v1571 = vadd.f32 %v1163, %v1516
      %v1572 = vadd.f32 %v1165, %v1518
      %v1573 = vadd.f32 %v1168, %v1521
      %v1574 = vadd.f32 %v1170, %v1523
      %v1575 = vadd.f32 %v1173, %v1526
      %v1576 = vadd.f32 %v1175, %v1528
      %v1577 = vadd.f32 %v1178, %v1531
      %v1578 = vadd.f32 %v1180, %v1533
      %v1579 = vadd.f32 %v1183, %v1536
      %v1580 = vadd.f32 %v1185, %v1538
      %v1581 = vadd.f32 %v1188, %v1541
      %v1582 = vadd.f32 %v1190, %v1543
      %v1583 = vadd.f32 %v1193, %v1546
      %v1584 = vadd.f32 %v1195, %v1548
      %v1585 = vadd.f32 %v1198, %v1551
      %v1586 = vadd.f32 %v1200, %v1553
      %s1587 = scalar_lea.vmem %s325, 12
      %v1588 = vld [vmem:[%s1587] sm:$0xf]
      %v1589 = vld [vmem:[%s1587 + $0x4] sm:$0xf]
      %v1590 = vld [vmem:[%s1587 + $0xc] sm:$0xf]
      %v1591 = vld [vmem:[%s1587 + $0x10] sm:$0xf]
      %v1592 = vld [vmem:[%s1587 + $0x18] sm:$0xf]
      %v1593 = vld [vmem:[%s1587 + $0x1c] sm:$0xf]
      %v1594 = vld [vmem:[%s1587 + $0x24] sm:$0xf]
      %v1595 = vld [vmem:[%s1587 + $0x28] sm:$0xf]
      %v1596 = vld [vmem:[%s1587 + $0x30] sm:$0xf]
      %v1597 = vld [vmem:[%s1587 + $0x34] sm:$0xf]
      %v1598 = vld [vmem:[%s1587 + $0x3c] sm:$0xf]
      %v1599 = vld [vmem:[%s1587 + $0x40] sm:$0xf]
      %v1600 = vld [vmem:[%s1587 + $0x48] sm:$0xf]
      %v1601 = vld [vmem:[%s1587 + $0x4c] sm:$0xf]
      %v1602 = vld [vmem:[%s1587 + $0x54] sm:$0xf]
      %v1603 = vld [vmem:[%s1587 + $0x58] sm:$0xf]
      %v1604 = vld [vmem:[%s1587 + $0x60] sm:$0xf]
      %v1605 = vld [vmem:[%s1587 + $0x64] sm:$0xf]
      %v1606 = vld [vmem:[%s1587 + $0x6c] sm:$0xf]
      %v1607 = vld [vmem:[%s1587 + $0x70] sm:$0xf]
      %v1608 = vld [vmem:[%s1587 + $0x78] sm:$0xf]
      %v1609 = vld [vmem:[%s1587 + $0x7c] sm:$0xf]
      %v1610 = vld [vmem:[%s1587 + $0x84] sm:$0xf]
      %v1611 = vld [vmem:[%s1587 + $0x88] sm:$0xf]
      %v1612 = vld [vmem:[%s1587 + $0x90] sm:$0xf]
      %v1613 = vld [vmem:[%s1587 + $0x94] sm:$0xf]
      %v1614 = vld [vmem:[%s1587 + $0x9c] sm:$0xf]
      %v1615 = vld [vmem:[%s1587 + $0xa0] sm:$0xf]
      %v1616 = vld [vmem:[%s1587 + $0xa8] sm:$0xf]
      %v1617 = vld [vmem:[%s1587 + $0xac] sm:$0xf]
      %v1618 = vld [vmem:[%s1587 + $0xb4] sm:$0xf]
      %v1619 = vld [vmem:[%s1587 + $0xb8] sm:$0xf]
      %s1620 = scalar_lea.vmem %s329, 6
      %v1621 = vld [vmem:[%s1620] sm:$0x3]
      %v1654 = vunpack.c.l.b16 %v1588
      %v1655 = vunpack.c.l.b16 %v1589
      %v1656 = vunpack.c.l.b16 %v1590
      %v1657 = vunpack.c.l.b16 %v1591
      %v1658 = vunpack.c.l.b16 %v1592
      %v1659 = vunpack.c.l.b16 %v1593
      %v1660 = vunpack.c.l.b16 %v1594
      %v1661 = vunpack.c.l.b16 %v1595
      %v1662 = vunpack.c.l.b16 %v1596
      %v1663 = vunpack.c.l.b16 %v1597
      %v1664 = vunpack.c.l.b16 %v1598
      %v1665 = vunpack.c.l.b16 %v1599
      %v1666 = vunpack.c.l.b16 %v1600
      %v1667 = vunpack.c.l.b16 %v1601
      %v1668 = vunpack.c.l.b16 %v1602
      %v1669 = vunpack.c.l.b16 %v1603
      %v1670 = vunpack.c.l.b16 %v1604
      %v1671 = vunpack.c.l.b16 %v1605
      %v1672 = vunpack.c.l.b16 %v1606
      %v1673 = vunpack.c.l.b16 %v1607
      %v1674 = vunpack.c.l.b16 %v1608
      %v1675 = vunpack.c.l.b16 %v1609
      %v1676 = vunpack.c.l.b16 %v1610
      %v1677 = vunpack.c.l.b16 %v1611
      %v1678 = vunpack.c.l.b16 %v1612
      %v1679 = vunpack.c.l.b16 %v1613
      %v1680 = vunpack.c.l.b16 %v1614
      %v1681 = vunpack.c.l.b16 %v1615
      %v1682 = vunpack.c.l.b16 %v1616
      %v1683 = vunpack.c.l.b16 %v1617
      %v1684 = vunpack.c.l.b16 %v1618
      %v1685 = vunpack.c.l.b16 %v1619
      %v1686 = vpack.c.b16 %v1655, %v1654
      %v1687 = vpack.c.b16 %v1657, %v1656
      %v1688 = vpack.c.b16 %v1659, %v1658
      %v1689 = vpack.c.b16 %v1661, %v1660
      %v1690 = vpack.c.b16 %v1663, %v1662
      %v1691 = vpack.c.b16 %v1665, %v1664
      %v1692 = vpack.c.b16 %v1667, %v1666
      %v1693 = vpack.c.b16 %v1669, %v1668
      %v1694 = vpack.c.b16 %v1671, %v1670
      %v1695 = vpack.c.b16 %v1673, %v1672
      %v1696 = vpack.c.b16 %v1675, %v1674
      %v1697 = vpack.c.b16 %v1677, %v1676
      %v1698 = vpack.c.b16 %v1679, %v1678
      %v1699 = vpack.c.b16 %v1681, %v1680
      %v1700 = vpack.c.b16 %v1683, %v1682
      %v1701 = vpack.c.b16 %v1685, %v1684
      %v1703 = vsel %vm840, %v1686, 0
      %v1706 = vsel %vm840, %v1687, 0
      %v1709 = vsel %vm840, %v1688, 0
      %v1712 = vsel %vm840, %v1689, 0
      %v1715 = vsel %vm840, %v1690, 0
      %v1718 = vsel %vm840, %v1691, 0
      %v1721 = vsel %vm840, %v1692, 0
      %v1724 = vsel %vm840, %v1693, 0
      %v1727 = vsel %vm840, %v1694, 0
      %v1730 = vsel %vm840, %v1695, 0
      %v1733 = vsel %vm840, %v1696, 0
      %v1736 = vsel %vm840, %v1697, 0
      %v1739 = vsel %vm840, %v1698, 0
      %v1742 = vsel %vm840, %v1699, 0
      %v1745 = vsel %vm840, %v1700, 0
      %v1748 = vsel %vm840, %v1701, 0
      %v1751 = vsel %vm889, %v1621, 0
      %1753 = vmatpush.bf16.msra.mxu0 0
      %1754 = vmatpush.bf16.msra.mxu0 0
      %1755 = vmatpush.bf16.msra.mxu0 0
      %1756 = vmatpush.bf16.msra.mxu0 0
      %1757 = vmatpush.bf16.msra.mxu0 0
      %1758 = vmatpush.bf16.msra.mxu0 0
      %1759 = vmatpush.bf16.msra.mxu0 0
      %1760 = vmatpush.bf16.msra.mxu0 %v1751
      %1761 = vmatmul.bf16.gmra.mxu0 %v1703
      %v1762 = vpop.f32.mrf.mxu0
      %v1763 = vadd.f32 0.0, %v1762
      %v1764 = vpop.f32.mrf.mxu0
      %v1765 = vadd.f32 0.0, %v1764
      %1766 = vmatmul.bf16.gmra.mxu0 %v1706
      %v1767 = vpop.f32.mrf.mxu0
      %v1768 = vadd.f32 0.0, %v1767
      %v1769 = vpop.f32.mrf.mxu0
      %v1770 = vadd.f32 0.0, %v1769
      %1771 = vmatmul.bf16.gmra.mxu0 %v1709
      %v1772 = vpop.f32.mrf.mxu0
      %v1773 = vadd.f32 0.0, %v1772
      %v1774 = vpop.f32.mrf.mxu0
      %v1775 = vadd.f32 0.0, %v1774
      %1776 = vmatmul.bf16.gmra.mxu0 %v1712
      %v1777 = vpop.f32.mrf.mxu0
      %v1778 = vadd.f32 0.0, %v1777
      %v1779 = vpop.f32.mrf.mxu0
      %v1780 = vadd.f32 0.0, %v1779
      %1781 = vmatmul.bf16.gmra.mxu0 %v1715
      %v1782 = vpop.f32.mrf.mxu0
      %v1783 = vadd.f32 0.0, %v1782
      %v1784 = vpop.f32.mrf.mxu0
      %v1785 = vadd.f32 0.0, %v1784
      %1786 = vmatmul.bf16.gmra.mxu0 %v1718
      %v1787 = vpop.f32.mrf.mxu0
      %v1788 = vadd.f32 0.0, %v1787
      %v1789 = vpop.f32.mrf.mxu0
      %v1790 = vadd.f32 0.0, %v1789
      %1791 = vmatmul.bf16.gmra.mxu0 %v1721
      %v1792 = vpop.f32.mrf.mxu0
      %v1793 = vadd.f32 0.0, %v1792
      %v1794 = vpop.f32.mrf.mxu0
      %v1795 = vadd.f32 0.0, %v1794
      %1796 = vmatmul.bf16.gmra.mxu0 %v1724
      %v1797 = vpop.f32.mrf.mxu0
      %v1798 = vadd.f32 0.0, %v1797
      %v1799 = vpop.f32.mrf.mxu0
      %v1800 = vadd.f32 0.0, %v1799
      %1801 = vmatmul.bf16.gmra.mxu0 %v1727
      %v1802 = vpop.f32.mrf.mxu0
      %v1803 = vadd.f32 0.0, %v1802
      %v1804 = vpop.f32.mrf.mxu0
      %v1805 = vadd.f32 0.0, %v1804
      %1806 = vmatmul.bf16.gmra.mxu0 %v1730
      %v1807 = vpop.f32.mrf.mxu0
      %v1808 = vadd.f32 0.0, %v1807
      %v1809 = vpop.f32.mrf.mxu0
      %v1810 = vadd.f32 0.0, %v1809
      %1811 = vmatmul.bf16.gmra.mxu0 %v1733
      %v1812 = vpop.f32.mrf.mxu0
      %v1813 = vadd.f32 0.0, %v1812
      %v1814 = vpop.f32.mrf.mxu0
      %v1815 = vadd.f32 0.0, %v1814
      %1816 = vmatmul.bf16.gmra.mxu0 %v1736
      %v1817 = vpop.f32.mrf.mxu0
      %v1818 = vadd.f32 0.0, %v1817
      %v1819 = vpop.f32.mrf.mxu0
      %v1820 = vadd.f32 0.0, %v1819
      %1821 = vmatmul.bf16.gmra.mxu0 %v1739
      %v1822 = vpop.f32.mrf.mxu0
      %v1823 = vadd.f32 0.0, %v1822
      %v1824 = vpop.f32.mrf.mxu0
      %v1825 = vadd.f32 0.0, %v1824
      %1826 = vmatmul.bf16.gmra.mxu0 %v1742
      %v1827 = vpop.f32.mrf.mxu0
      %v1828 = vadd.f32 0.0, %v1827
      %v1829 = vpop.f32.mrf.mxu0
      %v1830 = vadd.f32 0.0, %v1829
      %1831 = vmatmul.bf16.gmra.mxu0 %v1745
      %v1832 = vpop.f32.mrf.mxu0
      %v1833 = vadd.f32 0.0, %v1832
      %v1834 = vpop.f32.mrf.mxu0
      %v1835 = vadd.f32 0.0, %v1834
      %1836 = vmatmul.bf16.gmra.mxu0 %v1748
      %v1837 = vpop.f32.mrf.mxu0
      %v1838 = vadd.f32 0.0, %v1837
      %v1839 = vpop.f32.mrf.mxu0
      %v1840 = vadd.f32 0.0, %v1839
      %1841 = vdwg.mxu0
      %v1842 = vadd.f32 %v1555, %v1763
      %v1843 = vadd.f32 %v1556, %v1765
      %v1844 = vadd.f32 %v1557, %v1768
      %v1845 = vadd.f32 %v1558, %v1770
      %v1846 = vadd.f32 %v1559, %v1773
      %v1847 = vadd.f32 %v1560, %v1775
      %v1848 = vadd.f32 %v1561, %v1778
      %v1849 = vadd.f32 %v1562, %v1780
      %v1850 = vadd.f32 %v1563, %v1783
      %v1851 = vadd.f32 %v1564, %v1785
      %v1852 = vadd.f32 %v1565, %v1788
      %v1853 = vadd.f32 %v1566, %v1790
      %v1854 = vadd.f32 %v1567, %v1793
      %v1855 = vadd.f32 %v1568, %v1795
      %v1856 = vadd.f32 %v1569, %v1798
      %v1857 = vadd.f32 %v1570, %v1800
      %v1858 = vadd.f32 %v1571, %v1803
      %v1859 = vadd.f32 %v1572, %v1805
      %v1860 = vadd.f32 %v1573, %v1808
      %v1861 = vadd.f32 %v1574, %v1810
      %v1862 = vadd.f32 %v1575, %v1813
      %v1863 = vadd.f32 %v1576, %v1815
      %v1864 = vadd.f32 %v1577, %v1818
      %v1865 = vadd.f32 %v1578, %v1820
      %v1866 = vadd.f32 %v1579, %v1823
      %v1867 = vadd.f32 %v1580, %v1825
      %v1868 = vadd.f32 %v1581, %v1828
      %v1869 = vadd.f32 %v1582, %v1830
      %v1870 = vadd.f32 %v1583, %v1833
      %v1871 = vadd.f32 %v1584, %v1835
      %v1872 = vadd.f32 %v1585, %v1838
      %v1873 = vadd.f32 %v1586, %v1840
      %v1874 = vld [vmem:[%s1587] sm:$0xf]
      %v1875 = vld [vmem:[%s1587 + $0x4] sm:$0xf]
      %v1876 = vld [vmem:[%s1587 + $0x8] sm:$0x1]
      %v1877 = vld [vmem:[%s1587 + $0xc] sm:$0xf]
      %v1878 = vld [vmem:[%s1587 + $0x10] sm:$0xf]
      %v1879 = vld [vmem:[%s1587 + $0x14] sm:$0x1]
      %v1880 = vld [vmem:[%s1587 + $0x18] sm:$0xf]
      %v1881 = vld [vmem:[%s1587 + $0x1c] sm:$0xf]
      %v1882 = vld [vmem:[%s1587 + $0x20] sm:$0x1]
      %v1883 = vld [vmem:[%s1587 + $0x24] sm:$0xf]
      %v1884 = vld [vmem:[%s1587 + $0x28] sm:$0xf]
      %v1885 = vld [vmem:[%s1587 + $0x2c] sm:$0x1]
      %v1886 = vld [vmem:[%s1587 + $0x30] sm:$0xf]
      %v1887 = vld [vmem:[%s1587 + $0x34] sm:$0xf]
      %v1888 = vld [vmem:[%s1587 + $0x38] sm:$0x1]
      %v1889 = vld [vmem:[%s1587 + $0x3c] sm:$0xf]
      %v1890 = vld [vmem:[%s1587 + $0x40] sm:$0xf]
      %v1891 = vld [vmem:[%s1587 + $0x44] sm:$0x1]
      %v1892 = vld [vmem:[%s1587 + $0x48] sm:$0xf]
      %v1893 = vld [vmem:[%s1587 + $0x4c] sm:$0xf]
      %v1894 = vld [vmem:[%s1587 + $0x50] sm:$0x1]
      %v1895 = vld [vmem:[%s1587 + $0x54] sm:$0xf]
      %v1896 = vld [vmem:[%s1587 + $0x58] sm:$0xf]
      %v1897 = vld [vmem:[%s1587 + $0x5c] sm:$0x1]
      %v1898 = vld [vmem:[%s1587 + $0x60] sm:$0xf]
      %v1899 = vld [vmem:[%s1587 + $0x64] sm:$0xf]
      %v1900 = vld [vmem:[%s1587 + $0x68] sm:$0x1]
      %v1901 = vld [vmem:[%s1587 + $0x6c] sm:$0xf]
      %v1902 = vld [vmem:[%s1587 + $0x70] sm:$0xf]
      %v1903 = vld [vmem:[%s1587 + $0x74] sm:$0x1]
      %v1904 = vld [vmem:[%s1587 + $0x78] sm:$0xf]
      %v1905 = vld [vmem:[%s1587 + $0x7c] sm:$0xf]
      %v1906 = vld [vmem:[%s1587 + $0x80] sm:$0x1]
      %v1907 = vld [vmem:[%s1587 + $0x84] sm:$0xf]
      %v1908 = vld [vmem:[%s1587 + $0x88] sm:$0xf]
      %v1909 = vld [vmem:[%s1587 + $0x8c] sm:$0x1]
      %v1910 = vld [vmem:[%s1587 + $0x90] sm:$0xf]
      %v1911 = vld [vmem:[%s1587 + $0x94] sm:$0xf]
      %v1912 = vld [vmem:[%s1587 + $0x98] sm:$0x1]
      %v1913 = vld [vmem:[%s1587 + $0x9c] sm:$0xf]
      %v1914 = vld [vmem:[%s1587 + $0xa0] sm:$0xf]
      %v1915 = vld [vmem:[%s1587 + $0xa4] sm:$0x1]
      %v1916 = vld [vmem:[%s1587 + $0xa8] sm:$0xf]
      %v1917 = vld [vmem:[%s1587 + $0xac] sm:$0xf]
      %v1918 = vld [vmem:[%s1587 + $0xb0] sm:$0x1]
      %v1919 = vld [vmem:[%s1587 + $0xb4] sm:$0xf]
      %v1920 = vld [vmem:[%s1587 + $0xb8] sm:$0xf]
      %v1921 = vld [vmem:[%s1587 + $0xbc] sm:$0x1]
      %v1923 = vshrl.u32 %v1874, 16
      %v1925 = vrot.slane %v1923, 4
      %v1926 = vshll.u32 %v1874, 16
      %v1928 = vrot.slane %v1926, 5
      %v1929 = vor.u32 %v1925, %v1928
      %v1930 = vrot.slane %v1929, 4
      %v1932 = vshll.u32 %v1875, 16
      %v1934 = vrot.slane %v1932, 5
      %v1935 = vsel %vm405, %v1930, %v1934
      %v1936 = vshrl.u32 %v1875, 16
      %v1938 = vrot.slane %v1936, 4
      %v1939 = vor.u32 %v1938, %v1934
      %v1940 = vrot.slane %v1939, 4
      %v1942 = vshll.u32 %v1876, 16
      %v1944 = vrot.slane %v1942, 5
      %v1945 = vsel %vm405, %v1940, %v1944
      %v1947 = vshrl.u32 %v1877, 16
      %v1949 = vrot.slane %v1947, 4
      %v1950 = vshll.u32 %v1877, 16
      %v1952 = vrot.slane %v1950, 5
      %v1953 = vor.u32 %v1949, %v1952
      %v1954 = vrot.slane %v1953, 4
      %v1956 = vshll.u32 %v1878, 16
      %v1958 = vrot.slane %v1956, 5
      %v1959 = vsel %vm405, %v1954, %v1958
      %v1960 = vshrl.u32 %v1878, 16
      %v1962 = vrot.slane %v1960, 4
      %v1963 = vor.u32 %v1962, %v1958
      %v1964 = vrot.slane %v1963, 4
      %v1966 = vshll.u32 %v1879, 16
      %v1968 = vrot.slane %v1966, 5
      %v1969 = vsel %vm405, %v1964, %v1968
      %v1971 = vshrl.u32 %v1880, 16
      %v1973 = vrot.slane %v1971, 4
      %v1974 = vshll.u32 %v1880, 16
      %v1976 = vrot.slane %v1974, 5
      %v1977 = vor.u32 %v1973, %v1976
      %v1978 = vrot.slane %v1977, 4
      %v1980 = vshll.u32 %v1881, 16
      %v1982 = vrot.slane %v1980, 5
      %v1983 = vsel %vm405, %v1978, %v1982
      %v1984 = vshrl.u32 %v1881, 16
      %v1986 = vrot.slane %v1984, 4
      %v1987 = vor.u32 %v1986, %v1982
      %v1988 = vrot.slane %v1987, 4
      %v1990 = vshll.u32 %v1882, 16
      %v1992 = vrot.slane %v1990, 5
      %v1993 = vsel %vm405, %v1988, %v1992
      %v1995 = vshrl.u32 %v1883, 16
      %v1997 = vrot.slane %v1995, 4
      %v1998 = vshll.u32 %v1883, 16
      %v2000 = vrot.slane %v1998, 5
      %v2001 = vor.u32 %v1997, %v2000
      %v2002 = vrot.slane %v2001, 4
      %v2004 = vshll.u32 %v1884, 16
      %v2006 = vrot.slane %v2004, 5
      %v2007 = vsel %vm405, %v2002, %v2006
      %v2008 = vshrl.u32 %v1884, 16
      %v2010 = vrot.slane %v2008, 4
      %v2011 = vor.u32 %v2010, %v2006
      %v2012 = vrot.slane %v2011, 4
      %v2014 = vshll.u32 %v1885, 16
      %v2016 = vrot.slane %v2014, 5
      %v2017 = vsel %vm405, %v2012, %v2016
      %v2019 = vshrl.u32 %v1886, 16
      %v2021 = vrot.slane %v2019, 4
      %v2022 = vshll.u32 %v1886, 16
      %v2024 = vrot.slane %v2022, 5
      %v2025 = vor.u32 %v2021, %v2024
      %v2026 = vrot.slane %v2025, 4
      %v2028 = vshll.u32 %v1887, 16
      %v2030 = vrot.slane %v2028, 5
      %v2031 = vsel %vm405, %v2026, %v2030
      %v2032 = vshrl.u32 %v1887, 16
      %v2034 = vrot.slane %v2032, 4
      %v2035 = vor.u32 %v2034, %v2030
      %v2036 = vrot.slane %v2035, 4
      %v2038 = vshll.u32 %v1888, 16
      %v2040 = vrot.slane %v2038, 5
      %v2041 = vsel %vm405, %v2036, %v2040
      %v2043 = vshrl.u32 %v1889, 16
      %v2045 = vrot.slane %v2043, 4
      %v2046 = vshll.u32 %v1889, 16
      %v2048 = vrot.slane %v2046, 5
      %v2049 = vor.u32 %v2045, %v2048
      %v2050 = vrot.slane %v2049, 4
      %v2052 = vshll.u32 %v1890, 16
      %v2054 = vrot.slane %v2052, 5
      %v2055 = vsel %vm405, %v2050, %v2054
      %v2056 = vshrl.u32 %v1890, 16
      %v2058 = vrot.slane %v2056, 4
      %v2059 = vor.u32 %v2058, %v2054
      %v2060 = vrot.slane %v2059, 4
      %v2062 = vshll.u32 %v1891, 16
      %v2064 = vrot.slane %v2062, 5
      %v2065 = vsel %vm405, %v2060, %v2064
      %v2067 = vshrl.u32 %v1892, 16
      %v2069 = vrot.slane %v2067, 4
      %v2070 = vshll.u32 %v1892, 16
      %v2072 = vrot.slane %v2070, 5
      %v2073 = vor.u32 %v2069, %v2072
      %v2074 = vrot.slane %v2073, 4
      %v2076 = vshll.u32 %v1893, 16
      %v2078 = vrot.slane %v2076, 5
      %v2079 = vsel %vm405, %v2074, %v2078
      %v2080 = vshrl.u32 %v1893, 16
      %v2082 = vrot.slane %v2080, 4
      %v2083 = vor.u32 %v2082, %v2078
      %v2084 = vrot.slane %v2083, 4
      %v2086 = vshll.u32 %v1894, 16
      %v2088 = vrot.slane %v2086, 5
      %v2089 = vsel %vm405, %v2084, %v2088
      %v2091 = vshrl.u32 %v1895, 16
      %v2093 = vrot.slane %v2091, 4
      %v2094 = vshll.u32 %v1895, 16
      %v2096 = vrot.slane %v2094, 5
      %v2097 = vor.u32 %v2093, %v2096
      %v2098 = vrot.slane %v2097, 4
      %v2100 = vshll.u32 %v1896, 16
      %v2102 = vrot.slane %v2100, 5
      %v2103 = vsel %vm405, %v2098, %v2102
      %v2104 = vshrl.u32 %v1896, 16
      %v2106 = vrot.slane %v2104, 4
      %v2107 = vor.u32 %v2106, %v2102
      %v2108 = vrot.slane %v2107, 4
      %v2110 = vshll.u32 %v1897, 16
      %v2112 = vrot.slane %v2110, 5
      %v2113 = vsel %vm405, %v2108, %v2112
      %v2115 = vshrl.u32 %v1898, 16
      %v2117 = vrot.slane %v2115, 4
      %v2118 = vshll.u32 %v1898, 16
      %v2120 = vrot.slane %v2118, 5
      %v2121 = vor.u32 %v2117, %v2120
      %v2122 = vrot.slane %v2121, 4
      %v2124 = vshll.u32 %v1899, 16
      %v2126 = vrot.slane %v2124, 5
      %v2127 = vsel %vm405, %v2122, %v2126
      %v2128 = vshrl.u32 %v1899, 16
      %v2130 = vrot.slane %v2128, 4
      %v2131 = vor.u32 %v2130, %v2126
      %v2132 = vrot.slane %v2131, 4
      %v2134 = vshll.u32 %v1900, 16
      %v2136 = vrot.slane %v2134, 5
      %v2137 = vsel %vm405, %v2132, %v2136
      %v2139 = vshrl.u32 %v1901, 16
      %v2141 = vrot.slane %v2139, 4
      %v2142 = vshll.u32 %v1901, 16
      %v2144 = vrot.slane %v2142, 5
      %v2145 = vor.u32 %v2141, %v2144
      %v2146 = vrot.slane %v2145, 4
      %v2148 = vshll.u32 %v1902, 16
      %v2150 = vrot.slane %v2148, 5
      %v2151 = vsel %vm405, %v2146, %v2150
      %v2152 = vshrl.u32 %v1902, 16
      %v2154 = vrot.slane %v2152, 4
      %v2155 = vor.u32 %v2154, %v2150
      %v2156 = vrot.slane %v2155, 4
      %v2158 = vshll.u32 %v1903, 16
      %v2160 = vrot.slane %v2158, 5
      %v2161 = vsel %vm405, %v2156, %v2160
      %v2163 = vshrl.u32 %v1904, 16
      %v2165 = vrot.slane %v2163, 4
      %v2166 = vshll.u32 %v1904, 16
      %v2168 = vrot.slane %v2166, 5
      %v2169 = vor.u32 %v2165, %v2168
      %v2170 = vrot.slane %v2169, 4
      %v2172 = vshll.u32 %v1905, 16
      %v2174 = vrot.slane %v2172, 5
      %v2175 = vsel %vm405, %v2170, %v2174
      %v2176 = vshrl.u32 %v1905, 16
      %v2178 = vrot.slane %v2176, 4
      %v2179 = vor.u32 %v2178, %v2174
      %v2180 = vrot.slane %v2179, 4
      %v2182 = vshll.u32 %v1906, 16
      %v2184 = vrot.slane %v2182, 5
      %v2185 = vsel %vm405, %v2180, %v2184
      %v2187 = vshrl.u32 %v1907, 16
      %v2189 = vrot.slane %v2187, 4
      %v2190 = vshll.u32 %v1907, 16
      %v2192 = vrot.slane %v2190, 5
      %v2193 = vor.u32 %v2189, %v2192
      %v2194 = vrot.slane %v2193, 4
      %v2196 = vshll.u32 %v1908, 16
      %v2198 = vrot.slane %v2196, 5
      %v2199 = vsel %vm405, %v2194, %v2198
      %v2200 = vshrl.u32 %v1908, 16
      %v2202 = vrot.slane %v2200, 4
      %v2203 = vor.u32 %v2202, %v2198
      %v2204 = vrot.slane %v2203, 4
      %v2206 = vshll.u32 %v1909, 16
      %v2208 = vrot.slane %v2206, 5
      %v2209 = vsel %vm405, %v2204, %v2208
      %v2211 = vshrl.u32 %v1910, 16
      %v2213 = vrot.slane %v2211, 4
      %v2214 = vshll.u32 %v1910, 16
      %v2216 = vrot.slane %v2214, 5
      %v2217 = vor.u32 %v2213, %v2216
      %v2218 = vrot.slane %v2217, 4
      %v2220 = vshll.u32 %v1911, 16
      %v2222 = vrot.slane %v2220, 5
      %v2223 = vsel %vm405, %v2218, %v2222
      %v2224 = vshrl.u32 %v1911, 16
      %v2226 = vrot.slane %v2224, 4
      %v2227 = vor.u32 %v2226, %v2222
      %v2228 = vrot.slane %v2227, 4
      %v2230 = vshll.u32 %v1912, 16
      %v2232 = vrot.slane %v2230, 5
      %v2233 = vsel %vm405, %v2228, %v2232
      %v2235 = vshrl.u32 %v1913, 16
      %v2237 = vrot.slane %v2235, 4
      %v2238 = vshll.u32 %v1913, 16
      %v2240 = vrot.slane %v2238, 5
      %v2241 = vor.u32 %v2237, %v2240
      %v2242 = vrot.slane %v2241, 4
      %v2244 = vshll.u32 %v1914, 16
      %v2246 = vrot.slane %v2244, 5
      %v2247 = vsel %vm405, %v2242, %v2246
      %v2248 = vshrl.u32 %v1914, 16
      %v2250 = vrot.slane %v2248, 4
      %v2251 = vor.u32 %v2250, %v2246
      %v2252 = vrot.slane %v2251, 4
      %v2254 = vshll.u32 %v1915, 16
      %v2256 = vrot.slane %v2254, 5
      %v2257 = vsel %vm405, %v2252, %v2256
      %v2259 = vshrl.u32 %v1916, 16
      %v2261 = vrot.slane %v2259, 4
      %v2262 = vshll.u32 %v1916, 16
      %v2264 = vrot.slane %v2262, 5
      %v2265 = vor.u32 %v2261, %v2264
      %v2266 = vrot.slane %v2265, 4
      %v2268 = vshll.u32 %v1917, 16
      %v2270 = vrot.slane %v2268, 5
      %v2271 = vsel %vm405, %v2266, %v2270
      %v2272 = vshrl.u32 %v1917, 16
      %v2274 = vrot.slane %v2272, 4
      %v2275 = vor.u32 %v2274, %v2270
      %v2276 = vrot.slane %v2275, 4
      %v2278 = vshll.u32 %v1918, 16
      %v2280 = vrot.slane %v2278, 5
      %v2281 = vsel %vm405, %v2276, %v2280
      %v2283 = vshrl.u32 %v1919, 16
      %v2285 = vrot.slane %v2283, 4
      %v2286 = vshll.u32 %v1919, 16
      %v2288 = vrot.slane %v2286, 5
      %v2289 = vor.u32 %v2285, %v2288
      %v2290 = vrot.slane %v2289, 4
      %v2292 = vshll.u32 %v1920, 16
      %v2294 = vrot.slane %v2292, 5
      %v2295 = vsel %vm405, %v2290, %v2294
      %v2296 = vshrl.u32 %v1920, 16
      %v2298 = vrot.slane %v2296, 4
      %v2299 = vor.u32 %v2298, %v2294
      %v2300 = vrot.slane %v2299, 4
      %v2302 = vshll.u32 %v1921, 16
      %v2304 = vrot.slane %v2302, 5
      %v2305 = vsel %vm405, %v2300, %v2304
      %s2306 = scalar_lea.vmem %s329, 8
      %v2307 = vld [vmem:[%s2306] sm:$0x3]
      %v2308 = vunpack.c.l.b16 %v1935
      %v2309 = vunpack.c.l.b16 %v1945
      %v2310 = vunpack.c.l.b16 %v1959
      %v2311 = vunpack.c.l.b16 %v1969
      %v2312 = vunpack.c.l.b16 %v1983
      %v2313 = vunpack.c.l.b16 %v1993
      %v2314 = vunpack.c.l.b16 %v2007
      %v2315 = vunpack.c.l.b16 %v2017
      %v2316 = vunpack.c.l.b16 %v2031
      %v2317 = vunpack.c.l.b16 %v2041
      %v2318 = vunpack.c.l.b16 %v2055
      %v2319 = vunpack.c.l.b16 %v2065
      %v2320 = vunpack.c.l.b16 %v2079
      %v2321 = vunpack.c.l.b16 %v2089
      %v2322 = vunpack.c.l.b16 %v2103
      %v2323 = vunpack.c.l.b16 %v2113
      %v2324 = vunpack.c.l.b16 %v2127
      %v2325 = vunpack.c.l.b16 %v2137
      %v2326 = vunpack.c.l.b16 %v2151
      %v2327 = vunpack.c.l.b16 %v2161
      %v2328 = vunpack.c.l.b16 %v2175
      %v2329 = vunpack.c.l.b16 %v2185
      %v2330 = vunpack.c.l.b16 %v2199
      %v2331 = vunpack.c.l.b16 %v2209
      %v2332 = vunpack.c.l.b16 %v2223
      %v2333 = vunpack.c.l.b16 %v2233
      %v2334 = vunpack.c.l.b16 %v2247
      %v2335 = vunpack.c.l.b16 %v2257
      %v2336 = vunpack.c.l.b16 %v2271
      %v2337 = vunpack.c.l.b16 %v2281
      %v2338 = vunpack.c.l.b16 %v2295
      %v2339 = vunpack.c.l.b16 %v2305
      %v2340 = vpack.c.b16 %v2309, %v2308
      %v2341 = vpack.c.b16 %v2311, %v2310
      %v2342 = vpack.c.b16 %v2313, %v2312
      %v2343 = vpack.c.b16 %v2315, %v2314
      %v2344 = vpack.c.b16 %v2317, %v2316
      %v2345 = vpack.c.b16 %v2319, %v2318
      %v2346 = vpack.c.b16 %v2321, %v2320
      %v2347 = vpack.c.b16 %v2323, %v2322
      %v2348 = vpack.c.b16 %v2325, %v2324
      %v2349 = vpack.c.b16 %v2327, %v2326
      %v2350 = vpack.c.b16 %v2329, %v2328
      %v2351 = vpack.c.b16 %v2331, %v2330
      %v2352 = vpack.c.b16 %v2333, %v2332
      %v2353 = vpack.c.b16 %v2335, %v2334
      %v2354 = vpack.c.b16 %v2337, %v2336
      %v2355 = vpack.c.b16 %v2339, %v2338
      %v2357 = vsel %vm840, %v2340, 0
      %v2360 = vsel %vm840, %v2341, 0
      %v2363 = vsel %vm840, %v2342, 0
      %v2366 = vsel %vm840, %v2343, 0
      %v2369 = vsel %vm840, %v2344, 0
      %v2372 = vsel %vm840, %v2345, 0
      %v2375 = vsel %vm840, %v2346, 0
      %v2378 = vsel %vm840, %v2347, 0
      %v2381 = vsel %vm840, %v2348, 0
      %v2384 = vsel %vm840, %v2349, 0
      %v2387 = vsel %vm840, %v2350, 0
      %v2390 = vsel %vm840, %v2351, 0
      %v2393 = vsel %vm840, %v2352, 0
      %v2396 = vsel %vm840, %v2353, 0
      %v2399 = vsel %vm840, %v2354, 0
      %v2402 = vsel %vm840, %v2355, 0
      %v2405 = vsel %vm889, %v2307, 0
      %2407 = vmatpush.bf16.msra.mxu0 0
      %2408 = vmatpush.bf16.msra.mxu0 0
      %2409 = vmatpush.bf16.msra.mxu0 0
      %2410 = vmatpush.bf16.msra.mxu0 0
      %2411 = vmatpush.bf16.msra.mxu0 0
      %2412 = vmatpush.bf16.msra.mxu0 0
      %2413 = vmatpush.bf16.msra.mxu0 0
      %2414 = vmatpush.bf16.msra.mxu0 %v2405
      %2415 = vmatmul.bf16.gmra.mxu0 %v2357
      %v2416 = vpop.f32.mrf.mxu0
      %v2417 = vadd.f32 0.0, %v2416
      %v2418 = vpop.f32.mrf.mxu0
      %v2419 = vadd.f32 0.0, %v2418
      %2420 = vmatmul.bf16.gmra.mxu0 %v2360
      %v2421 = vpop.f32.mrf.mxu0
      %v2422 = vadd.f32 0.0, %v2421
      %v2423 = vpop.f32.mrf.mxu0
      %v2424 = vadd.f32 0.0, %v2423
      %2425 = vmatmul.bf16.gmra.mxu0 %v2363
      %v2426 = vpop.f32.mrf.mxu0
      %v2427 = vadd.f32 0.0, %v2426
      %v2428 = vpop.f32.mrf.mxu0
      %v2429 = vadd.f32 0.0, %v2428
      %2430 = vmatmul.bf16.gmra.mxu0 %v2366
      %v2431 = vpop.f32.mrf.mxu0
      %v2432 = vadd.f32 0.0, %v2431
      %v2433 = vpop.f32.mrf.mxu0
      %v2434 = vadd.f32 0.0, %v2433
      %2435 = vmatmul.bf16.gmra.mxu0 %v2369
      %v2436 = vpop.f32.mrf.mxu0
      %v2437 = vadd.f32 0.0, %v2436
      %v2438 = vpop.f32.mrf.mxu0
      %v2439 = vadd.f32 0.0, %v2438
      %2440 = vmatmul.bf16.gmra.mxu0 %v2372
      %v2441 = vpop.f32.mrf.mxu0
      %v2442 = vadd.f32 0.0, %v2441
      %v2443 = vpop.f32.mrf.mxu0
      %v2444 = vadd.f32 0.0, %v2443
      %2445 = vmatmul.bf16.gmra.mxu0 %v2375
      %v2446 = vpop.f32.mrf.mxu0
      %v2447 = vadd.f32 0.0, %v2446
      %v2448 = vpop.f32.mrf.mxu0
      %v2449 = vadd.f32 0.0, %v2448
      %2450 = vmatmul.bf16.gmra.mxu0 %v2378
      %v2451 = vpop.f32.mrf.mxu0
      %v2452 = vadd.f32 0.0, %v2451
      %v2453 = vpop.f32.mrf.mxu0
      %v2454 = vadd.f32 0.0, %v2453
      %2455 = vmatmul.bf16.gmra.mxu0 %v2381
      %v2456 = vpop.f32.mrf.mxu0
      %v2457 = vadd.f32 0.0, %v2456
      %v2458 = vpop.f32.mrf.mxu0
      %v2459 = vadd.f32 0.0, %v2458
      %2460 = vmatmul.bf16.gmra.mxu0 %v2384
      %v2461 = vpop.f32.mrf.mxu0
      %v2462 = vadd.f32 0.0, %v2461
      %v2463 = vpop.f32.mrf.mxu0
      %v2464 = vadd.f32 0.0, %v2463
      %2465 = vmatmul.bf16.gmra.mxu0 %v2387
      %v2466 = vpop.f32.mrf.mxu0
      %v2467 = vadd.f32 0.0, %v2466
      %v2468 = vpop.f32.mrf.mxu0
      %v2469 = vadd.f32 0.0, %v2468
      %2470 = vmatmul.bf16.gmra.mxu0 %v2390
      %v2471 = vpop.f32.mrf.mxu0
      %v2472 = vadd.f32 0.0, %v2471
      %v2473 = vpop.f32.mrf.mxu0
      %v2474 = vadd.f32 0.0, %v2473
      %2475 = vmatmul.bf16.gmra.mxu0 %v2393
      %v2476 = vpop.f32.mrf.mxu0
      %v2477 = vadd.f32 0.0, %v2476
      %v2478 = vpop.f32.mrf.mxu0
      %v2479 = vadd.f32 0.0, %v2478
      %2480 = vmatmul.bf16.gmra.mxu0 %v2396
      %v2481 = vpop.f32.mrf.mxu0
      %v2482 = vadd.f32 0.0, %v2481
      %v2483 = vpop.f32.mrf.mxu0
      %v2484 = vadd.f32 0.0, %v2483
      %2485 = vmatmul.bf16.gmra.mxu0 %v2399
      %v2486 = vpop.f32.mrf.mxu0
      %v2487 = vadd.f32 0.0, %v2486
      %v2488 = vpop.f32.mrf.mxu0
      %v2489 = vadd.f32 0.0, %v2488
      %2490 = vmatmul.bf16.gmra.mxu0 %v2402
      %v2491 = vpop.f32.mrf.mxu0
      %v2492 = vadd.f32 0.0, %v2491
      %v2493 = vpop.f32.mrf.mxu0
      %v2494 = vadd.f32 0.0, %v2493
      %2495 = vdwg.mxu0
      %v2496 = vadd.f32 %v1842, %v2417
      %v2497 = vadd.f32 %v1843, %v2419
      %v2498 = vadd.f32 %v1844, %v2422
      %v2499 = vadd.f32 %v1845, %v2424
      %v2500 = vadd.f32 %v1846, %v2427
      %v2501 = vadd.f32 %v1847, %v2429
      %v2502 = vadd.f32 %v1848, %v2432
      %v2503 = vadd.f32 %v1849, %v2434
      %v2504 = vadd.f32 %v1850, %v2437
      %v2505 = vadd.f32 %v1851, %v2439
      %v2506 = vadd.f32 %v1852, %v2442
      %v2507 = vadd.f32 %v1853, %v2444
      %v2508 = vadd.f32 %v1854, %v2447
      %v2509 = vadd.f32 %v1855, %v2449
      %v2510 = vadd.f32 %v1856, %v2452
      %v2511 = vadd.f32 %v1857, %v2454
      %v2512 = vadd.f32 %v1858, %v2457
      %v2513 = vadd.f32 %v1859, %v2459
      %v2514 = vadd.f32 %v1860, %v2462
      %v2515 = vadd.f32 %v1861, %v2464
      %v2516 = vadd.f32 %v1862, %v2467
      %v2517 = vadd.f32 %v1863, %v2469
      %v2518 = vadd.f32 %v1864, %v2472
      %v2519 = vadd.f32 %v1865, %v2474
      %v2520 = vadd.f32 %v1866, %v2477
      %v2521 = vadd.f32 %v1867, %v2479
      %v2522 = vadd.f32 %v1868, %v2482
      %v2523 = vadd.f32 %v1869, %v2484
      %v2524 = vadd.f32 %v1870, %v2487
      %v2525 = vadd.f32 %v1871, %v2489
      %v2526 = vadd.f32 %v1872, %v2492
      %v2527 = vadd.f32 %v1873, %v2494
      %v2528 = vld [vmem:[%s1587] sm:$0xe]
      %v2529 = vld [vmem:[%s1587 + $0xc] sm:$0xe]
      %v2530 = vld [vmem:[%s1587 + $0x18] sm:$0xe]
      %v2531 = vld [vmem:[%s1587 + $0x24] sm:$0xe]
      %v2532 = vld [vmem:[%s1587 + $0x30] sm:$0xe]
      %v2533 = vld [vmem:[%s1587 + $0x3c] sm:$0xe]
      %v2534 = vld [vmem:[%s1587 + $0x48] sm:$0xe]
      %v2535 = vld [vmem:[%s1587 + $0x54] sm:$0xe]
      %v2536 = vld [vmem:[%s1587 + $0x60] sm:$0xe]
      %v2537 = vld [vmem:[%s1587 + $0x6c] sm:$0xe]
      %v2538 = vld [vmem:[%s1587 + $0x78] sm:$0xe]
      %v2539 = vld [vmem:[%s1587 + $0x84] sm:$0xe]
      %v2540 = vld [vmem:[%s1587 + $0x90] sm:$0xe]
      %v2541 = vld [vmem:[%s1587 + $0x9c] sm:$0xe]
      %v2542 = vld [vmem:[%s1587 + $0xa8] sm:$0xe]
      %v2543 = vld [vmem:[%s1587 + $0xb4] sm:$0xe]
      %v2592 = vrot.slane %v2528, 5
      %v2593 = vrot.slane %v2592, 4
      %v2594 = vrot.slane %v1875, 5
      %v2595 = vsel %vm1252, %v2593, %v2594
      %v2596 = vrot.slane %v2594, 4
      %v2597 = vrot.slane %v1876, 5
      %v2598 = vsel %vm1252, %v2596, %v2597
      %v2599 = vrot.slane %v2529, 5
      %v2600 = vrot.slane %v2599, 4
      %v2601 = vrot.slane %v1878, 5
      %v2602 = vsel %vm1252, %v2600, %v2601
      %v2603 = vrot.slane %v2601, 4
      %v2604 = vrot.slane %v1879, 5
      %v2605 = vsel %vm1252, %v2603, %v2604
      %v2606 = vrot.slane %v2530, 5
      %v2607 = vrot.slane %v2606, 4
      %v2608 = vrot.slane %v1881, 5
      %v2609 = vsel %vm1252, %v2607, %v2608
      %v2610 = vrot.slane %v2608, 4
      %v2611 = vrot.slane %v1882, 5
      %v2612 = vsel %vm1252, %v2610, %v2611
      %v2613 = vrot.slane %v2531, 5
      %v2614 = vrot.slane %v2613, 4
      %v2615 = vrot.slane %v1884, 5
      %v2616 = vsel %vm1252, %v2614, %v2615
      %v2617 = vrot.slane %v2615, 4
      %v2618 = vrot.slane %v1885, 5
      %v2619 = vsel %vm1252, %v2617, %v2618
      %v2620 = vrot.slane %v2532, 5
      %v2621 = vrot.slane %v2620, 4
      %v2622 = vrot.slane %v1887, 5
      %v2623 = vsel %vm1252, %v2621, %v2622
      %v2624 = vrot.slane %v2622, 4
      %v2625 = vrot.slane %v1888, 5
      %v2626 = vsel %vm1252, %v2624, %v2625
      %v2627 = vrot.slane %v2533, 5
      %v2628 = vrot.slane %v2627, 4
      %v2629 = vrot.slane %v1890, 5
      %v2630 = vsel %vm1252, %v2628, %v2629
      %v2631 = vrot.slane %v2629, 4
      %v2632 = vrot.slane %v1891, 5
      %v2633 = vsel %vm1252, %v2631, %v2632
      %v2634 = vrot.slane %v2534, 5
      %v2635 = vrot.slane %v2634, 4
      %v2636 = vrot.slane %v1893, 5
      %v2637 = vsel %vm1252, %v2635, %v2636
      %v2638 = vrot.slane %v2636, 4
      %v2639 = vrot.slane %v1894, 5
      %v2640 = vsel %vm1252, %v2638, %v2639
      %v2641 = vrot.slane %v2535, 5
      %v2642 = vrot.slane %v2641, 4
      %v2643 = vrot.slane %v1896, 5
      %v2644 = vsel %vm1252, %v2642, %v2643
      %v2645 = vrot.slane %v2643, 4
      %v2646 = vrot.slane %v1897, 5
      %v2647 = vsel %vm1252, %v2645, %v2646
      %v2648 = vrot.slane %v2536, 5
      %v2649 = vrot.slane %v2648, 4
      %v2650 = vrot.slane %v1899, 5
      %v2651 = vsel %vm1252, %v2649, %v2650
      %v2652 = vrot.slane %v2650, 4
      %v2653 = vrot.slane %v1900, 5
      %v2654 = vsel %vm1252, %v2652, %v2653
      %v2655 = vrot.slane %v2537, 5
      %v2656 = vrot.slane %v2655, 4
      %v2657 = vrot.slane %v1902, 5
      %v2658 = vsel %vm1252, %v2656, %v2657
      %v2659 = vrot.slane %v2657, 4
      %v2660 = vrot.slane %v1903, 5
      %v2661 = vsel %vm1252, %v2659, %v2660
      %v2662 = vrot.slane %v2538, 5
      %v2663 = vrot.slane %v2662, 4
      %v2664 = vrot.slane %v1905, 5
      %v2665 = vsel %vm1252, %v2663, %v2664
      %v2666 = vrot.slane %v2664, 4
      %v2667 = vrot.slane %v1906, 5
      %v2668 = vsel %vm1252, %v2666, %v2667
      %v2669 = vrot.slane %v2539, 5
      %v2670 = vrot.slane %v2669, 4
      %v2671 = vrot.slane %v1908, 5
      %v2672 = vsel %vm1252, %v2670, %v2671
      %v2673 = vrot.slane %v2671, 4
      %v2674 = vrot.slane %v1909, 5
      %v2675 = vsel %vm1252, %v2673, %v2674
      %v2676 = vrot.slane %v2540, 5
      %v2677 = vrot.slane %v2676, 4
      %v2678 = vrot.slane %v1911, 5
      %v2679 = vsel %vm1252, %v2677, %v2678
      %v2680 = vrot.slane %v2678, 4
      %v2681 = vrot.slane %v1912, 5
      %v2682 = vsel %vm1252, %v2680, %v2681
      %v2683 = vrot.slane %v2541, 5
      %v2684 = vrot.slane %v2683, 4
      %v2685 = vrot.slane %v1914, 5
      %v2686 = vsel %vm1252, %v2684, %v2685
      %v2687 = vrot.slane %v2685, 4
      %v2688 = vrot.slane %v1915, 5
      %v2689 = vsel %vm1252, %v2687, %v2688
      %v2690 = vrot.slane %v2542, 5
      %v2691 = vrot.slane %v2690, 4
      %v2692 = vrot.slane %v1917, 5
      %v2693 = vsel %vm1252, %v2691, %v2692
      %v2694 = vrot.slane %v2692, 4
      %v2695 = vrot.slane %v1918, 5
      %v2696 = vsel %vm1252, %v2694, %v2695
      %v2697 = vrot.slane %v2543, 5
      %v2698 = vrot.slane %v2697, 4
      %v2699 = vrot.slane %v1920, 5
      %v2700 = vsel %vm1252, %v2698, %v2699
      %v2701 = vrot.slane %v2699, 4
      %v2702 = vrot.slane %v1921, 5
      %v2703 = vsel %vm1252, %v2701, %v2702
      %s2704 = scalar_lea.vmem %s329, 10
      %v2705 = vld [vmem:[%s2704] sm:$0x3]
      %v2706 = vunpack.c.l.b16 %v2595
      %v2707 = vunpack.c.l.b16 %v2598
      %v2708 = vunpack.c.l.b16 %v2602
      %v2709 = vunpack.c.l.b16 %v2605
      %v2710 = vunpack.c.l.b16 %v2609
      %v2711 = vunpack.c.l.b16 %v2612
      %v2712 = vunpack.c.l.b16 %v2616
      %v2713 = vunpack.c.l.b16 %v2619
      %v2714 = vunpack.c.l.b16 %v2623
      %v2715 = vunpack.c.l.b16 %v2626
      %v2716 = vunpack.c.l.b16 %v2630
      %v2717 = vunpack.c.l.b16 %v2633
      %v2718 = vunpack.c.l.b16 %v2637
      %v2719 = vunpack.c.l.b16 %v2640
      %v2720 = vunpack.c.l.b16 %v2644
      %v2721 = vunpack.c.l.b16 %v2647
      %v2722 = vunpack.c.l.b16 %v2651
      %v2723 = vunpack.c.l.b16 %v2654
      %v2724 = vunpack.c.l.b16 %v2658
      %v2725 = vunpack.c.l.b16 %v2661
      %v2726 = vunpack.c.l.b16 %v2665
      %v2727 = vunpack.c.l.b16 %v2668
      %v2728 = vunpack.c.l.b16 %v2672
      %v2729 = vunpack.c.l.b16 %v2675
      %v2730 = vunpack.c.l.b16 %v2679
      %v2731 = vunpack.c.l.b16 %v2682
      %v2732 = vunpack.c.l.b16 %v2686
      %v2733 = vunpack.c.l.b16 %v2689
      %v2734 = vunpack.c.l.b16 %v2693
      %v2735 = vunpack.c.l.b16 %v2696
      %v2736 = vunpack.c.l.b16 %v2700
      %v2737 = vunpack.c.l.b16 %v2703
      %v2738 = vpack.c.b16 %v2707, %v2706
      %v2739 = vpack.c.b16 %v2709, %v2708
      %v2740 = vpack.c.b16 %v2711, %v2710
      %v2741 = vpack.c.b16 %v2713, %v2712
      %v2742 = vpack.c.b16 %v2715, %v2714
      %v2743 = vpack.c.b16 %v2717, %v2716
      %v2744 = vpack.c.b16 %v2719, %v2718
      %v2745 = vpack.c.b16 %v2721, %v2720
      %v2746 = vpack.c.b16 %v2723, %v2722
      %v2747 = vpack.c.b16 %v2725, %v2724
      %v2748 = vpack.c.b16 %v2727, %v2726
      %v2749 = vpack.c.b16 %v2729, %v2728
      %v2750 = vpack.c.b16 %v2731, %v2730
      %v2751 = vpack.c.b16 %v2733, %v2732
      %v2752 = vpack.c.b16 %v2735, %v2734
      %v2753 = vpack.c.b16 %v2737, %v2736
      %v2755 = vsel %vm840, %v2738, 0
      %v2758 = vsel %vm840, %v2739, 0
      %v2761 = vsel %vm840, %v2740, 0
      %v2764 = vsel %vm840, %v2741, 0
      %v2767 = vsel %vm840, %v2742, 0
      %v2770 = vsel %vm840, %v2743, 0
      %v2773 = vsel %vm840, %v2744, 0
      %v2776 = vsel %vm840, %v2745, 0
      %v2779 = vsel %vm840, %v2746, 0
      %v2782 = vsel %vm840, %v2747, 0
      %v2785 = vsel %vm840, %v2748, 0
      %v2788 = vsel %vm840, %v2749, 0
      %v2791 = vsel %vm840, %v2750, 0
      %v2794 = vsel %vm840, %v2751, 0
      %v2797 = vsel %vm840, %v2752, 0
      %v2800 = vsel %vm840, %v2753, 0
      %v2803 = vsel %vm889, %v2705, 0
      %2805 = vmatpush.bf16.msra.mxu0 0
      %2806 = vmatpush.bf16.msra.mxu0 0
      %2807 = vmatpush.bf16.msra.mxu0 0
      %2808 = vmatpush.bf16.msra.mxu0 0
      %2809 = vmatpush.bf16.msra.mxu0 0
      %2810 = vmatpush.bf16.msra.mxu0 0
      %2811 = vmatpush.bf16.msra.mxu0 0
      %2812 = vmatpush.bf16.msra.mxu0 %v2803
      %2813 = vmatmul.bf16.gmra.mxu0 %v2755
      %v2814 = vpop.f32.mrf.mxu0
      %v2815 = vadd.f32 0.0, %v2814
      %v2816 = vpop.f32.mrf.mxu0
      %v2817 = vadd.f32 0.0, %v2816
      %2818 = vmatmul.bf16.gmra.mxu0 %v2758
      %v2819 = vpop.f32.mrf.mxu0
      %v2820 = vadd.f32 0.0, %v2819
      %v2821 = vpop.f32.mrf.mxu0
      %v2822 = vadd.f32 0.0, %v2821
      %2823 = vmatmul.bf16.gmra.mxu0 %v2761
      %v2824 = vpop.f32.mrf.mxu0
      %v2825 = vadd.f32 0.0, %v2824
      %v2826 = vpop.f32.mrf.mxu0
      %v2827 = vadd.f32 0.0, %v2826
      %2828 = vmatmul.bf16.gmra.mxu0 %v2764
      %v2829 = vpop.f32.mrf.mxu0
      %v2830 = vadd.f32 0.0, %v2829
      %v2831 = vpop.f32.mrf.mxu0
      %v2832 = vadd.f32 0.0, %v2831
      %2833 = vmatmul.bf16.gmra.mxu0 %v2767
      %v2834 = vpop.f32.mrf.mxu0
      %v2835 = vadd.f32 0.0, %v2834
      %v2836 = vpop.f32.mrf.mxu0
      %v2837 = vadd.f32 0.0, %v2836
      %2838 = vmatmul.bf16.gmra.mxu0 %v2770
      %v2839 = vpop.f32.mrf.mxu0
      %v2840 = vadd.f32 0.0, %v2839
      %v2841 = vpop.f32.mrf.mxu0
      %v2842 = vadd.f32 0.0, %v2841
      %2843 = vmatmul.bf16.gmra.mxu0 %v2773
      %v2844 = vpop.f32.mrf.mxu0
      %v2845 = vadd.f32 0.0, %v2844
      %v2846 = vpop.f32.mrf.mxu0
      %v2847 = vadd.f32 0.0, %v2846
      %2848 = vmatmul.bf16.gmra.mxu0 %v2776
      %v2849 = vpop.f32.mrf.mxu0
      %v2850 = vadd.f32 0.0, %v2849
      %v2851 = vpop.f32.mrf.mxu0
      %v2852 = vadd.f32 0.0, %v2851
      %2853 = vmatmul.bf16.gmra.mxu0 %v2779
      %v2854 = vpop.f32.mrf.mxu0
      %v2855 = vadd.f32 0.0, %v2854
      %v2856 = vpop.f32.mrf.mxu0
      %v2857 = vadd.f32 0.0, %v2856
      %2858 = vmatmul.bf16.gmra.mxu0 %v2782
      %v2859 = vpop.f32.mrf.mxu0
      %v2860 = vadd.f32 0.0, %v2859
      %v2861 = vpop.f32.mrf.mxu0
      %v2862 = vadd.f32 0.0, %v2861
      %2863 = vmatmul.bf16.gmra.mxu0 %v2785
      %v2864 = vpop.f32.mrf.mxu0
      %v2865 = vadd.f32 0.0, %v2864
      %v2866 = vpop.f32.mrf.mxu0
      %v2867 = vadd.f32 0.0, %v2866
      %2868 = vmatmul.bf16.gmra.mxu0 %v2788
      %v2869 = vpop.f32.mrf.mxu0
      %v2870 = vadd.f32 0.0, %v2869
      %v2871 = vpop.f32.mrf.mxu0
      %v2872 = vadd.f32 0.0, %v2871
      %2873 = vmatmul.bf16.gmra.mxu0 %v2791
      %v2874 = vpop.f32.mrf.mxu0
      %v2875 = vadd.f32 0.0, %v2874
      %v2876 = vpop.f32.mrf.mxu0
      %v2877 = vadd.f32 0.0, %v2876
      %2878 = vmatmul.bf16.gmra.mxu0 %v2794
      %v2879 = vpop.f32.mrf.mxu0
      %v2880 = vadd.f32 0.0, %v2879
      %v2881 = vpop.f32.mrf.mxu0
      %v2882 = vadd.f32 0.0, %v2881
      %2883 = vmatmul.bf16.gmra.mxu0 %v2797
      %v2884 = vpop.f32.mrf.mxu0
      %v2885 = vadd.f32 0.0, %v2884
      %v2886 = vpop.f32.mrf.mxu0
      %v2887 = vadd.f32 0.0, %v2886
      %2888 = vmatmul.bf16.gmra.mxu0 %v2800
      %v2889 = vpop.f32.mrf.mxu0
      %v2890 = vadd.f32 0.0, %v2889
      %v2891 = vpop.f32.mrf.mxu0
      %v2892 = vadd.f32 0.0, %v2891
      %2893 = vdwg.mxu0
      %v2894 = vadd.f32 %v2496, %v2815
      %v2895 = vadd.f32 %v2497, %v2817
      %v2896 = vadd.f32 %v2498, %v2820
      %v2897 = vadd.f32 %v2499, %v2822
      %v2898 = vadd.f32 %v2500, %v2825
      %v2899 = vadd.f32 %v2501, %v2827
      %v2900 = vadd.f32 %v2502, %v2830
      %v2901 = vadd.f32 %v2503, %v2832
      %v2902 = vadd.f32 %v2504, %v2835
      %v2903 = vadd.f32 %v2505, %v2837
      %v2904 = vadd.f32 %v2506, %v2840
      %v2905 = vadd.f32 %v2507, %v2842
      %v2906 = vadd.f32 %v2508, %v2845
      %v2907 = vadd.f32 %v2509, %v2847
      %v2908 = vadd.f32 %v2510, %v2850
      %v2909 = vadd.f32 %v2511, %v2852
      %v2910 = vadd.f32 %v2512, %v2855
      %v2911 = vadd.f32 %v2513, %v2857
      %v2912 = vadd.f32 %v2514, %v2860
      %v2913 = vadd.f32 %v2515, %v2862
      %v2914 = vadd.f32 %v2516, %v2865
      %v2915 = vadd.f32 %v2517, %v2867
      %v2916 = vadd.f32 %v2518, %v2870
      %v2917 = vadd.f32 %v2519, %v2872
      %v2918 = vadd.f32 %v2520, %v2875
      %v2919 = vadd.f32 %v2521, %v2877
      %v2920 = vadd.f32 %v2522, %v2880
      %v2921 = vadd.f32 %v2523, %v2882
      %v2922 = vadd.f32 %v2524, %v2885
      %v2923 = vadd.f32 %v2525, %v2887
      %v2924 = vadd.f32 %v2526, %v2890
      %v2925 = vadd.f32 %v2527, %v2892
      %s2926 = scalar_lea.vmem %s325, 24
      %v2927 = vld [vmem:[%s2926] sm:$0xf]
      %v2928 = vld [vmem:[%s2926 + $0x4] sm:$0xf]
      %v2929 = vld [vmem:[%s2926 + $0xc] sm:$0xf]
      %v2930 = vld [vmem:[%s2926 + $0x10] sm:$0xf]
      %v2931 = vld [vmem:[%s2926 + $0x18] sm:$0xf]
      %v2932 = vld [vmem:[%s2926 + $0x1c] sm:$0xf]
      %v2933 = vld [vmem:[%s2926 + $0x24] sm:$0xf]
      %v2934 = vld [vmem:[%s2926 + $0x28] sm:$0xf]
      %v2935 = vld [vmem:[%s2926 + $0x30] sm:$0xf]
      %v2936 = vld [vmem:[%s2926 + $0x34] sm:$0xf]
      %v2937 = vld [vmem:[%s2926 + $0x3c] sm:$0xf]
      %v2938 = vld [vmem:[%s2926 + $0x40] sm:$0xf]
      %v2939 = vld [vmem:[%s2926 + $0x48] sm:$0xf]
      %v2940 = vld [vmem:[%s2926 + $0x4c] sm:$0xf]
      %v2941 = vld [vmem:[%s2926 + $0x54] sm:$0xf]
      %v2942 = vld [vmem:[%s2926 + $0x58] sm:$0xf]
      %v2943 = vld [vmem:[%s2926 + $0x60] sm:$0xf]
      %v2944 = vld [vmem:[%s2926 + $0x64] sm:$0xf]
      %v2945 = vld [vmem:[%s2926 + $0x6c] sm:$0xf]
      %v2946 = vld [vmem:[%s2926 + $0x70] sm:$0xf]
      %v2947 = vld [vmem:[%s2926 + $0x78] sm:$0xf]
      %v2948 = vld [vmem:[%s2926 + $0x7c] sm:$0xf]
      %v2949 = vld [vmem:[%s2926 + $0x84] sm:$0xf]
      %v2950 = vld [vmem:[%s2926 + $0x88] sm:$0xf]
      %v2951 = vld [vmem:[%s2926 + $0x90] sm:$0xf]
      %v2952 = vld [vmem:[%s2926 + $0x94] sm:$0xf]
      %v2953 = vld [vmem:[%s2926 + $0x9c] sm:$0xf]
      %v2954 = vld [vmem:[%s2926 + $0xa0] sm:$0xf]
      %v2955 = vld [vmem:[%s2926 + $0xa8] sm:$0xf]
      %v2956 = vld [vmem:[%s2926 + $0xac] sm:$0xf]
      %v2957 = vld [vmem:[%s2926 + $0xb4] sm:$0xf]
      %v2958 = vld [vmem:[%s2926 + $0xb8] sm:$0xf]
      %s2959 = scalar_lea.vmem %s329, 12
      %v2960 = vld [vmem:[%s2959] sm:$0x3]
      %v2993 = vunpack.c.l.b16 %v2927
      %v2994 = vunpack.c.l.b16 %v2928
      %v2995 = vunpack.c.l.b16 %v2929
      %v2996 = vunpack.c.l.b16 %v2930
      %v2997 = vunpack.c.l.b16 %v2931
      %v2998 = vunpack.c.l.b16 %v2932
      %v2999 = vunpack.c.l.b16 %v2933
      %v3000 = vunpack.c.l.b16 %v2934
      %v3001 = vunpack.c.l.b16 %v2935
      %v3002 = vunpack.c.l.b16 %v2936
      %v3003 = vunpack.c.l.b16 %v2937
      %v3004 = vunpack.c.l.b16 %v2938
      %v3005 = vunpack.c.l.b16 %v2939
      %v3006 = vunpack.c.l.b16 %v2940
      %v3007 = vunpack.c.l.b16 %v2941
      %v3008 = vunpack.c.l.b16 %v2942
      %v3009 = vunpack.c.l.b16 %v2943
      %v3010 = vunpack.c.l.b16 %v2944
      %v3011 = vunpack.c.l.b16 %v2945
      %v3012 = vunpack.c.l.b16 %v2946
      %v3013 = vunpack.c.l.b16 %v2947
      %v3014 = vunpack.c.l.b16 %v2948
      %v3015 = vunpack.c.l.b16 %v2949
      %v3016 = vunpack.c.l.b16 %v2950
      %v3017 = vunpack.c.l.b16 %v2951
      %v3018 = vunpack.c.l.b16 %v2952
      %v3019 = vunpack.c.l.b16 %v2953
      %v3020 = vunpack.c.l.b16 %v2954
      %v3021 = vunpack.c.l.b16 %v2955
      %v3022 = vunpack.c.l.b16 %v2956
      %v3023 = vunpack.c.l.b16 %v2957
      %v3024 = vunpack.c.l.b16 %v2958
      %v3025 = vpack.c.b16 %v2994, %v2993
      %v3026 = vpack.c.b16 %v2996, %v2995
      %v3027 = vpack.c.b16 %v2998, %v2997
      %v3028 = vpack.c.b16 %v3000, %v2999
      %v3029 = vpack.c.b16 %v3002, %v3001
      %v3030 = vpack.c.b16 %v3004, %v3003
      %v3031 = vpack.c.b16 %v3006, %v3005
      %v3032 = vpack.c.b16 %v3008, %v3007
      %v3033 = vpack.c.b16 %v3010, %v3009
      %v3034 = vpack.c.b16 %v3012, %v3011
      %v3035 = vpack.c.b16 %v3014, %v3013
      %v3036 = vpack.c.b16 %v3016, %v3015
      %v3037 = vpack.c.b16 %v3018, %v3017
      %v3038 = vpack.c.b16 %v3020, %v3019
      %v3039 = vpack.c.b16 %v3022, %v3021
      %v3040 = vpack.c.b16 %v3024, %v3023
      %v3042 = vsel %vm840, %v3025, 0
      %v3045 = vsel %vm840, %v3026, 0
      %v3048 = vsel %vm840, %v3027, 0
      %v3051 = vsel %vm840, %v3028, 0
      %v3054 = vsel %vm840, %v3029, 0
      %v3057 = vsel %vm840, %v3030, 0
      %v3060 = vsel %vm840, %v3031, 0
      %v3063 = vsel %vm840, %v3032, 0
      %v3066 = vsel %vm840, %v3033, 0
      %v3069 = vsel %vm840, %v3034, 0
      %v3072 = vsel %vm840, %v3035, 0
      %v3075 = vsel %vm840, %v3036, 0
      %v3078 = vsel %vm840, %v3037, 0
      %v3081 = vsel %vm840, %v3038, 0
      %v3084 = vsel %vm840, %v3039, 0
      %v3087 = vsel %vm840, %v3040, 0
      %v3090 = vsel %vm889, %v2960, 0
      %3092 = vmatpush.bf16.msra.mxu0 0
      %3093 = vmatpush.bf16.msra.mxu0 0
      %3094 = vmatpush.bf16.msra.mxu0 0
      %3095 = vmatpush.bf16.msra.mxu0 0
      %3096 = vmatpush.bf16.msra.mxu0 0
      %3097 = vmatpush.bf16.msra.mxu0 0
      %3098 = vmatpush.bf16.msra.mxu0 0
      %3099 = vmatpush.bf16.msra.mxu0 %v3090
      %3100 = vmatmul.bf16.gmra.mxu0 %v3042
      %v3101 = vpop.f32.mrf.mxu0
      %v3102 = vadd.f32 0.0, %v3101
      %v3103 = vpop.f32.mrf.mxu0
      %v3104 = vadd.f32 0.0, %v3103
      %3105 = vmatmul.bf16.gmra.mxu0 %v3045
      %v3106 = vpop.f32.mrf.mxu0
      %v3107 = vadd.f32 0.0, %v3106
      %v3108 = vpop.f32.mrf.mxu0
      %v3109 = vadd.f32 0.0, %v3108
      %3110 = vmatmul.bf16.gmra.mxu0 %v3048
      %v3111 = vpop.f32.mrf.mxu0
      %v3112 = vadd.f32 0.0, %v3111
      %v3113 = vpop.f32.mrf.mxu0
      %v3114 = vadd.f32 0.0, %v3113
      %3115 = vmatmul.bf16.gmra.mxu0 %v3051
      %v3116 = vpop.f32.mrf.mxu0
      %v3117 = vadd.f32 0.0, %v3116
      %v3118 = vpop.f32.mrf.mxu0
      %v3119 = vadd.f32 0.0, %v3118
      %3120 = vmatmul.bf16.gmra.mxu0 %v3054
      %v3121 = vpop.f32.mrf.mxu0
      %v3122 = vadd.f32 0.0, %v3121
      %v3123 = vpop.f32.mrf.mxu0
      %v3124 = vadd.f32 0.0, %v3123
      %3125 = vmatmul.bf16.gmra.mxu0 %v3057
      %v3126 = vpop.f32.mrf.mxu0
      %v3127 = vadd.f32 0.0, %v3126
      %v3128 = vpop.f32.mrf.mxu0
      %v3129 = vadd.f32 0.0, %v3128
      %3130 = vmatmul.bf16.gmra.mxu0 %v3060
      %v3131 = vpop.f32.mrf.mxu0
      %v3132 = vadd.f32 0.0, %v3131
      %v3133 = vpop.f32.mrf.mxu0
      %v3134 = vadd.f32 0.0, %v3133
      %3135 = vmatmul.bf16.gmra.mxu0 %v3063
      %v3136 = vpop.f32.mrf.mxu0
      %v3137 = vadd.f32 0.0, %v3136
      %v3138 = vpop.f32.mrf.mxu0
      %v3139 = vadd.f32 0.0, %v3138
      %3140 = vmatmul.bf16.gmra.mxu0 %v3066
      %v3141 = vpop.f32.mrf.mxu0
      %v3142 = vadd.f32 0.0, %v3141
      %v3143 = vpop.f32.mrf.mxu0
      %v3144 = vadd.f32 0.0, %v3143
      %3145 = vmatmul.bf16.gmra.mxu0 %v3069
      %v3146 = vpop.f32.mrf.mxu0
      %v3147 = vadd.f32 0.0, %v3146
      %v3148 = vpop.f32.mrf.mxu0
      %v3149 = vadd.f32 0.0, %v3148
      %3150 = vmatmul.bf16.gmra.mxu0 %v3072
      %v3151 = vpop.f32.mrf.mxu0
      %v3152 = vadd.f32 0.0, %v3151
      %v3153 = vpop.f32.mrf.mxu0
      %v3154 = vadd.f32 0.0, %v3153
      %3155 = vmatmul.bf16.gmra.mxu0 %v3075
      %v3156 = vpop.f32.mrf.mxu0
      %v3157 = vadd.f32 0.0, %v3156
      %v3158 = vpop.f32.mrf.mxu0
      %v3159 = vadd.f32 0.0, %v3158
      %3160 = vmatmul.bf16.gmra.mxu0 %v3078
      %v3161 = vpop.f32.mrf.mxu0
      %v3162 = vadd.f32 0.0, %v3161
      %v3163 = vpop.f32.mrf.mxu0
      %v3164 = vadd.f32 0.0, %v3163
      %3165 = vmatmul.bf16.gmra.mxu0 %v3081
      %v3166 = vpop.f32.mrf.mxu0
      %v3167 = vadd.f32 0.0, %v3166
      %v3168 = vpop.f32.mrf.mxu0
      %v3169 = vadd.f32 0.0, %v3168
      %3170 = vmatmul.bf16.gmra.mxu0 %v3084
      %v3171 = vpop.f32.mrf.mxu0
      %v3172 = vadd.f32 0.0, %v3171
      %v3173 = vpop.f32.mrf.mxu0
      %v3174 = vadd.f32 0.0, %v3173
      %3175 = vmatmul.bf16.gmra.mxu0 %v3087
      %v3176 = vpop.f32.mrf.mxu0
      %v3177 = vadd.f32 0.0, %v3176
      %v3178 = vpop.f32.mrf.mxu0
      %v3179 = vadd.f32 0.0, %v3178
      %3180 = vdwg.mxu0
      %v3181 = vadd.f32 %v2894, %v3102
      %v3182 = vadd.f32 %v2895, %v3104
      %v3183 = vadd.f32 %v2896, %v3107
      %v3184 = vadd.f32 %v2897, %v3109
      %v3185 = vadd.f32 %v2898, %v3112
      %v3186 = vadd.f32 %v2899, %v3114
      %v3187 = vadd.f32 %v2900, %v3117
      %v3188 = vadd.f32 %v2901, %v3119
      %v3189 = vadd.f32 %v2902, %v3122
      %v3190 = vadd.f32 %v2903, %v3124
      %v3191 = vadd.f32 %v2904, %v3127
      %v3192 = vadd.f32 %v2905, %v3129
      %v3193 = vadd.f32 %v2906, %v3132
      %v3194 = vadd.f32 %v2907, %v3134
      %v3195 = vadd.f32 %v2908, %v3137
      %v3196 = vadd.f32 %v2909, %v3139
      %v3197 = vadd.f32 %v2910, %v3142
      %v3198 = vadd.f32 %v2911, %v3144
      %v3199 = vadd.f32 %v2912, %v3147
      %v3200 = vadd.f32 %v2913, %v3149
      %v3201 = vadd.f32 %v2914, %v3152
      %v3202 = vadd.f32 %v2915, %v3154
      %v3203 = vadd.f32 %v2916, %v3157
      %v3204 = vadd.f32 %v2917, %v3159
      %v3205 = vadd.f32 %v2918, %v3162
      %v3206 = vadd.f32 %v2919, %v3164
      %v3207 = vadd.f32 %v2920, %v3167
      %v3208 = vadd.f32 %v2921, %v3169
      %v3209 = vadd.f32 %v2922, %v3172
      %v3210 = vadd.f32 %v2923, %v3174
      %v3211 = vadd.f32 %v2924, %v3177
      %v3212 = vadd.f32 %v2925, %v3179
      %v3213 = vld [vmem:[%s2926] sm:$0xf]
      %v3214 = vld [vmem:[%s2926 + $0x4] sm:$0xf]
      %v3215 = vld [vmem:[%s2926 + $0x8] sm:$0x1]
      %v3216 = vld [vmem:[%s2926 + $0xc] sm:$0xf]
      %v3217 = vld [vmem:[%s2926 + $0x10] sm:$0xf]
      %v3218 = vld [vmem:[%s2926 + $0x14] sm:$0x1]
      %v3219 = vld [vmem:[%s2926 + $0x18] sm:$0xf]
      %v3220 = vld [vmem:[%s2926 + $0x1c] sm:$0xf]
      %v3221 = vld [vmem:[%s2926 + $0x20] sm:$0x1]
      %v3222 = vld [vmem:[%s2926 + $0x24] sm:$0xf]
      %v3223 = vld [vmem:[%s2926 + $0x28] sm:$0xf]
      %v3224 = vld [vmem:[%s2926 + $0x2c] sm:$0x1]
      %v3225 = vld [vmem:[%s2926 + $0x30] sm:$0xf]
      %v3226 = vld [vmem:[%s2926 + $0x34] sm:$0xf]
      %v3227 = vld [vmem:[%s2926 + $0x38] sm:$0x1]
      %v3228 = vld [vmem:[%s2926 + $0x3c] sm:$0xf]
      %v3229 = vld [vmem:[%s2926 + $0x40] sm:$0xf]
      %v3230 = vld [vmem:[%s2926 + $0x44] sm:$0x1]
      %v3231 = vld [vmem:[%s2926 + $0x48] sm:$0xf]
      %v3232 = vld [vmem:[%s2926 + $0x4c] sm:$0xf]
      %v3233 = vld [vmem:[%s2926 + $0x50] sm:$0x1]
      %v3234 = vld [vmem:[%s2926 + $0x54] sm:$0xf]
      %v3235 = vld [vmem:[%s2926 + $0x58] sm:$0xf]
      %v3236 = vld [vmem:[%s2926 + $0x5c] sm:$0x1]
      %v3237 = vld [vmem:[%s2926 + $0x60] sm:$0xf]
      %v3238 = vld [vmem:[%s2926 + $0x64] sm:$0xf]
      %v3239 = vld [vmem:[%s2926 + $0x68] sm:$0x1]
      %v3240 = vld [vmem:[%s2926 + $0x6c] sm:$0xf]
      %v3241 = vld [vmem:[%s2926 + $0x70] sm:$0xf]
      %v3242 = vld [vmem:[%s2926 + $0x74] sm:$0x1]
      %v3243 = vld [vmem:[%s2926 + $0x78] sm:$0xf]
      %v3244 = vld [vmem:[%s2926 + $0x7c] sm:$0xf]
      %v3245 = vld [vmem:[%s2926 + $0x80] sm:$0x1]
      %v3246 = vld [vmem:[%s2926 + $0x84] sm:$0xf]
      %v3247 = vld [vmem:[%s2926 + $0x88] sm:$0xf]
      %v3248 = vld [vmem:[%s2926 + $0x8c] sm:$0x1]
      %v3249 = vld [vmem:[%s2926 + $0x90] sm:$0xf]
      %v3250 = vld [vmem:[%s2926 + $0x94] sm:$0xf]
      %v3251 = vld [vmem:[%s2926 + $0x98] sm:$0x1]
      %v3252 = vld [vmem:[%s2926 + $0x9c] sm:$0xf]
      %v3253 = vld [vmem:[%s2926 + $0xa0] sm:$0xf]
      %v3254 = vld [vmem:[%s2926 + $0xa4] sm:$0x1]
      %v3255 = vld [vmem:[%s2926 + $0xa8] sm:$0xf]
      %v3256 = vld [vmem:[%s2926 + $0xac] sm:$0xf]
      %v3257 = vld [vmem:[%s2926 + $0xb0] sm:$0x1]
      %v3258 = vld [vmem:[%s2926 + $0xb4] sm:$0xf]
      %v3259 = vld [vmem:[%s2926 + $0xb8] sm:$0xf]
      %v3260 = vld [vmem:[%s2926 + $0xbc] sm:$0x1]
      %v3262 = vshrl.u32 %v3213, 16
      %v3264 = vrot.slane %v3262, 4
      %v3265 = vshll.u32 %v3213, 16
      %v3267 = vrot.slane %v3265, 5
      %v3268 = vor.u32 %v3264, %v3267
      %v3269 = vrot.slane %v3268, 4
      %v3271 = vshll.u32 %v3214, 16
      %v3273 = vrot.slane %v3271, 5
      %v3274 = vsel %vm405, %v3269, %v3273
      %v3275 = vshrl.u32 %v3214, 16
      %v3277 = vrot.slane %v3275, 4
      %v3278 = vor.u32 %v3277, %v3273
      %v3279 = vrot.slane %v3278, 4
      %v3281 = vshll.u32 %v3215, 16
      %v3283 = vrot.slane %v3281, 5
      %v3284 = vsel %vm405, %v3279, %v3283
      %v3286 = vshrl.u32 %v3216, 16
      %v3288 = vrot.slane %v3286, 4
      %v3289 = vshll.u32 %v3216, 16
      %v3291 = vrot.slane %v3289, 5
      %v3292 = vor.u32 %v3288, %v3291
      %v3293 = vrot.slane %v3292, 4
      %v3295 = vshll.u32 %v3217, 16
      %v3297 = vrot.slane %v3295, 5
      %v3298 = vsel %vm405, %v3293, %v3297
      %v3299 = vshrl.u32 %v3217, 16
      %v3301 = vrot.slane %v3299, 4
      %v3302 = vor.u32 %v3301, %v3297
      %v3303 = vrot.slane %v3302, 4
      %v3305 = vshll.u32 %v3218, 16
      %v3307 = vrot.slane %v3305, 5
      %v3308 = vsel %vm405, %v3303, %v3307
      %v3310 = vshrl.u32 %v3219, 16
      %v3312 = vrot.slane %v3310, 4
      %v3313 = vshll.u32 %v3219, 16
      %v3315 = vrot.slane %v3313, 5
      %v3316 = vor.u32 %v3312, %v3315
      %v3317 = vrot.slane %v3316, 4
      %v3319 = vshll.u32 %v3220, 16
      %v3321 = vrot.slane %v3319, 5
      %v3322 = vsel %vm405, %v3317, %v3321
      %v3323 = vshrl.u32 %v3220, 16
      %v3325 = vrot.slane %v3323, 4
      %v3326 = vor.u32 %v3325, %v3321
      %v3327 = vrot.slane %v3326, 4
      %v3329 = vshll.u32 %v3221, 16
      %v3331 = vrot.slane %v3329, 5
      %v3332 = vsel %vm405, %v3327, %v3331
      %v3334 = vshrl.u32 %v3222, 16
      %v3336 = vrot.slane %v3334, 4
      %v3337 = vshll.u32 %v3222, 16
      %v3339 = vrot.slane %v3337, 5
      %v3340 = vor.u32 %v3336, %v3339
      %v3341 = vrot.slane %v3340, 4
      %v3343 = vshll.u32 %v3223, 16
      %v3345 = vrot.slane %v3343, 5
      %v3346 = vsel %vm405, %v3341, %v3345
      %v3347 = vshrl.u32 %v3223, 16
      %v3349 = vrot.slane %v3347, 4
      %v3350 = vor.u32 %v3349, %v3345
      %v3351 = vrot.slane %v3350, 4
      %v3353 = vshll.u32 %v3224, 16
      %v3355 = vrot.slane %v3353, 5
      %v3356 = vsel %vm405, %v3351, %v3355
      %v3358 = vshrl.u32 %v3225, 16
      %v3360 = vrot.slane %v3358, 4
      %v3361 = vshll.u32 %v3225, 16
      %v3363 = vrot.slane %v3361, 5
      %v3364 = vor.u32 %v3360, %v3363
      %v3365 = vrot.slane %v3364, 4
      %v3367 = vshll.u32 %v3226, 16
      %v3369 = vrot.slane %v3367, 5
      %v3370 = vsel %vm405, %v3365, %v3369
      %v3371 = vshrl.u32 %v3226, 16
      %v3373 = vrot.slane %v3371, 4
      %v3374 = vor.u32 %v3373, %v3369
      %v3375 = vrot.slane %v3374, 4
      %v3377 = vshll.u32 %v3227, 16
      %v3379 = vrot.slane %v3377, 5
      %v3380 = vsel %vm405, %v3375, %v3379
      %v3382 = vshrl.u32 %v3228, 16
      %v3384 = vrot.slane %v3382, 4
      %v3385 = vshll.u32 %v3228, 16
      %v3387 = vrot.slane %v3385, 5
      %v3388 = vor.u32 %v3384, %v3387
      %v3389 = vrot.slane %v3388, 4
      %v3391 = vshll.u32 %v3229, 16
      %v3393 = vrot.slane %v3391, 5
      %v3394 = vsel %vm405, %v3389, %v3393
      %v3395 = vshrl.u32 %v3229, 16
      %v3397 = vrot.slane %v3395, 4
      %v3398 = vor.u32 %v3397, %v3393
      %v3399 = vrot.slane %v3398, 4
      %v3401 = vshll.u32 %v3230, 16
      %v3403 = vrot.slane %v3401, 5
      %v3404 = vsel %vm405, %v3399, %v3403
      %v3406 = vshrl.u32 %v3231, 16
      %v3408 = vrot.slane %v3406, 4
      %v3409 = vshll.u32 %v3231, 16
      %v3411 = vrot.slane %v3409, 5
      %v3412 = vor.u32 %v3408, %v3411
      %v3413 = vrot.slane %v3412, 4
      %v3415 = vshll.u32 %v3232, 16
      %v3417 = vrot.slane %v3415, 5
      %v3418 = vsel %vm405, %v3413, %v3417
      %v3419 = vshrl.u32 %v3232, 16
      %v3421 = vrot.slane %v3419, 4
      %v3422 = vor.u32 %v3421, %v3417
      %v3423 = vrot.slane %v3422, 4
      %v3425 = vshll.u32 %v3233, 16
      %v3427 = vrot.slane %v3425, 5
      %v3428 = vsel %vm405, %v3423, %v3427
      %v3430 = vshrl.u32 %v3234, 16
      %v3432 = vrot.slane %v3430, 4
      %v3433 = vshll.u32 %v3234, 16
      %v3435 = vrot.slane %v3433, 5
      %v3436 = vor.u32 %v3432, %v3435
      %v3437 = vrot.slane %v3436, 4
      %v3439 = vshll.u32 %v3235, 16
      %v3441 = vrot.slane %v3439, 5
      %v3442 = vsel %vm405, %v3437, %v3441
      %v3443 = vshrl.u32 %v3235, 16
      %v3445 = vrot.slane %v3443, 4
      %v3446 = vor.u32 %v3445, %v3441
      %v3447 = vrot.slane %v3446, 4
      %v3449 = vshll.u32 %v3236, 16
      %v3451 = vrot.slane %v3449, 5
      %v3452 = vsel %vm405, %v3447, %v3451
      %v3454 = vshrl.u32 %v3237, 16
      %v3456 = vrot.slane %v3454, 4
      %v3457 = vshll.u32 %v3237, 16
      %v3459 = vrot.slane %v3457, 5
      %v3460 = vor.u32 %v3456, %v3459
      %v3461 = vrot.slane %v3460, 4
      %v3463 = vshll.u32 %v3238, 16
      %v3465 = vrot.slane %v3463, 5
      %v3466 = vsel %vm405, %v3461, %v3465
      %v3467 = vshrl.u32 %v3238, 16
      %v3469 = vrot.slane %v3467, 4
      %v3470 = vor.u32 %v3469, %v3465
      %v3471 = vrot.slane %v3470, 4
      %v3473 = vshll.u32 %v3239, 16
      %v3475 = vrot.slane %v3473, 5
      %v3476 = vsel %vm405, %v3471, %v3475
      %v3478 = vshrl.u32 %v3240, 16
      %v3480 = vrot.slane %v3478, 4
      %v3481 = vshll.u32 %v3240, 16
      %v3483 = vrot.slane %v3481, 5
      %v3484 = vor.u32 %v3480, %v3483
      %v3485 = vrot.slane %v3484, 4
      %v3487 = vshll.u32 %v3241, 16
      %v3489 = vrot.slane %v3487, 5
      %v3490 = vsel %vm405, %v3485, %v3489
      %v3491 = vshrl.u32 %v3241, 16
      %v3493 = vrot.slane %v3491, 4
      %v3494 = vor.u32 %v3493, %v3489
      %v3495 = vrot.slane %v3494, 4
      %v3497 = vshll.u32 %v3242, 16
      %v3499 = vrot.slane %v3497, 5
      %v3500 = vsel %vm405, %v3495, %v3499
      %v3502 = vshrl.u32 %v3243, 16
      %v3504 = vrot.slane %v3502, 4
      %v3505 = vshll.u32 %v3243, 16
      %v3507 = vrot.slane %v3505, 5
      %v3508 = vor.u32 %v3504, %v3507
      %v3509 = vrot.slane %v3508, 4
      %v3511 = vshll.u32 %v3244, 16
      %v3513 = vrot.slane %v3511, 5
      %v3514 = vsel %vm405, %v3509, %v3513
      %v3515 = vshrl.u32 %v3244, 16
      %v3517 = vrot.slane %v3515, 4
      %v3518 = vor.u32 %v3517, %v3513
      %v3519 = vrot.slane %v3518, 4
      %v3521 = vshll.u32 %v3245, 16
      %v3523 = vrot.slane %v3521, 5
      %v3524 = vsel %vm405, %v3519, %v3523
      %v3526 = vshrl.u32 %v3246, 16
      %v3528 = vrot.slane %v3526, 4
      %v3529 = vshll.u32 %v3246, 16
      %v3531 = vrot.slane %v3529, 5
      %v3532 = vor.u32 %v3528, %v3531
      %v3533 = vrot.slane %v3532, 4
      %v3535 = vshll.u32 %v3247, 16
      %v3537 = vrot.slane %v3535, 5
      %v3538 = vsel %vm405, %v3533, %v3537
      %v3539 = vshrl.u32 %v3247, 16
      %v3541 = vrot.slane %v3539, 4
      %v3542 = vor.u32 %v3541, %v3537
      %v3543 = vrot.slane %v3542, 4
      %v3545 = vshll.u32 %v3248, 16
      %v3547 = vrot.slane %v3545, 5
      %v3548 = vsel %vm405, %v3543, %v3547
      %v3550 = vshrl.u32 %v3249, 16
      %v3552 = vrot.slane %v3550, 4
      %v3553 = vshll.u32 %v3249, 16
      %v3555 = vrot.slane %v3553, 5
      %v3556 = vor.u32 %v3552, %v3555
      %v3557 = vrot.slane %v3556, 4
      %v3559 = vshll.u32 %v3250, 16
      %v3561 = vrot.slane %v3559, 5
      %v3562 = vsel %vm405, %v3557, %v3561
      %v3563 = vshrl.u32 %v3250, 16
      %v3565 = vrot.slane %v3563, 4
      %v3566 = vor.u32 %v3565, %v3561
      %v3567 = vrot.slane %v3566, 4
      %v3569 = vshll.u32 %v3251, 16
      %v3571 = vrot.slane %v3569, 5
      %v3572 = vsel %vm405, %v3567, %v3571
      %v3574 = vshrl.u32 %v3252, 16
      %v3576 = vrot.slane %v3574, 4
      %v3577 = vshll.u32 %v3252, 16
      %v3579 = vrot.slane %v3577, 5
      %v3580 = vor.u32 %v3576, %v3579
      %v3581 = vrot.slane %v3580, 4
      %v3583 = vshll.u32 %v3253, 16
      %v3585 = vrot.slane %v3583, 5
      %v3586 = vsel %vm405, %v3581, %v3585
      %v3587 = vshrl.u32 %v3253, 16
      %v3589 = vrot.slane %v3587, 4
      %v3590 = vor.u32 %v3589, %v3585
      %v3591 = vrot.slane %v3590, 4
      %v3593 = vshll.u32 %v3254, 16
      %v3595 = vrot.slane %v3593, 5
      %v3596 = vsel %vm405, %v3591, %v3595
      %v3598 = vshrl.u32 %v3255, 16
      %v3600 = vrot.slane %v3598, 4
      %v3601 = vshll.u32 %v3255, 16
      %v3603 = vrot.slane %v3601, 5
      %v3604 = vor.u32 %v3600, %v3603
      %v3605 = vrot.slane %v3604, 4
      %v3607 = vshll.u32 %v3256, 16
      %v3609 = vrot.slane %v3607, 5
      %v3610 = vsel %vm405, %v3605, %v3609
      %v3611 = vshrl.u32 %v3256, 16
      %v3613 = vrot.slane %v3611, 4
      %v3614 = vor.u32 %v3613, %v3609
      %v3615 = vrot.slane %v3614, 4
      %v3617 = vshll.u32 %v3257, 16
      %v3619 = vrot.slane %v3617, 5
      %v3620 = vsel %vm405, %v3615, %v3619
      %v3622 = vshrl.u32 %v3258, 16
      %v3624 = vrot.slane %v3622, 4
      %v3625 = vshll.u32 %v3258, 16
      %v3627 = vrot.slane %v3625, 5
      %v3628 = vor.u32 %v3624, %v3627
      %v3629 = vrot.slane %v3628, 4
      %v3631 = vshll.u32 %v3259, 16
      %v3633 = vrot.slane %v3631, 5
      %v3634 = vsel %vm405, %v3629, %v3633
      %v3635 = vshrl.u32 %v3259, 16
      %v3637 = vrot.slane %v3635, 4
      %v3638 = vor.u32 %v3637, %v3633
      %v3639 = vrot.slane %v3638, 4
      %v3641 = vshll.u32 %v3260, 16
      %v3643 = vrot.slane %v3641, 5
      %v3644 = vsel %vm405, %v3639, %v3643
      %s3645 = scalar_lea.vmem %s329, 14
      %v3646 = vld [vmem:[%s3645] sm:$0x3]
      %v3647 = vunpack.c.l.b16 %v3274
      %v3648 = vunpack.c.l.b16 %v3284
      %v3649 = vunpack.c.l.b16 %v3298
      %v3650 = vunpack.c.l.b16 %v3308
      %v3651 = vunpack.c.l.b16 %v3322
      %v3652 = vunpack.c.l.b16 %v3332
      %v3653 = vunpack.c.l.b16 %v3346
      %v3654 = vunpack.c.l.b16 %v3356
      %v3655 = vunpack.c.l.b16 %v3370
      %v3656 = vunpack.c.l.b16 %v3380
      %v3657 = vunpack.c.l.b16 %v3394
      %v3658 = vunpack.c.l.b16 %v3404
      %v3659 = vunpack.c.l.b16 %v3418
      %v3660 = vunpack.c.l.b16 %v3428
      %v3661 = vunpack.c.l.b16 %v3442
      %v3662 = vunpack.c.l.b16 %v3452
      %v3663 = vunpack.c.l.b16 %v3466
      %v3664 = vunpack.c.l.b16 %v3476
      %v3665 = vunpack.c.l.b16 %v3490
      %v3666 = vunpack.c.l.b16 %v3500
      %v3667 = vunpack.c.l.b16 %v3514
      %v3668 = vunpack.c.l.b16 %v3524
      %v3669 = vunpack.c.l.b16 %v3538
      %v3670 = vunpack.c.l.b16 %v3548
      %v3671 = vunpack.c.l.b16 %v3562
      %v3672 = vunpack.c.l.b16 %v3572
      %v3673 = vunpack.c.l.b16 %v3586
      %v3674 = vunpack.c.l.b16 %v3596
      %v3675 = vunpack.c.l.b16 %v3610
      %v3676 = vunpack.c.l.b16 %v3620
      %v3677 = vunpack.c.l.b16 %v3634
      %v3678 = vunpack.c.l.b16 %v3644
      %v3679 = vpack.c.b16 %v3648, %v3647
      %v3680 = vpack.c.b16 %v3650, %v3649
      %v3681 = vpack.c.b16 %v3652, %v3651
      %v3682 = vpack.c.b16 %v3654, %v3653
      %v3683 = vpack.c.b16 %v3656, %v3655
      %v3684 = vpack.c.b16 %v3658, %v3657
      %v3685 = vpack.c.b16 %v3660, %v3659
      %v3686 = vpack.c.b16 %v3662, %v3661
      %v3687 = vpack.c.b16 %v3664, %v3663
      %v3688 = vpack.c.b16 %v3666, %v3665
      %v3689 = vpack.c.b16 %v3668, %v3667
      %v3690 = vpack.c.b16 %v3670, %v3669
      %v3691 = vpack.c.b16 %v3672, %v3671
      %v3692 = vpack.c.b16 %v3674, %v3673
      %v3693 = vpack.c.b16 %v3676, %v3675
      %v3694 = vpack.c.b16 %v3678, %v3677
      %v3696 = vsel %vm840, %v3679, 0
      %v3699 = vsel %vm840, %v3680, 0
      %v3702 = vsel %vm840, %v3681, 0
      %v3705 = vsel %vm840, %v3682, 0
      %v3708 = vsel %vm840, %v3683, 0
      %v3711 = vsel %vm840, %v3684, 0
      %v3714 = vsel %vm840, %v3685, 0
      %v3717 = vsel %vm840, %v3686, 0
      %v3720 = vsel %vm840, %v3687, 0
      %v3723 = vsel %vm840, %v3688, 0
      %v3726 = vsel %vm840, %v3689, 0
      %v3729 = vsel %vm840, %v3690, 0
      %v3732 = vsel %vm840, %v3691, 0
      %v3735 = vsel %vm840, %v3692, 0
      %v3738 = vsel %vm840, %v3693, 0
      %v3741 = vsel %vm840, %v3694, 0
      %v3744 = vsel %vm889, %v3646, 0
      %3746 = vmatpush.bf16.msra.mxu0 0
      %3747 = vmatpush.bf16.msra.mxu0 0
      %3748 = vmatpush.bf16.msra.mxu0 0
      %3749 = vmatpush.bf16.msra.mxu0 0
      %3750 = vmatpush.bf16.msra.mxu0 0
      %3751 = vmatpush.bf16.msra.mxu0 0
      %3752 = vmatpush.bf16.msra.mxu0 0
      %3753 = vmatpush.bf16.msra.mxu0 %v3744
      %3754 = vmatmul.bf16.gmra.mxu0 %v3696
      %v3755 = vpop.f32.mrf.mxu0
      %v3756 = vadd.f32 0.0, %v3755
      %v3757 = vpop.f32.mrf.mxu0
      %v3758 = vadd.f32 0.0, %v3757
      %3759 = vmatmul.bf16.gmra.mxu0 %v3699
      %v3760 = vpop.f32.mrf.mxu0
      %v3761 = vadd.f32 0.0, %v3760
      %v3762 = vpop.f32.mrf.mxu0
      %v3763 = vadd.f32 0.0, %v3762
      %3764 = vmatmul.bf16.gmra.mxu0 %v3702
      %v3765 = vpop.f32.mrf.mxu0
      %v3766 = vadd.f32 0.0, %v3765
      %v3767 = vpop.f32.mrf.mxu0
      %v3768 = vadd.f32 0.0, %v3767
      %3769 = vmatmul.bf16.gmra.mxu0 %v3705
      %v3770 = vpop.f32.mrf.mxu0
      %v3771 = vadd.f32 0.0, %v3770
      %v3772 = vpop.f32.mrf.mxu0
      %v3773 = vadd.f32 0.0, %v3772
      %3774 = vmatmul.bf16.gmra.mxu0 %v3708
      %v3775 = vpop.f32.mrf.mxu0
      %v3776 = vadd.f32 0.0, %v3775
      %v3777 = vpop.f32.mrf.mxu0
      %v3778 = vadd.f32 0.0, %v3777
      %3779 = vmatmul.bf16.gmra.mxu0 %v3711
      %v3780 = vpop.f32.mrf.mxu0
      %v3781 = vadd.f32 0.0, %v3780
      %v3782 = vpop.f32.mrf.mxu0
      %v3783 = vadd.f32 0.0, %v3782
      %3784 = vmatmul.bf16.gmra.mxu0 %v3714
      %v3785 = vpop.f32.mrf.mxu0
      %v3786 = vadd.f32 0.0, %v3785
      %v3787 = vpop.f32.mrf.mxu0
      %v3788 = vadd.f32 0.0, %v3787
      %3789 = vmatmul.bf16.gmra.mxu0 %v3717
      %v3790 = vpop.f32.mrf.mxu0
      %v3791 = vadd.f32 0.0, %v3790
      %v3792 = vpop.f32.mrf.mxu0
      %v3793 = vadd.f32 0.0, %v3792
      %3794 = vmatmul.bf16.gmra.mxu0 %v3720
      %v3795 = vpop.f32.mrf.mxu0
      %v3796 = vadd.f32 0.0, %v3795
      %v3797 = vpop.f32.mrf.mxu0
      %v3798 = vadd.f32 0.0, %v3797
      %3799 = vmatmul.bf16.gmra.mxu0 %v3723
      %v3800 = vpop.f32.mrf.mxu0
      %v3801 = vadd.f32 0.0, %v3800
      %v3802 = vpop.f32.mrf.mxu0
      %v3803 = vadd.f32 0.0, %v3802
      %3804 = vmatmul.bf16.gmra.mxu0 %v3726
      %v3805 = vpop.f32.mrf.mxu0
      %v3806 = vadd.f32 0.0, %v3805
      %v3807 = vpop.f32.mrf.mxu0
      %v3808 = vadd.f32 0.0, %v3807
      %3809 = vmatmul.bf16.gmra.mxu0 %v3729
      %v3810 = vpop.f32.mrf.mxu0
      %v3811 = vadd.f32 0.0, %v3810
      %v3812 = vpop.f32.mrf.mxu0
      %v3813 = vadd.f32 0.0, %v3812
      %3814 = vmatmul.bf16.gmra.mxu0 %v3732
      %v3815 = vpop.f32.mrf.mxu0
      %v3816 = vadd.f32 0.0, %v3815
      %v3817 = vpop.f32.mrf.mxu0
      %v3818 = vadd.f32 0.0, %v3817
      %3819 = vmatmul.bf16.gmra.mxu0 %v3735
      %v3820 = vpop.f32.mrf.mxu0
      %v3821 = vadd.f32 0.0, %v3820
      %v3822 = vpop.f32.mrf.mxu0
      %v3823 = vadd.f32 0.0, %v3822
      %3824 = vmatmul.bf16.gmra.mxu0 %v3738
      %v3825 = vpop.f32.mrf.mxu0
      %v3826 = vadd.f32 0.0, %v3825
      %v3827 = vpop.f32.mrf.mxu0
      %v3828 = vadd.f32 0.0, %v3827
      %3829 = vmatmul.bf16.gmra.mxu0 %v3741
      %v3830 = vpop.f32.mrf.mxu0
      %v3831 = vadd.f32 0.0, %v3830
      %v3832 = vpop.f32.mrf.mxu0
      %v3833 = vadd.f32 0.0, %v3832
      %3834 = vdwg.mxu0
      %v3835 = vadd.f32 %v3181, %v3756
      %v3836 = vadd.f32 %v3182, %v3758
      %v3837 = vadd.f32 %v3183, %v3761
      %v3838 = vadd.f32 %v3184, %v3763
      %v3839 = vadd.f32 %v3185, %v3766
      %v3840 = vadd.f32 %v3186, %v3768
      %v3841 = vadd.f32 %v3187, %v3771
      %v3842 = vadd.f32 %v3188, %v3773
      %v3843 = vadd.f32 %v3189, %v3776
      %v3844 = vadd.f32 %v3190, %v3778
      %v3845 = vadd.f32 %v3191, %v3781
      %v3846 = vadd.f32 %v3192, %v3783
      %v3847 = vadd.f32 %v3193, %v3786
      %v3848 = vadd.f32 %v3194, %v3788
      %v3849 = vadd.f32 %v3195, %v3791
      %v3850 = vadd.f32 %v3196, %v3793
      %v3851 = vadd.f32 %v3197, %v3796
      %v3852 = vadd.f32 %v3198, %v3798
      %v3853 = vadd.f32 %v3199, %v3801
      %v3854 = vadd.f32 %v3200, %v3803
      %v3855 = vadd.f32 %v3201, %v3806
      %v3856 = vadd.f32 %v3202, %v3808
      %v3857 = vadd.f32 %v3203, %v3811
      %v3858 = vadd.f32 %v3204, %v3813
      %v3859 = vadd.f32 %v3205, %v3816
      %v3860 = vadd.f32 %v3206, %v3818
      %v3861 = vadd.f32 %v3207, %v3821
      %v3862 = vadd.f32 %v3208, %v3823
      %v3863 = vadd.f32 %v3209, %v3826
      %v3864 = vadd.f32 %v3210, %v3828
      %v3865 = vadd.f32 %v3211, %v3831
      %v3866 = vadd.f32 %v3212, %v3833
      %v3867 = vld [vmem:[%s2926] sm:$0xe]
      %v3868 = vld [vmem:[%s2926 + $0xc] sm:$0xe]
      %v3869 = vld [vmem:[%s2926 + $0x18] sm:$0xe]
      %v3870 = vld [vmem:[%s2926 + $0x24] sm:$0xe]
      %v3871 = vld [vmem:[%s2926 + $0x30] sm:$0xe]
      %v3872 = vld [vmem:[%s2926 + $0x3c] sm:$0xe]
      %v3873 = vld [vmem:[%s2926 + $0x48] sm:$0xe]
      %v3874 = vld [vmem:[%s2926 + $0x54] sm:$0xe]
      %v3875 = vld [vmem:[%s2926 + $0x60] sm:$0xe]
      %v3876 = vld [vmem:[%s2926 + $0x6c] sm:$0xe]
      %v3877 = vld [vmem:[%s2926 + $0x78] sm:$0xe]
      %v3878 = vld [vmem:[%s2926 + $0x84] sm:$0xe]
      %v3879 = vld [vmem:[%s2926 + $0x90] sm:$0xe]
      %v3880 = vld [vmem:[%s2926 + $0x9c] sm:$0xe]
      %v3881 = vld [vmem:[%s2926 + $0xa8] sm:$0xe]
      %v3882 = vld [vmem:[%s2926 + $0xb4] sm:$0xe]
      %v3931 = vrot.slane %v3867, 5
      %v3932 = vrot.slane %v3931, 4
      %v3933 = vrot.slane %v3214, 5
      %v3934 = vsel %vm1252, %v3932, %v3933
      %v3935 = vrot.slane %v3933, 4
      %v3936 = vrot.slane %v3215, 5
      %v3937 = vsel %vm1252, %v3935, %v3936
      %v3938 = vrot.slane %v3868, 5
      %v3939 = vrot.slane %v3938, 4
      %v3940 = vrot.slane %v3217, 5
      %v3941 = vsel %vm1252, %v3939, %v3940
      %v3942 = vrot.slane %v3940, 4
      %v3943 = vrot.slane %v3218, 5
      %v3944 = vsel %vm1252, %v3942, %v3943
      %v3945 = vrot.slane %v3869, 5
      %v3946 = vrot.slane %v3945, 4
      %v3947 = vrot.slane %v3220, 5
      %v3948 = vsel %vm1252, %v3946, %v3947
      %v3949 = vrot.slane %v3947, 4
      %v3950 = vrot.slane %v3221, 5
      %v3951 = vsel %vm1252, %v3949, %v3950
      %v3952 = vrot.slane %v3870, 5
      %v3953 = vrot.slane %v3952, 4
      %v3954 = vrot.slane %v3223, 5
      %v3955 = vsel %vm1252, %v3953, %v3954
      %v3956 = vrot.slane %v3954, 4
      %v3957 = vrot.slane %v3224, 5
      %v3958 = vsel %vm1252, %v3956, %v3957
      %v3959 = vrot.slane %v3871, 5
      %v3960 = vrot.slane %v3959, 4
      %v3961 = vrot.slane %v3226, 5
      %v3962 = vsel %vm1252, %v3960, %v3961
      %v3963 = vrot.slane %v3961, 4
      %v3964 = vrot.slane %v3227, 5
      %v3965 = vsel %vm1252, %v3963, %v3964
      %v3966 = vrot.slane %v3872, 5
      %v3967 = vrot.slane %v3966, 4
      %v3968 = vrot.slane %v3229, 5
      %v3969 = vsel %vm1252, %v3967, %v3968
      %v3970 = vrot.slane %v3968, 4
      %v3971 = vrot.slane %v3230, 5
      %v3972 = vsel %vm1252, %v3970, %v3971
      %v3973 = vrot.slane %v3873, 5
      %v3974 = vrot.slane %v3973, 4
      %v3975 = vrot.slane %v3232, 5
      %v3976 = vsel %vm1252, %v3974, %v3975
      %v3977 = vrot.slane %v3975, 4
      %v3978 = vrot.slane %v3233, 5
      %v3979 = vsel %vm1252, %v3977, %v3978
      %v3980 = vrot.slane %v3874, 5
      %v3981 = vrot.slane %v3980, 4
      %v3982 = vrot.slane %v3235, 5
      %v3983 = vsel %vm1252, %v3981, %v3982
      %v3984 = vrot.slane %v3982, 4
      %v3985 = vrot.slane %v3236, 5
      %v3986 = vsel %vm1252, %v3984, %v3985
      %v3987 = vrot.slane %v3875, 5
      %v3988 = vrot.slane %v3987, 4
      %v3989 = vrot.slane %v3238, 5
      %v3990 = vsel %vm1252, %v3988, %v3989
      %v3991 = vrot.slane %v3989, 4
      %v3992 = vrot.slane %v3239, 5
      %v3993 = vsel %vm1252, %v3991, %v3992
      %v3994 = vrot.slane %v3876, 5
      %v3995 = vrot.slane %v3994, 4
      %v3996 = vrot.slane %v3241, 5
      %v3997 = vsel %vm1252, %v3995, %v3996
      %v3998 = vrot.slane %v3996, 4
      %v3999 = vrot.slane %v3242, 5
      %v4000 = vsel %vm1252, %v3998, %v3999
      %v4001 = vrot.slane %v3877, 5
      %v4002 = vrot.slane %v4001, 4
      %v4003 = vrot.slane %v3244, 5
      %v4004 = vsel %vm1252, %v4002, %v4003
      %v4005 = vrot.slane %v4003, 4
      %v4006 = vrot.slane %v3245, 5
      %v4007 = vsel %vm1252, %v4005, %v4006
      %v4008 = vrot.slane %v3878, 5
      %v4009 = vrot.slane %v4008, 4
      %v4010 = vrot.slane %v3247, 5
      %v4011 = vsel %vm1252, %v4009, %v4010
      %v4012 = vrot.slane %v4010, 4
      %v4013 = vrot.slane %v3248, 5
      %v4014 = vsel %vm1252, %v4012, %v4013
      %v4015 = vrot.slane %v3879, 5
      %v4016 = vrot.slane %v4015, 4
      %v4017 = vrot.slane %v3250, 5
      %v4018 = vsel %vm1252, %v4016, %v4017
      %v4019 = vrot.slane %v4017, 4
      %v4020 = vrot.slane %v3251, 5
      %v4021 = vsel %vm1252, %v4019, %v4020
      %v4022 = vrot.slane %v3880, 5
      %v4023 = vrot.slane %v4022, 4
      %v4024 = vrot.slane %v3253, 5
      %v4025 = vsel %vm1252, %v4023, %v4024
      %v4026 = vrot.slane %v4024, 4
      %v4027 = vrot.slane %v3254, 5
      %v4028 = vsel %vm1252, %v4026, %v4027
      %v4029 = vrot.slane %v3881, 5
      %v4030 = vrot.slane %v4029, 4
      %v4031 = vrot.slane %v3256, 5
      %v4032 = vsel %vm1252, %v4030, %v4031
      %v4033 = vrot.slane %v4031, 4
      %v4034 = vrot.slane %v3257, 5
      %v4035 = vsel %vm1252, %v4033, %v4034
      %v4036 = vrot.slane %v3882, 5
      %v4037 = vrot.slane %v4036, 4
      %v4038 = vrot.slane %v3259, 5
      %v4039 = vsel %vm1252, %v4037, %v4038
      %v4040 = vrot.slane %v4038, 4
      %v4041 = vrot.slane %v3260, 5
      %v4042 = vsel %vm1252, %v4040, %v4041
      %s4043 = scalar_lea.vmem %s329, 16
      %v4044 = vld [vmem:[%s4043] sm:$0x3]
      %v4045 = vunpack.c.l.b16 %v3934
      %v4046 = vunpack.c.l.b16 %v3937
      %v4047 = vunpack.c.l.b16 %v3941
      %v4048 = vunpack.c.l.b16 %v3944
      %v4049 = vunpack.c.l.b16 %v3948
      %v4050 = vunpack.c.l.b16 %v3951
      %v4051 = vunpack.c.l.b16 %v3955
      %v4052 = vunpack.c.l.b16 %v3958
      %v4053 = vunpack.c.l.b16 %v3962
      %v4054 = vunpack.c.l.b16 %v3965
      %v4055 = vunpack.c.l.b16 %v3969
      %v4056 = vunpack.c.l.b16 %v3972
      %v4057 = vunpack.c.l.b16 %v3976
      %v4058 = vunpack.c.l.b16 %v3979
      %v4059 = vunpack.c.l.b16 %v3983
      %v4060 = vunpack.c.l.b16 %v3986
      %v4061 = vunpack.c.l.b16 %v3990
      %v4062 = vunpack.c.l.b16 %v3993
      %v4063 = vunpack.c.l.b16 %v3997
      %v4064 = vunpack.c.l.b16 %v4000
      %v4065 = vunpack.c.l.b16 %v4004
      %v4066 = vunpack.c.l.b16 %v4007
      %v4067 = vunpack.c.l.b16 %v4011
      %v4068 = vunpack.c.l.b16 %v4014
      %v4069 = vunpack.c.l.b16 %v4018
      %v4070 = vunpack.c.l.b16 %v4021
      %v4071 = vunpack.c.l.b16 %v4025
      %v4072 = vunpack.c.l.b16 %v4028
      %v4073 = vunpack.c.l.b16 %v4032
      %v4074 = vunpack.c.l.b16 %v4035
      %v4075 = vunpack.c.l.b16 %v4039
      %v4076 = vunpack.c.l.b16 %v4042
      %v4077 = vpack.c.b16 %v4046, %v4045
      %v4078 = vpack.c.b16 %v4048, %v4047
      %v4079 = vpack.c.b16 %v4050, %v4049
      %v4080 = vpack.c.b16 %v4052, %v4051
      %v4081 = vpack.c.b16 %v4054, %v4053
      %v4082 = vpack.c.b16 %v4056, %v4055
      %v4083 = vpack.c.b16 %v4058, %v4057
      %v4084 = vpack.c.b16 %v4060, %v4059
      %v4085 = vpack.c.b16 %v4062, %v4061
      %v4086 = vpack.c.b16 %v4064, %v4063
      %v4087 = vpack.c.b16 %v4066, %v4065
      %v4088 = vpack.c.b16 %v4068, %v4067
      %v4089 = vpack.c.b16 %v4070, %v4069
      %v4090 = vpack.c.b16 %v4072, %v4071
      %v4091 = vpack.c.b16 %v4074, %v4073
      %v4092 = vpack.c.b16 %v4076, %v4075
      %v4094 = vsel %vm840, %v4077, 0
      %v4097 = vsel %vm840, %v4078, 0
      %v4100 = vsel %vm840, %v4079, 0
      %v4103 = vsel %vm840, %v4080, 0
      %v4106 = vsel %vm840, %v4081, 0
      %v4109 = vsel %vm840, %v4082, 0
      %v4112 = vsel %vm840, %v4083, 0
      %v4115 = vsel %vm840, %v4084, 0
      %v4118 = vsel %vm840, %v4085, 0
      %v4121 = vsel %vm840, %v4086, 0
      %v4124 = vsel %vm840, %v4087, 0
      %v4127 = vsel %vm840, %v4088, 0
      %v4130 = vsel %vm840, %v4089, 0
      %v4133 = vsel %vm840, %v4090, 0
      %v4136 = vsel %vm840, %v4091, 0
      %v4139 = vsel %vm840, %v4092, 0
      %v4142 = vsel %vm889, %v4044, 0
      %4144 = vmatpush.bf16.msra.mxu0 0
      %4145 = vmatpush.bf16.msra.mxu0 0
      %4146 = vmatpush.bf16.msra.mxu0 0
      %4147 = vmatpush.bf16.msra.mxu0 0
      %4148 = vmatpush.bf16.msra.mxu0 0
      %4149 = vmatpush.bf16.msra.mxu0 0
      %4150 = vmatpush.bf16.msra.mxu0 0
      %4151 = vmatpush.bf16.msra.mxu0 %v4142
      %4152 = vmatmul.bf16.gmra.mxu0 %v4094
      %v4153 = vpop.f32.mrf.mxu0
      %v4154 = vadd.f32 0.0, %v4153
      %v4155 = vpop.f32.mrf.mxu0
      %v4156 = vadd.f32 0.0, %v4155
      %4157 = vmatmul.bf16.gmra.mxu0 %v4097
      %v4158 = vpop.f32.mrf.mxu0
      %v4159 = vadd.f32 0.0, %v4158
      %v4160 = vpop.f32.mrf.mxu0
      %v4161 = vadd.f32 0.0, %v4160
      %4162 = vmatmul.bf16.gmra.mxu0 %v4100
      %v4163 = vpop.f32.mrf.mxu0
      %v4164 = vadd.f32 0.0, %v4163
      %v4165 = vpop.f32.mrf.mxu0
      %v4166 = vadd.f32 0.0, %v4165
      %4167 = vmatmul.bf16.gmra.mxu0 %v4103
      %v4168 = vpop.f32.mrf.mxu0
      %v4169 = vadd.f32 0.0, %v4168
      %v4170 = vpop.f32.mrf.mxu0
      %v4171 = vadd.f32 0.0, %v4170
      %4172 = vmatmul.bf16.gmra.mxu0 %v4106
      %v4173 = vpop.f32.mrf.mxu0
      %v4174 = vadd.f32 0.0, %v4173
      %v4175 = vpop.f32.mrf.mxu0
      %v4176 = vadd.f32 0.0, %v4175
      %4177 = vmatmul.bf16.gmra.mxu0 %v4109
      %v4178 = vpop.f32.mrf.mxu0
      %v4179 = vadd.f32 0.0, %v4178
      %v4180 = vpop.f32.mrf.mxu0
      %v4181 = vadd.f32 0.0, %v4180
      %4182 = vmatmul.bf16.gmra.mxu0 %v4112
      %v4183 = vpop.f32.mrf.mxu0
      %v4184 = vadd.f32 0.0, %v4183
      %v4185 = vpop.f32.mrf.mxu0
      %v4186 = vadd.f32 0.0, %v4185
      %4187 = vmatmul.bf16.gmra.mxu0 %v4115
      %v4188 = vpop.f32.mrf.mxu0
      %v4189 = vadd.f32 0.0, %v4188
      %v4190 = vpop.f32.mrf.mxu0
      %v4191 = vadd.f32 0.0, %v4190
      %4192 = vmatmul.bf16.gmra.mxu0 %v4118
      %v4193 = vpop.f32.mrf.mxu0
      %v4194 = vadd.f32 0.0, %v4193
      %v4195 = vpop.f32.mrf.mxu0
      %v4196 = vadd.f32 0.0, %v4195
      %4197 = vmatmul.bf16.gmra.mxu0 %v4121
      %v4198 = vpop.f32.mrf.mxu0
      %v4199 = vadd.f32 0.0, %v4198
      %v4200 = vpop.f32.mrf.mxu0
      %v4201 = vadd.f32 0.0, %v4200
      %4202 = vmatmul.bf16.gmra.mxu0 %v4124
      %v4203 = vpop.f32.mrf.mxu0
      %v4204 = vadd.f32 0.0, %v4203
      %v4205 = vpop.f32.mrf.mxu0
      %v4206 = vadd.f32 0.0, %v4205
      %4207 = vmatmul.bf16.gmra.mxu0 %v4127
      %v4208 = vpop.f32.mrf.mxu0
      %v4209 = vadd.f32 0.0, %v4208
      %v4210 = vpop.f32.mrf.mxu0
      %v4211 = vadd.f32 0.0, %v4210
      %4212 = vmatmul.bf16.gmra.mxu0 %v4130
      %v4213 = vpop.f32.mrf.mxu0
      %v4214 = vadd.f32 0.0, %v4213
      %v4215 = vpop.f32.mrf.mxu0
      %v4216 = vadd.f32 0.0, %v4215
      %4217 = vmatmul.bf16.gmra.mxu0 %v4133
      %v4218 = vpop.f32.mrf.mxu0
      %v4219 = vadd.f32 0.0, %v4218
      %v4220 = vpop.f32.mrf.mxu0
      %v4221 = vadd.f32 0.0, %v4220
      %4222 = vmatmul.bf16.gmra.mxu0 %v4136
      %v4223 = vpop.f32.mrf.mxu0
      %v4224 = vadd.f32 0.0, %v4223
      %v4225 = vpop.f32.mrf.mxu0
      %v4226 = vadd.f32 0.0, %v4225
      %4227 = vmatmul.bf16.gmra.mxu0 %v4139
      %v4228 = vpop.f32.mrf.mxu0
      %v4229 = vadd.f32 0.0, %v4228
      %v4230 = vpop.f32.mrf.mxu0
      %v4231 = vadd.f32 0.0, %v4230
      %4232 = vdwg.mxu0
      %v4233 = vadd.f32 %v3835, %v4154
      %v4234 = vadd.f32 %v3836, %v4156
      %v4235 = vadd.f32 %v3837, %v4159
      %v4236 = vadd.f32 %v3838, %v4161
      %v4237 = vadd.f32 %v3839, %v4164
      %v4238 = vadd.f32 %v3840, %v4166
      %v4239 = vadd.f32 %v3841, %v4169
      %v4240 = vadd.f32 %v3842, %v4171
      %v4241 = vadd.f32 %v3843, %v4174
      %v4242 = vadd.f32 %v3844, %v4176
      %v4243 = vadd.f32 %v3845, %v4179
      %v4244 = vadd.f32 %v3846, %v4181
      %v4245 = vadd.f32 %v3847, %v4184
      %v4246 = vadd.f32 %v3848, %v4186
      %v4247 = vadd.f32 %v3849, %v4189
      %v4248 = vadd.f32 %v3850, %v4191
      %v4249 = vadd.f32 %v3851, %v4194
      %v4250 = vadd.f32 %v3852, %v4196
      %v4251 = vadd.f32 %v3853, %v4199
      %v4252 = vadd.f32 %v3854, %v4201
      %v4253 = vadd.f32 %v3855, %v4204
      %v4254 = vadd.f32 %v3856, %v4206
      %v4255 = vadd.f32 %v3857, %v4209
      %v4256 = vadd.f32 %v3858, %v4211
      %v4257 = vadd.f32 %v3859, %v4214
      %v4258 = vadd.f32 %v3860, %v4216
      %v4259 = vadd.f32 %v3861, %v4219
      %v4260 = vadd.f32 %v3862, %v4221
      %v4261 = vadd.f32 %v3863, %v4224
      %v4262 = vadd.f32 %v3864, %v4226
      %v4263 = vadd.f32 %v3865, %v4229
      %v4264 = vadd.f32 %v3866, %v4231
      %v4265 = vld [vmem:[%s332] sm:$0x1]
      %v4267 = vperm.slane %v4265, 0
      %v4269 = vadd.f32 %v4233, %v4267
      %v4270 = vadd.f32 %v4234, %v4267
      %v4271 = vadd.f32 %v4235, %v4267
      %v4272 = vadd.f32 %v4236, %v4267
      %v4273 = vadd.f32 %v4237, %v4267
      %v4274 = vadd.f32 %v4238, %v4267
      %v4275 = vadd.f32 %v4239, %v4267
      %v4276 = vadd.f32 %v4240, %v4267
      %v4277 = vadd.f32 %v4241, %v4267
      %v4278 = vadd.f32 %v4242, %v4267
      %v4279 = vadd.f32 %v4243, %v4267
      %v4280 = vadd.f32 %v4244, %v4267
      %v4281 = vadd.f32 %v4245, %v4267
      %v4282 = vadd.f32 %v4246, %v4267
      %v4283 = vadd.f32 %v4247, %v4267
      %v4284 = vadd.f32 %v4248, %v4267
      %v4285 = vadd.f32 %v4249, %v4267
      %v4286 = vadd.f32 %v4250, %v4267
      %v4287 = vadd.f32 %v4251, %v4267
      %v4288 = vadd.f32 %v4252, %v4267
      %v4289 = vadd.f32 %v4253, %v4267
      %v4290 = vadd.f32 %v4254, %v4267
      %v4291 = vadd.f32 %v4255, %v4267
      %v4292 = vadd.f32 %v4256, %v4267
      %v4293 = vadd.f32 %v4257, %v4267
      %v4294 = vadd.f32 %v4258, %v4267
      %v4295 = vadd.f32 %v4259, %v4267
      %v4296 = vadd.f32 %v4260, %v4267
      %v4297 = vadd.f32 %v4261, %v4267
      %v4298 = vadd.f32 %v4262, %v4267
      %v4299 = vadd.f32 %v4263, %v4267
      %v4300 = vadd.f32 %v4264, %v4267
      %vm4301 = vcmask 64512
      %v4302 = vsel %vm4301, %v4269, 0.0
      %v4303 = vsel %vm4301, %v4270, 0.0
      %v4304 = vadd.f32 %v4302, %v4303
      %v4305 = vsel %vm4301, %v4271, 0.0
      %v4306 = vadd.f32 %v4304, %v4305
      %v4307 = vsel %vm4301, %v4272, 0.0
      %v4308 = vadd.f32 %v4306, %v4307
      %v4309 = vsel %vm4301, %v4273, 0.0
      %v4310 = vadd.f32 %v4308, %v4309
      %v4311 = vsel %vm4301, %v4274, 0.0
      %v4312 = vadd.f32 %v4310, %v4311
      %v4313 = vsel %vm4301, %v4275, 0.0
      %v4314 = vadd.f32 %v4312, %v4313
      %v4315 = vsel %vm4301, %v4276, 0.0
      %v4316 = vadd.f32 %v4314, %v4315
      %v4317 = vsel %vm4301, %v4277, 0.0
      %v4318 = vadd.f32 %v4316, %v4317
      %v4319 = vsel %vm4301, %v4278, 0.0
      %v4320 = vadd.f32 %v4318, %v4319
      %v4321 = vsel %vm4301, %v4279, 0.0
      %v4322 = vadd.f32 %v4320, %v4321
      %v4323 = vsel %vm4301, %v4280, 0.0
      %v4324 = vadd.f32 %v4322, %v4323
      %v4325 = vsel %vm4301, %v4281, 0.0
      %v4326 = vadd.f32 %v4324, %v4325
      %v4327 = vsel %vm4301, %v4282, 0.0
      %v4328 = vadd.f32 %v4326, %v4327
      %v4329 = vsel %vm4301, %v4283, 0.0
      %v4330 = vadd.f32 %v4328, %v4329
      %v4331 = vsel %vm4301, %v4284, 0.0
      %v4332 = vadd.f32 %v4330, %v4331
      %v4333 = vsel %vm4301, %v4285, 0.0
      %v4334 = vadd.f32 %v4332, %v4333
      %v4335 = vsel %vm4301, %v4286, 0.0
      %v4336 = vadd.f32 %v4334, %v4335
      %v4337 = vsel %vm4301, %v4287, 0.0
      %v4338 = vadd.f32 %v4336, %v4337
      %v4339 = vsel %vm4301, %v4288, 0.0
      %v4340 = vadd.f32 %v4338, %v4339
      %v4341 = vsel %vm4301, %v4289, 0.0
      %v4342 = vadd.f32 %v4340, %v4341
      %v4343 = vsel %vm4301, %v4290, 0.0
      %v4344 = vadd.f32 %v4342, %v4343
      %v4345 = vsel %vm4301, %v4291, 0.0
      %v4346 = vadd.f32 %v4344, %v4345
      %v4347 = vsel %vm4301, %v4292, 0.0
      %v4348 = vadd.f32 %v4346, %v4347
      %v4349 = vsel %vm4301, %v4293, 0.0
      %v4350 = vadd.f32 %v4348, %v4349
      %v4351 = vsel %vm4301, %v4294, 0.0
      %v4352 = vadd.f32 %v4350, %v4351
      %v4353 = vsel %vm4301, %v4295, 0.0
      %v4354 = vadd.f32 %v4352, %v4353
      %v4355 = vsel %vm4301, %v4296, 0.0
      %v4356 = vadd.f32 %v4354, %v4355
      %v4357 = vsel %vm4301, %v4297, 0.0
      %v4358 = vadd.f32 %v4356, %v4357
      %v4359 = vsel %vm4301, %v4298, 0.0
      %v4360 = vadd.f32 %v4358, %v4359
      %v4361 = vsel %vm4301, %v4299, 0.0
      %v4362 = vadd.f32 %v4360, %v4361
      %v4363 = vsel %vm4301, %v4300, 0.0
      %v4364 = vadd.f32 %v4362, %v4363
      %v4365 = vrot.slane %v4364, 4
      %v4366 = vadd.f32 %v4364, %v4365
      %v4367 = vrot.slane %v4366, 2
      %v4368 = vadd.f32 %v4366, %v4367
      %v4369 = vrot.slane %v4368, 1
      %v4370 = vadd.f32 %v4368, %v4369
      %v4371 = vmul.f32 %v4370, 0.00390625
      %v4372 = vld [vmem:[%s3] sm:$0xff]
      %v4374 = vsel %vm4301, %v4371, 0
      %4376 = vmatpush.msra.mxu0 0.0
      %4377 = vmatpush.msra.mxu0 0.0
      %4378 = vmatpush.msra.mxu0 0.0
      %4379 = vmatpush.msra.mxu0 0.0
      %4380 = vmatpush.msra.mxu0 0.0
      %4381 = vmatpush.msra.mxu0 0.0
      %4382 = vmatpush.msra.mxu0 0.0
      %4383 = vmatpush.msra.mxu0 0.0
      %4384 = vmatpush.msra.mxu0 0.0
      %4385 = vmatpush.msra.mxu0 0.0
      %4386 = vmatpush.msra.mxu0 0.0
      %4387 = vmatpush.msra.mxu0 0.0
      %4388 = vmatpush.msra.mxu0 0.0
      %4389 = vmatpush.msra.mxu0 0.0
      %4390 = vmatpush.msra.mxu0 0.0
      %4391 = vmatpush.msra.mxu0 %v4372
      %4392 = vmatmul.f32.gmra.mxu0 %v4374
      %v4393 = vpop.f32.mrf.mxu0
      %v4394 = vadd.f32 0.0, %v4393
      %4395 = vdwg.mxu0
      %v4396 = vperm.slane %v4394, 0
      %v4397 = vsub.f32 %v4269, %v4396
      %v4398 = vsub.f32 %v4270, %v4396
      %v4399 = vsub.f32 %v4271, %v4396
      %v4400 = vsub.f32 %v4272, %v4396
      %v4401 = vsub.f32 %v4273, %v4396
      %v4402 = vsub.f32 %v4274, %v4396
      %v4403 = vsub.f32 %v4275, %v4396
      %v4404 = vsub.f32 %v4276, %v4396
      %v4405 = vsub.f32 %v4277, %v4396
      %v4406 = vsub.f32 %v4278, %v4396
      %v4407 = vsub.f32 %v4279, %v4396
      %v4408 = vsub.f32 %v4280, %v4396
      %v4409 = vsub.f32 %v4281, %v4396
      %v4410 = vsub.f32 %v4282, %v4396
      %v4411 = vsub.f32 %v4283, %v4396
      %v4412 = vsub.f32 %v4284, %v4396
      %v4413 = vsub.f32 %v4285, %v4396
      %v4414 = vsub.f32 %v4286, %v4396
      %v4415 = vsub.f32 %v4287, %v4396
      %v4416 = vsub.f32 %v4288, %v4396
      %v4417 = vsub.f32 %v4289, %v4396
      %v4418 = vsub.f32 %v4290, %v4396
      %v4419 = vsub.f32 %v4291, %v4396
      %v4420 = vsub.f32 %v4292, %v4396
      %v4421 = vsub.f32 %v4293, %v4396
      %v4422 = vsub.f32 %v4294, %v4396
      %v4423 = vsub.f32 %v4295, %v4396
      %v4424 = vsub.f32 %v4296, %v4396
      %v4425 = vsub.f32 %v4297, %v4396
      %v4426 = vsub.f32 %v4298, %v4396
      %v4427 = vsub.f32 %v4299, %v4396
      %v4428 = vsub.f32 %v4300, %v4396
      %v4429 = vmul.f32 %v4397, %v4397
      %v4430 = vmul.f32 %v4398, %v4398
      %v4431 = vmul.f32 %v4399, %v4399
      %v4432 = vmul.f32 %v4400, %v4400
      %v4433 = vmul.f32 %v4401, %v4401
      %v4434 = vmul.f32 %v4402, %v4402
      %v4435 = vmul.f32 %v4403, %v4403
      %v4436 = vmul.f32 %v4404, %v4404
      %v4437 = vmul.f32 %v4405, %v4405
      %v4438 = vmul.f32 %v4406, %v4406
      %v4439 = vmul.f32 %v4407, %v4407
      %v4440 = vmul.f32 %v4408, %v4408
      %v4441 = vmul.f32 %v4409, %v4409
      %v4442 = vmul.f32 %v4410, %v4410
      %v4443 = vmul.f32 %v4411, %v4411
      %v4444 = vmul.f32 %v4412, %v4412
      %v4445 = vmul.f32 %v4413, %v4413
      %v4446 = vmul.f32 %v4414, %v4414
      %v4447 = vmul.f32 %v4415, %v4415
      %v4448 = vmul.f32 %v4416, %v4416
      %v4449 = vmul.f32 %v4417, %v4417
      %v4450 = vmul.f32 %v4418, %v4418
      %v4451 = vmul.f32 %v4419, %v4419
      %v4452 = vmul.f32 %v4420, %v4420
      %v4453 = vmul.f32 %v4421, %v4421
      %v4454 = vmul.f32 %v4422, %v4422
      %v4455 = vmul.f32 %v4423, %v4423
      %v4456 = vmul.f32 %v4424, %v4424
      %v4457 = vmul.f32 %v4425, %v4425
      %v4458 = vmul.f32 %v4426, %v4426
      %v4459 = vmul.f32 %v4427, %v4427
      %v4460 = vmul.f32 %v4428, %v4428
      %v4461 = vsel %vm4301, %v4429, 0.0
      %v4462 = vsel %vm4301, %v4430, 0.0
      %v4463 = vadd.f32 %v4461, %v4462
      %v4464 = vsel %vm4301, %v4431, 0.0
      %v4465 = vadd.f32 %v4463, %v4464
      %v4466 = vsel %vm4301, %v4432, 0.0
      %v4467 = vadd.f32 %v4465, %v4466
      %v4468 = vsel %vm4301, %v4433, 0.0
      %v4469 = vadd.f32 %v4467, %v4468
      %v4470 = vsel %vm4301, %v4434, 0.0
      %v4471 = vadd.f32 %v4469, %v4470
      %v4472 = vsel %vm4301, %v4435, 0.0
      %v4473 = vadd.f32 %v4471, %v4472
      %v4474 = vsel %vm4301, %v4436, 0.0
      %v4475 = vadd.f32 %v4473, %v4474
      %v4476 = vsel %vm4301, %v4437, 0.0
      %v4477 = vadd.f32 %v4475, %v4476
      %v4478 = vsel %vm4301, %v4438, 0.0
      %v4479 = vadd.f32 %v4477, %v4478
      %v4480 = vsel %vm4301, %v4439, 0.0
      %v4481 = vadd.f32 %v4479, %v4480
      %v4482 = vsel %vm4301, %v4440, 0.0
      %v4483 = vadd.f32 %v4481, %v4482
      %v4484 = vsel %vm4301, %v4441, 0.0
      %v4485 = vadd.f32 %v4483, %v4484
      %v4486 = vsel %vm4301, %v4442, 0.0
      %v4487 = vadd.f32 %v4485, %v4486
      %v4488 = vsel %vm4301, %v4443, 0.0
      %v4489 = vadd.f32 %v4487, %v4488
      %v4490 = vsel %vm4301, %v4444, 0.0
      %v4491 = vadd.f32 %v4489, %v4490
      %v4492 = vsel %vm4301, %v4445, 0.0
      %v4493 = vadd.f32 %v4491, %v4492
      %v4494 = vsel %vm4301, %v4446, 0.0
      %v4495 = vadd.f32 %v4493, %v4494
      %v4496 = vsel %vm4301, %v4447, 0.0
      %v4497 = vadd.f32 %v4495, %v4496
      %v4498 = vsel %vm4301, %v4448, 0.0
      %v4499 = vadd.f32 %v4497, %v4498
      %v4500 = vsel %vm4301, %v4449, 0.0
      %v4501 = vadd.f32 %v4499, %v4500
      %v4502 = vsel %vm4301, %v4450, 0.0
      %v4503 = vadd.f32 %v4501, %v4502
      %v4504 = vsel %vm4301, %v4451, 0.0
      %v4505 = vadd.f32 %v4503, %v4504
      %v4506 = vsel %vm4301, %v4452, 0.0
      %v4507 = vadd.f32 %v4505, %v4506
      %v4508 = vsel %vm4301, %v4453, 0.0
      %v4509 = vadd.f32 %v4507, %v4508
      %v4510 = vsel %vm4301, %v4454, 0.0
      %v4511 = vadd.f32 %v4509, %v4510
      %v4512 = vsel %vm4301, %v4455, 0.0
      %v4513 = vadd.f32 %v4511, %v4512
      %v4514 = vsel %vm4301, %v4456, 0.0
      %v4515 = vadd.f32 %v4513, %v4514
      %v4516 = vsel %vm4301, %v4457, 0.0
      %v4517 = vadd.f32 %v4515, %v4516
      %v4518 = vsel %vm4301, %v4458, 0.0
      %v4519 = vadd.f32 %v4517, %v4518
      %v4520 = vsel %vm4301, %v4459, 0.0
      %v4521 = vadd.f32 %v4519, %v4520
      %v4522 = vsel %vm4301, %v4460, 0.0
      %v4523 = vadd.f32 %v4521, %v4522
      %v4524 = vrot.slane %v4523, 4
      %v4525 = vadd.f32 %v4523, %v4524
      %v4526 = vrot.slane %v4525, 2
      %v4527 = vadd.f32 %v4525, %v4526
      %v4528 = vrot.slane %v4527, 1
      %v4529 = vadd.f32 %v4527, %v4528
      %v4530 = vmul.f32 %v4529, 0.00390625
      %v4532 = vsel %vm4301, %v4530, 0
      %4534 = vmatpush.msra.mxu0 0.0
      %4535 = vmatpush.msra.mxu0 0.0
      %4536 = vmatpush.msra.mxu0 0.0
      %4537 = vmatpush.msra.mxu0 0.0
      %4538 = vmatpush.msra.mxu0 0.0
      %4539 = vmatpush.msra.mxu0 0.0
      %4540 = vmatpush.msra.mxu0 0.0
      %4541 = vmatpush.msra.mxu0 0.0
      %4542 = vmatpush.msra.mxu0 0.0
      %4543 = vmatpush.msra.mxu0 0.0
      %4544 = vmatpush.msra.mxu0 0.0
      %4545 = vmatpush.msra.mxu0 0.0
      %4546 = vmatpush.msra.mxu0 0.0
      %4547 = vmatpush.msra.mxu0 0.0
      %4548 = vmatpush.msra.mxu0 0.0
      %4549 = vmatpush.msra.mxu0 %v4372
      %4550 = vmatmul.f32.gmra.mxu0 %v4532
      %v4551 = vpop.f32.mrf.mxu0
      %v4552 = vadd.f32 1e-05, %v4551
      %4553 = vdwg.mxu0
      %v4554 = vrsqrt.pop %v4552
      %v4555 = vmul.f32 %v4554, %v4552
      %v4556 = vmul.f32 %v4555, %v4554
      %v4557 = vmul.f32 0.5, %v4556
      %v4558 = vsub.f32 1.5, %v4557
      %v4559 = vmul.f32 %v4554, %v4558
      %vm4560 = vweird.f32 %v4552
      %vm4561 = vweird.f32 %v4554
      %vm4562 = vmor %vm4560, %vm4561
      %v4563 = vsel %vm4562, %v4554, %v4559
      %v4564 = vld [vmem:[%s338] sm:$0x1]
      %v4565 = vmul.f32 %v4563, %v4564
      %v4566 = vperm.slane %v4565, 0
      %v4567 = vmul.f32 %v4397, %v4566
      %v4568 = vmul.f32 %v4398, %v4566
      %v4569 = vmul.f32 %v4399, %v4566
      %v4570 = vmul.f32 %v4400, %v4566
      %v4571 = vmul.f32 %v4401, %v4566
      %v4572 = vmul.f32 %v4402, %v4566
      %v4573 = vmul.f32 %v4403, %v4566
      %v4574 = vmul.f32 %v4404, %v4566
      %v4575 = vmul.f32 %v4405, %v4566
      %v4576 = vmul.f32 %v4406, %v4566
      %v4577 = vmul.f32 %v4407, %v4566
      %v4578 = vmul.f32 %v4408, %v4566
      %v4579 = vmul.f32 %v4409, %v4566
      %v4580 = vmul.f32 %v4410, %v4566
      %v4581 = vmul.f32 %v4411, %v4566
      %v4582 = vmul.f32 %v4412, %v4566
      %v4583 = vmul.f32 %v4413, %v4566
      %v4584 = vmul.f32 %v4414, %v4566
      %v4585 = vmul.f32 %v4415, %v4566
      %v4586 = vmul.f32 %v4416, %v4566
      %v4587 = vmul.f32 %v4417, %v4566
      %v4588 = vmul.f32 %v4418, %v4566
      %v4589 = vmul.f32 %v4419, %v4566
      %v4590 = vmul.f32 %v4420, %v4566
      %v4591 = vmul.f32 %v4421, %v4566
      %v4592 = vmul.f32 %v4422, %v4566
      %v4593 = vmul.f32 %v4423, %v4566
      %v4594 = vmul.f32 %v4424, %v4566
      %v4595 = vmul.f32 %v4425, %v4566
      %v4596 = vmul.f32 %v4426, %v4566
      %v4597 = vmul.f32 %v4427, %v4566
      %v4598 = vmul.f32 %v4428, %v4566
      %v4599 = vld [vmem:[%s344] sm:$0x1]
      %v4601 = vperm.slane %v4599, 0
      %v4603 = vadd.f32 %v4567, %v4601
      %v4604 = vadd.f32 %v4568, %v4601
      %v4605 = vadd.f32 %v4569, %v4601
      %v4606 = vadd.f32 %v4570, %v4601
      %v4607 = vadd.f32 %v4571, %v4601
      %v4608 = vadd.f32 %v4572, %v4601
      %v4609 = vadd.f32 %v4573, %v4601
      %v4610 = vadd.f32 %v4574, %v4601
      %v4611 = vadd.f32 %v4575, %v4601
      %v4612 = vadd.f32 %v4576, %v4601
      %v4613 = vadd.f32 %v4577, %v4601
      %v4614 = vadd.f32 %v4578, %v4601
      %v4615 = vadd.f32 %v4579, %v4601
      %v4616 = vadd.f32 %v4580, %v4601
      %v4617 = vadd.f32 %v4581, %v4601
      %v4618 = vadd.f32 %v4582, %v4601
      %v4619 = vadd.f32 %v4583, %v4601
      %v4620 = vadd.f32 %v4584, %v4601
      %v4621 = vadd.f32 %v4585, %v4601
      %v4622 = vadd.f32 %v4586, %v4601
      %v4623 = vadd.f32 %v4587, %v4601
      %v4624 = vadd.f32 %v4588, %v4601
      %v4625 = vadd.f32 %v4589, %v4601
      %v4626 = vadd.f32 %v4590, %v4601
      %v4627 = vadd.f32 %v4591, %v4601
      %v4628 = vadd.f32 %v4592, %v4601
      %v4629 = vadd.f32 %v4593, %v4601
      %v4630 = vadd.f32 %v4594, %v4601
      %v4631 = vadd.f32 %v4595, %v4601
      %v4632 = vadd.f32 %v4596, %v4601
      %v4633 = vadd.f32 %v4597, %v4601
      %v4634 = vadd.f32 %v4598, %v4601
      %v4635 = vxor.u32 %v4603, 2147483648
      %v4636 = vxor.u32 %v4604, 2147483648
      %v4637 = vxor.u32 %v4605, 2147483648
      %v4638 = vxor.u32 %v4606, 2147483648
      %v4639 = vxor.u32 %v4607, 2147483648
      %v4640 = vxor.u32 %v4608, 2147483648
      %v4641 = vxor.u32 %v4609, 2147483648
      %v4642 = vxor.u32 %v4610, 2147483648
      %v4643 = vxor.u32 %v4611, 2147483648
      %v4644 = vxor.u32 %v4612, 2147483648
      %v4645 = vxor.u32 %v4613, 2147483648
      %v4646 = vxor.u32 %v4614, 2147483648
      %v4647 = vxor.u32 %v4615, 2147483648
      %v4648 = vxor.u32 %v4616, 2147483648
      %v4649 = vxor.u32 %v4617, 2147483648
      %v4650 = vxor.u32 %v4618, 2147483648
      %v4651 = vxor.u32 %v4619, 2147483648
      %v4652 = vxor.u32 %v4620, 2147483648
      %v4653 = vxor.u32 %v4621, 2147483648
      %v4654 = vxor.u32 %v4622, 2147483648
      %v4655 = vxor.u32 %v4623, 2147483648
      %v4656 = vxor.u32 %v4624, 2147483648
      %v4657 = vxor.u32 %v4625, 2147483648
      %v4658 = vxor.u32 %v4626, 2147483648
      %v4659 = vxor.u32 %v4627, 2147483648
      %v4660 = vxor.u32 %v4628, 2147483648
      %v4661 = vxor.u32 %v4629, 2147483648
      %v4662 = vxor.u32 %v4630, 2147483648
      %v4663 = vxor.u32 %v4631, 2147483648
      %v4664 = vxor.u32 %v4632, 2147483648
      %v4665 = vxor.u32 %v4633, 2147483648
      %v4666 = vxor.u32 %v4634, 2147483648
      %v4667 = vmul.f32 %v4635, 1.442695
      %v4668 = vpow.pop %v4667
      %v4669 = vmul.f32 %v4636, 1.442695
      %v4670 = vpow.pop %v4669
      %v4671 = vmul.f32 %v4637, 1.442695
      %v4672 = vpow.pop %v4671
      %v4673 = vmul.f32 %v4638, 1.442695
      %v4674 = vpow.pop %v4673
      %v4675 = vmul.f32 %v4639, 1.442695
      %v4676 = vpow.pop %v4675
      %v4677 = vmul.f32 %v4640, 1.442695
      %v4678 = vpow.pop %v4677
      %v4679 = vmul.f32 %v4641, 1.442695
      %v4680 = vpow.pop %v4679
      %v4681 = vmul.f32 %v4642, 1.442695
      %v4682 = vpow.pop %v4681
      %v4683 = vmul.f32 %v4643, 1.442695
      %v4684 = vpow.pop %v4683
      %v4685 = vmul.f32 %v4644, 1.442695
      %v4686 = vpow.pop %v4685
      %v4687 = vmul.f32 %v4645, 1.442695
      %v4688 = vpow.pop %v4687
      %v4689 = vmul.f32 %v4646, 1.442695
      %v4690 = vpow.pop %v4689
      %v4691 = vmul.f32 %v4647, 1.442695
      %v4692 = vpow.pop %v4691
      %v4693 = vmul.f32 %v4648, 1.442695
      %v4694 = vpow.pop %v4693
      %v4695 = vmul.f32 %v4649, 1.442695
      %v4696 = vpow.pop %v4695
      %v4697 = vmul.f32 %v4650, 1.442695
      %v4698 = vpow.pop %v4697
      %v4699 = vmul.f32 %v4651, 1.442695
      %v4700 = vpow.pop %v4699
      %v4701 = vmul.f32 %v4652, 1.442695
      %v4702 = vpow.pop %v4701
      %v4703 = vmul.f32 %v4653, 1.442695
      %v4704 = vpow.pop %v4703
      %v4705 = vmul.f32 %v4654, 1.442695
      %v4706 = vpow.pop %v4705
      %v4707 = vmul.f32 %v4655, 1.442695
      %v4708 = vpow.pop %v4707
      %v4709 = vmul.f32 %v4656, 1.442695
      %v4710 = vpow.pop %v4709
      %v4711 = vmul.f32 %v4657, 1.442695
      %v4712 = vpow.pop %v4711
      %v4713 = vmul.f32 %v4658, 1.442695
      %v4714 = vpow.pop %v4713
      %v4715 = vmul.f32 %v4659, 1.442695
      %v4716 = vpow.pop %v4715
      %v4717 = vmul.f32 %v4660, 1.442695
      %v4718 = vpow.pop %v4717
      %v4719 = vmul.f32 %v4661, 1.442695
      %v4720 = vpow.pop %v4719
      %v4721 = vmul.f32 %v4662, 1.442695
      %v4722 = vpow.pop %v4721
      %v4723 = vmul.f32 %v4663, 1.442695
      %v4724 = vpow.pop %v4723
      %v4725 = vmul.f32 %v4664, 1.442695
      %v4726 = vpow.pop %v4725
      %v4727 = vmul.f32 %v4665, 1.442695
      %v4728 = vpow.pop %v4727
      %v4729 = vmul.f32 %v4666, 1.442695
      %v4730 = vpow.pop %v4729
      %v4731 = vadd.f32 %v4668, 1.0
      %v4732 = vadd.f32 %v4670, 1.0
      %v4733 = vadd.f32 %v4672, 1.0
      %v4734 = vadd.f32 %v4674, 1.0
      %v4735 = vadd.f32 %v4676, 1.0
      %v4736 = vadd.f32 %v4678, 1.0
      %v4737 = vadd.f32 %v4680, 1.0
      %v4738 = vadd.f32 %v4682, 1.0
      %v4739 = vadd.f32 %v4684, 1.0
      %v4740 = vadd.f32 %v4686, 1.0
      %v4741 = vadd.f32 %v4688, 1.0
      %v4742 = vadd.f32 %v4690, 1.0
      %v4743 = vadd.f32 %v4692, 1.0
      %v4744 = vadd.f32 %v4694, 1.0
      %v4745 = vadd.f32 %v4696, 1.0
      %v4746 = vadd.f32 %v4698, 1.0
      %v4747 = vadd.f32 %v4700, 1.0
      %v4748 = vadd.f32 %v4702, 1.0
      %v4749 = vadd.f32 %v4704, 1.0
      %v4750 = vadd.f32 %v4706, 1.0
      %v4751 = vadd.f32 %v4708, 1.0
      %v4752 = vadd.f32 %v4710, 1.0
      %v4753 = vadd.f32 %v4712, 1.0
      %v4754 = vadd.f32 %v4714, 1.0
      %v4755 = vadd.f32 %v4716, 1.0
      %v4756 = vadd.f32 %v4718, 1.0
      %v4757 = vadd.f32 %v4720, 1.0
      %v4758 = vadd.f32 %v4722, 1.0
      %v4759 = vadd.f32 %v4724, 1.0
      %v4760 = vadd.f32 %v4726, 1.0
      %v4761 = vadd.f32 %v4728, 1.0
      %v4762 = vadd.f32 %v4730, 1.0
      %v4763 = vrcp.pop %v4731
      %v4764 = vmul.f32 %v4731, %v4763
      %v4765 = vsub.f32 1.0, %v4764
      %v4766 = vmul.f32 %v4763, %v4765
      %v4767 = vadd.f32 %v4763, %v4766
      %vm4768 = vweird.f32 %v4731
      %vm4769 = vweird.f32 %v4763
      %vm4770 = vmor %vm4768, %vm4769
      %v4771 = vsel %vm4770, %v4763, %v4767
      %v4772 = vand.u32 2147483647, %v4731
      %vm4773 = vcmp.eq.f32.partialorder %v4772, 8.507059e+37
      %v4774 = vand.u32 %v4731, 2147483648
      %v4775 = vor.u32 1.1754944e-38, %v4774
      %v4776 = vsel %vm4773, %v4775, %v4771
      %v4777 = vmul.f32 1.0, %v4776
      %v4778 = vrcp.pop %v4732
      %v4779 = vmul.f32 %v4732, %v4778
      %v4780 = vsub.f32 1.0, %v4779
      %v4781 = vmul.f32 %v4778, %v4780
      %v4782 = vadd.f32 %v4778, %v4781
      %vm4783 = vweird.f32 %v4732
      %vm4784 = vweird.f32 %v4778
      %vm4785 = vmor %vm4783, %vm4784
      %v4786 = vsel %vm4785, %v4778, %v4782
      %v4787 = vand.u32 2147483647, %v4732
      %vm4788 = vcmp.eq.f32.partialorder %v4787, 8.507059e+37
      %v4789 = vand.u32 %v4732, 2147483648
      %v4790 = vor.u32 1.1754944e-38, %v4789
      %v4791 = vsel %vm4788, %v4790, %v4786
      %v4792 = vmul.f32 1.0, %v4791
      %v4793 = vrcp.pop %v4733
      %v4794 = vmul.f32 %v4733, %v4793
      %v4795 = vsub.f32 1.0, %v4794
      %v4796 = vmul.f32 %v4793, %v4795
      %v4797 = vadd.f32 %v4793, %v4796
      %vm4798 = vweird.f32 %v4733
      %vm4799 = vweird.f32 %v4793
      %vm4800 = vmor %vm4798, %vm4799
      %v4801 = vsel %vm4800, %v4793, %v4797
      %v4802 = vand.u32 2147483647, %v4733
      %vm4803 = vcmp.eq.f32.partialorder %v4802, 8.507059e+37
      %v4804 = vand.u32 %v4733, 2147483648
      %v4805 = vor.u32 1.1754944e-38, %v4804
      %v4806 = vsel %vm4803, %v4805, %v4801
      %v4807 = vmul.f32 1.0, %v4806
      %v4808 = vrcp.pop %v4734
      %v4809 = vmul.f32 %v4734, %v4808
      %v4810 = vsub.f32 1.0, %v4809
      %v4811 = vmul.f32 %v4808, %v4810
      %v4812 = vadd.f32 %v4808, %v4811
      %vm4813 = vweird.f32 %v4734
      %vm4814 = vweird.f32 %v4808
      %vm4815 = vmor %vm4813, %vm4814
      %v4816 = vsel %vm4815, %v4808, %v4812
      %v4817 = vand.u32 2147483647, %v4734
      %vm4818 = vcmp.eq.f32.partialorder %v4817, 8.507059e+37
      %v4819 = vand.u32 %v4734, 2147483648
      %v4820 = vor.u32 1.1754944e-38, %v4819
      %v4821 = vsel %vm4818, %v4820, %v4816
      %v4822 = vmul.f32 1.0, %v4821
      %v4823 = vrcp.pop %v4735
      %v4824 = vmul.f32 %v4735, %v4823
      %v4825 = vsub.f32 1.0, %v4824
      %v4826 = vmul.f32 %v4823, %v4825
      %v4827 = vadd.f32 %v4823, %v4826
      %vm4828 = vweird.f32 %v4735
      %vm4829 = vweird.f32 %v4823
      %vm4830 = vmor %vm4828, %vm4829
      %v4831 = vsel %vm4830, %v4823, %v4827
      %v4832 = vand.u32 2147483647, %v4735
      %vm4833 = vcmp.eq.f32.partialorder %v4832, 8.507059e+37
      %v4834 = vand.u32 %v4735, 2147483648
      %v4835 = vor.u32 1.1754944e-38, %v4834
      %v4836 = vsel %vm4833, %v4835, %v4831
      %v4837 = vmul.f32 1.0, %v4836
      %v4838 = vrcp.pop %v4736
      %v4839 = vmul.f32 %v4736, %v4838
      %v4840 = vsub.f32 1.0, %v4839
      %v4841 = vmul.f32 %v4838, %v4840
      %v4842 = vadd.f32 %v4838, %v4841
      %vm4843 = vweird.f32 %v4736
      %vm4844 = vweird.f32 %v4838
      %vm4845 = vmor %vm4843, %vm4844
      %v4846 = vsel %vm4845, %v4838, %v4842
      %v4847 = vand.u32 2147483647, %v4736
      %vm4848 = vcmp.eq.f32.partialorder %v4847, 8.507059e+37
      %v4849 = vand.u32 %v4736, 2147483648
      %v4850 = vor.u32 1.1754944e-38, %v4849
      %v4851 = vsel %vm4848, %v4850, %v4846
      %v4852 = vmul.f32 1.0, %v4851
      %v4853 = vrcp.pop %v4737
      %v4854 = vmul.f32 %v4737, %v4853
      %v4855 = vsub.f32 1.0, %v4854
      %v4856 = vmul.f32 %v4853, %v4855
      %v4857 = vadd.f32 %v4853, %v4856
      %vm4858 = vweird.f32 %v4737
      %vm4859 = vweird.f32 %v4853
      %vm4860 = vmor %vm4858, %vm4859
      %v4861 = vsel %vm4860, %v4853, %v4857
      %v4862 = vand.u32 2147483647, %v4737
      %vm4863 = vcmp.eq.f32.partialorder %v4862, 8.507059e+37
      %v4864 = vand.u32 %v4737, 2147483648
      %v4865 = vor.u32 1.1754944e-38, %v4864
      %v4866 = vsel %vm4863, %v4865, %v4861
      %v4867 = vmul.f32 1.0, %v4866
      %v4868 = vrcp.pop %v4738
      %v4869 = vmul.f32 %v4738, %v4868
      %v4870 = vsub.f32 1.0, %v4869
      %v4871 = vmul.f32 %v4868, %v4870
      %v4872 = vadd.f32 %v4868, %v4871
      %vm4873 = vweird.f32 %v4738
      %vm4874 = vweird.f32 %v4868
      %vm4875 = vmor %vm4873, %vm4874
      %v4876 = vsel %vm4875, %v4868, %v4872
      %v4877 = vand.u32 2147483647, %v4738
      %vm4878 = vcmp.eq.f32.partialorder %v4877, 8.507059e+37
      %v4879 = vand.u32 %v4738, 2147483648
      %v4880 = vor.u32 1.1754944e-38, %v4879
      %v4881 = vsel %vm4878, %v4880, %v4876
      %v4882 = vmul.f32 1.0, %v4881
      %v4883 = vrcp.pop %v4739
      %v4884 = vmul.f32 %v4739, %v4883
      %v4885 = vsub.f32 1.0, %v4884
      %v4886 = vmul.f32 %v4883, %v4885
      %v4887 = vadd.f32 %v4883, %v4886
      %vm4888 = vweird.f32 %v4739
      %vm4889 = vweird.f32 %v4883
      %vm4890 = vmor %vm4888, %vm4889
      %v4891 = vsel %vm4890, %v4883, %v4887
      %v4892 = vand.u32 2147483647, %v4739
      %vm4893 = vcmp.eq.f32.partialorder %v4892, 8.507059e+37
      %v4894 = vand.u32 %v4739, 2147483648
      %v4895 = vor.u32 1.1754944e-38, %v4894
      %v4896 = vsel %vm4893, %v4895, %v4891
      %v4897 = vmul.f32 1.0, %v4896
      %v4898 = vrcp.pop %v4740
      %v4899 = vmul.f32 %v4740, %v4898
      %v4900 = vsub.f32 1.0, %v4899
      %v4901 = vmul.f32 %v4898, %v4900
      %v4902 = vadd.f32 %v4898, %v4901
      %vm4903 = vweird.f32 %v4740
      %vm4904 = vweird.f32 %v4898
      %vm4905 = vmor %vm4903, %vm4904
      %v4906 = vsel %vm4905, %v4898, %v4902
      %v4907 = vand.u32 2147483647, %v4740
      %vm4908 = vcmp.eq.f32.partialorder %v4907, 8.507059e+37
      %v4909 = vand.u32 %v4740, 2147483648
      %v4910 = vor.u32 1.1754944e-38, %v4909
      %v4911 = vsel %vm4908, %v4910, %v4906
      %v4912 = vmul.f32 1.0, %v4911
      %v4913 = vrcp.pop %v4741
      %v4914 = vmul.f32 %v4741, %v4913
      %v4915 = vsub.f32 1.0, %v4914
      %v4916 = vmul.f32 %v4913, %v4915
      %v4917 = vadd.f32 %v4913, %v4916
      %vm4918 = vweird.f32 %v4741
      %vm4919 = vweird.f32 %v4913
      %vm4920 = vmor %vm4918, %vm4919
      %v4921 = vsel %vm4920, %v4913, %v4917
      %v4922 = vand.u32 2147483647, %v4741
      %vm4923 = vcmp.eq.f32.partialorder %v4922, 8.507059e+37
      %v4924 = vand.u32 %v4741, 2147483648
      %v4925 = vor.u32 1.1754944e-38, %v4924
      %v4926 = vsel %vm4923, %v4925, %v4921
      %v4927 = vmul.f32 1.0, %v4926
      %v4928 = vrcp.pop %v4742
      %v4929 = vmul.f32 %v4742, %v4928
      %v4930 = vsub.f32 1.0, %v4929
      %v4931 = vmul.f32 %v4928, %v4930
      %v4932 = vadd.f32 %v4928, %v4931
      %vm4933 = vweird.f32 %v4742
      %vm4934 = vweird.f32 %v4928
      %vm4935 = vmor %vm4933, %vm4934
      %v4936 = vsel %vm4935, %v4928, %v4932
      %v4937 = vand.u32 2147483647, %v4742
      %vm4938 = vcmp.eq.f32.partialorder %v4937, 8.507059e+37
      %v4939 = vand.u32 %v4742, 2147483648
      %v4940 = vor.u32 1.1754944e-38, %v4939
      %v4941 = vsel %vm4938, %v4940, %v4936
      %v4942 = vmul.f32 1.0, %v4941
      %v4943 = vrcp.pop %v4743
      %v4944 = vmul.f32 %v4743, %v4943
      %v4945 = vsub.f32 1.0, %v4944
      %v4946 = vmul.f32 %v4943, %v4945
      %v4947 = vadd.f32 %v4943, %v4946
      %vm4948 = vweird.f32 %v4743
      %vm4949 = vweird.f32 %v4943
      %vm4950 = vmor %vm4948, %vm4949
      %v4951 = vsel %vm4950, %v4943, %v4947
      %v4952 = vand.u32 2147483647, %v4743
      %vm4953 = vcmp.eq.f32.partialorder %v4952, 8.507059e+37
      %v4954 = vand.u32 %v4743, 2147483648
      %v4955 = vor.u32 1.1754944e-38, %v4954
      %v4956 = vsel %vm4953, %v4955, %v4951
      %v4957 = vmul.f32 1.0, %v4956
      %v4958 = vrcp.pop %v4744
      %v4959 = vmul.f32 %v4744, %v4958
      %v4960 = vsub.f32 1.0, %v4959
      %v4961 = vmul.f32 %v4958, %v4960
      %v4962 = vadd.f32 %v4958, %v4961
      %vm4963 = vweird.f32 %v4744
      %vm4964 = vweird.f32 %v4958
      %vm4965 = vmor %vm4963, %vm4964
      %v4966 = vsel %vm4965, %v4958, %v4962
      %v4967 = vand.u32 2147483647, %v4744
      %vm4968 = vcmp.eq.f32.partialorder %v4967, 8.507059e+37
      %v4969 = vand.u32 %v4744, 2147483648
      %v4970 = vor.u32 1.1754944e-38, %v4969
      %v4971 = vsel %vm4968, %v4970, %v4966
      %v4972 = vmul.f32 1.0, %v4971
      %v4973 = vrcp.pop %v4745
      %v4974 = vmul.f32 %v4745, %v4973
      %v4975 = vsub.f32 1.0, %v4974
      %v4976 = vmul.f32 %v4973, %v4975
      %v4977 = vadd.f32 %v4973, %v4976
      %vm4978 = vweird.f32 %v4745
      %vm4979 = vweird.f32 %v4973
      %vm4980 = vmor %vm4978, %vm4979
      %v4981 = vsel %vm4980, %v4973, %v4977
      %v4982 = vand.u32 2147483647, %v4745
      %vm4983 = vcmp.eq.f32.partialorder %v4982, 8.507059e+37
      %v4984 = vand.u32 %v4745, 2147483648
      %v4985 = vor.u32 1.1754944e-38, %v4984
      %v4986 = vsel %vm4983, %v4985, %v4981
      %v4987 = vmul.f32 1.0, %v4986
      %v4988 = vrcp.pop %v4746
      %v4989 = vmul.f32 %v4746, %v4988
      %v4990 = vsub.f32 1.0, %v4989
      %v4991 = vmul.f32 %v4988, %v4990
      %v4992 = vadd.f32 %v4988, %v4991
      %vm4993 = vweird.f32 %v4746
      %vm4994 = vweird.f32 %v4988
      %vm4995 = vmor %vm4993, %vm4994
      %v4996 = vsel %vm4995, %v4988, %v4992
      %v4997 = vand.u32 2147483647, %v4746
      %vm4998 = vcmp.eq.f32.partialorder %v4997, 8.507059e+37
      %v4999 = vand.u32 %v4746, 2147483648
      %v5000 = vor.u32 1.1754944e-38, %v4999
      %v5001 = vsel %vm4998, %v5000, %v4996
      %v5002 = vmul.f32 1.0, %v5001
      %v5003 = vrcp.pop %v4747
      %v5004 = vmul.f32 %v4747, %v5003
      %v5005 = vsub.f32 1.0, %v5004
      %v5006 = vmul.f32 %v5003, %v5005
      %v5007 = vadd.f32 %v5003, %v5006
      %vm5008 = vweird.f32 %v4747
      %vm5009 = vweird.f32 %v5003
      %vm5010 = vmor %vm5008, %vm5009
      %v5011 = vsel %vm5010, %v5003, %v5007
      %v5012 = vand.u32 2147483647, %v4747
      %vm5013 = vcmp.eq.f32.partialorder %v5012, 8.507059e+37
      %v5014 = vand.u32 %v4747, 2147483648
      %v5015 = vor.u32 1.1754944e-38, %v5014
      %v5016 = vsel %vm5013, %v5015, %v5011
      %v5017 = vmul.f32 1.0, %v5016
      %v5018 = vrcp.pop %v4748
      %v5019 = vmul.f32 %v4748, %v5018
      %v5020 = vsub.f32 1.0, %v5019
      %v5021 = vmul.f32 %v5018, %v5020
      %v5022 = vadd.f32 %v5018, %v5021
      %vm5023 = vweird.f32 %v4748
      %vm5024 = vweird.f32 %v5018
      %vm5025 = vmor %vm5023, %vm5024
      %v5026 = vsel %vm5025, %v5018, %v5022
      %v5027 = vand.u32 2147483647, %v4748
      %vm5028 = vcmp.eq.f32.partialorder %v5027, 8.507059e+37
      %v5029 = vand.u32 %v4748, 2147483648
      %v5030 = vor.u32 1.1754944e-38, %v5029
      %v5031 = vsel %vm5028, %v5030, %v5026
      %v5032 = vmul.f32 1.0, %v5031
      %v5033 = vrcp.pop %v4749
      %v5034 = vmul.f32 %v4749, %v5033
      %v5035 = vsub.f32 1.0, %v5034
      %v5036 = vmul.f32 %v5033, %v5035
      %v5037 = vadd.f32 %v5033, %v5036
      %vm5038 = vweird.f32 %v4749
      %vm5039 = vweird.f32 %v5033
      %vm5040 = vmor %vm5038, %vm5039
      %v5041 = vsel %vm5040, %v5033, %v5037
      %v5042 = vand.u32 2147483647, %v4749
      %vm5043 = vcmp.eq.f32.partialorder %v5042, 8.507059e+37
      %v5044 = vand.u32 %v4749, 2147483648
      %v5045 = vor.u32 1.1754944e-38, %v5044
      %v5046 = vsel %vm5043, %v5045, %v5041
      %v5047 = vmul.f32 1.0, %v5046
      %v5048 = vrcp.pop %v4750
      %v5049 = vmul.f32 %v4750, %v5048
      %v5050 = vsub.f32 1.0, %v5049
      %v5051 = vmul.f32 %v5048, %v5050
      %v5052 = vadd.f32 %v5048, %v5051
      %vm5053 = vweird.f32 %v4750
      %vm5054 = vweird.f32 %v5048
      %vm5055 = vmor %vm5053, %vm5054
      %v5056 = vsel %vm5055, %v5048, %v5052
      %v5057 = vand.u32 2147483647, %v4750
      %vm5058 = vcmp.eq.f32.partialorder %v5057, 8.507059e+37
      %v5059 = vand.u32 %v4750, 2147483648
      %v5060 = vor.u32 1.1754944e-38, %v5059
      %v5061 = vsel %vm5058, %v5060, %v5056
      %v5062 = vmul.f32 1.0, %v5061
      %v5063 = vrcp.pop %v4751
      %v5064 = vmul.f32 %v4751, %v5063
      %v5065 = vsub.f32 1.0, %v5064
      %v5066 = vmul.f32 %v5063, %v5065
      %v5067 = vadd.f32 %v5063, %v5066
      %vm5068 = vweird.f32 %v4751
      %vm5069 = vweird.f32 %v5063
      %vm5070 = vmor %vm5068, %vm5069
      %v5071 = vsel %vm5070, %v5063, %v5067
      %v5072 = vand.u32 2147483647, %v4751
      %vm5073 = vcmp.eq.f32.partialorder %v5072, 8.507059e+37
      %v5074 = vand.u32 %v4751, 2147483648
      %v5075 = vor.u32 1.1754944e-38, %v5074
      %v5076 = vsel %vm5073, %v5075, %v5071
      %v5077 = vmul.f32 1.0, %v5076
      %v5078 = vrcp.pop %v4752
      %v5079 = vmul.f32 %v4752, %v5078
      %v5080 = vsub.f32 1.0, %v5079
      %v5081 = vmul.f32 %v5078, %v5080
      %v5082 = vadd.f32 %v5078, %v5081
      %vm5083 = vweird.f32 %v4752
      %vm5084 = vweird.f32 %v5078
      %vm5085 = vmor %vm5083, %vm5084
      %v5086 = vsel %vm5085, %v5078, %v5082
      %v5087 = vand.u32 2147483647, %v4752
      %vm5088 = vcmp.eq.f32.partialorder %v5087, 8.507059e+37
      %v5089 = vand.u32 %v4752, 2147483648
      %v5090 = vor.u32 1.1754944e-38, %v5089
      %v5091 = vsel %vm5088, %v5090, %v5086
      %v5092 = vmul.f32 1.0, %v5091
      %v5093 = vrcp.pop %v4753
      %v5094 = vmul.f32 %v4753, %v5093
      %v5095 = vsub.f32 1.0, %v5094
      %v5096 = vmul.f32 %v5093, %v5095
      %v5097 = vadd.f32 %v5093, %v5096
      %vm5098 = vweird.f32 %v4753
      %vm5099 = vweird.f32 %v5093
      %vm5100 = vmor %vm5098, %vm5099
      %v5101 = vsel %vm5100, %v5093, %v5097
      %v5102 = vand.u32 2147483647, %v4753
      %vm5103 = vcmp.eq.f32.partialorder %v5102, 8.507059e+37
      %v5104 = vand.u32 %v4753, 2147483648
      %v5105 = vor.u32 1.1754944e-38, %v5104
      %v5106 = vsel %vm5103, %v5105, %v5101
      %v5107 = vmul.f32 1.0, %v5106
      %v5108 = vrcp.pop %v4754
      %v5109 = vmul.f32 %v4754, %v5108
      %v5110 = vsub.f32 1.0, %v5109
      %v5111 = vmul.f32 %v5108, %v5110
      %v5112 = vadd.f32 %v5108, %v5111
      %vm5113 = vweird.f32 %v4754
      %vm5114 = vweird.f32 %v5108
      %vm5115 = vmor %vm5113, %vm5114
      %v5116 = vsel %vm5115, %v5108, %v5112
      %v5117 = vand.u32 2147483647, %v4754
      %vm5118 = vcmp.eq.f32.partialorder %v5117, 8.507059e+37
      %v5119 = vand.u32 %v4754, 2147483648
      %v5120 = vor.u32 1.1754944e-38, %v5119
      %v5121 = vsel %vm5118, %v5120, %v5116
      %v5122 = vmul.f32 1.0, %v5121
      %v5123 = vrcp.pop %v4755
      %v5124 = vmul.f32 %v4755, %v5123
      %v5125 = vsub.f32 1.0, %v5124
      %v5126 = vmul.f32 %v5123, %v5125
      %v5127 = vadd.f32 %v5123, %v5126
      %vm5128 = vweird.f32 %v4755
      %vm5129 = vweird.f32 %v5123
      %vm5130 = vmor %vm5128, %vm5129
      %v5131 = vsel %vm5130, %v5123, %v5127
      %v5132 = vand.u32 2147483647, %v4755
      %vm5133 = vcmp.eq.f32.partialorder %v5132, 8.507059e+37
      %v5134 = vand.u32 %v4755, 2147483648
      %v5135 = vor.u32 1.1754944e-38, %v5134
      %v5136 = vsel %vm5133, %v5135, %v5131
      %v5137 = vmul.f32 1.0, %v5136
      %v5138 = vrcp.pop %v4756
      %v5139 = vmul.f32 %v4756, %v5138
      %v5140 = vsub.f32 1.0, %v5139
      %v5141 = vmul.f32 %v5138, %v5140
      %v5142 = vadd.f32 %v5138, %v5141
      %vm5143 = vweird.f32 %v4756
      %vm5144 = vweird.f32 %v5138
      %vm5145 = vmor %vm5143, %vm5144
      %v5146 = vsel %vm5145, %v5138, %v5142
      %v5147 = vand.u32 2147483647, %v4756
      %vm5148 = vcmp.eq.f32.partialorder %v5147, 8.507059e+37
      %v5149 = vand.u32 %v4756, 2147483648
      %v5150 = vor.u32 1.1754944e-38, %v5149
      %v5151 = vsel %vm5148, %v5150, %v5146
      %v5152 = vmul.f32 1.0, %v5151
      %v5153 = vrcp.pop %v4757
      %v5154 = vmul.f32 %v4757, %v5153
      %v5155 = vsub.f32 1.0, %v5154
      %v5156 = vmul.f32 %v5153, %v5155
      %v5157 = vadd.f32 %v5153, %v5156
      %vm5158 = vweird.f32 %v4757
      %vm5159 = vweird.f32 %v5153
      %vm5160 = vmor %vm5158, %vm5159
      %v5161 = vsel %vm5160, %v5153, %v5157
      %v5162 = vand.u32 2147483647, %v4757
      %vm5163 = vcmp.eq.f32.partialorder %v5162, 8.507059e+37
      %v5164 = vand.u32 %v4757, 2147483648
      %v5165 = vor.u32 1.1754944e-38, %v5164
      %v5166 = vsel %vm5163, %v5165, %v5161
      %v5167 = vmul.f32 1.0, %v5166
      %v5168 = vrcp.pop %v4758
      %v5169 = vmul.f32 %v4758, %v5168
      %v5170 = vsub.f32 1.0, %v5169
      %v5171 = vmul.f32 %v5168, %v5170
      %v5172 = vadd.f32 %v5168, %v5171
      %vm5173 = vweird.f32 %v4758
      %vm5174 = vweird.f32 %v5168
      %vm5175 = vmor %vm5173, %vm5174
      %v5176 = vsel %vm5175, %v5168, %v5172
      %v5177 = vand.u32 2147483647, %v4758
      %vm5178 = vcmp.eq.f32.partialorder %v5177, 8.507059e+37
      %v5179 = vand.u32 %v4758, 2147483648
      %v5180 = vor.u32 1.1754944e-38, %v5179
      %v5181 = vsel %vm5178, %v5180, %v5176
      %v5182 = vmul.f32 1.0, %v5181
      %v5183 = vrcp.pop %v4759
      %v5184 = vmul.f32 %v4759, %v5183
      %v5185 = vsub.f32 1.0, %v5184
      %v5186 = vmul.f32 %v5183, %v5185
      %v5187 = vadd.f32 %v5183, %v5186
      %vm5188 = vweird.f32 %v4759
      %vm5189 = vweird.f32 %v5183
      %vm5190 = vmor %vm5188, %vm5189
      %v5191 = vsel %vm5190, %v5183, %v5187
      %v5192 = vand.u32 2147483647, %v4759
      %vm5193 = vcmp.eq.f32.partialorder %v5192, 8.507059e+37
      %v5194 = vand.u32 %v4759, 2147483648
      %v5195 = vor.u32 1.1754944e-38, %v5194
      %v5196 = vsel %vm5193, %v5195, %v5191
      %v5197 = vmul.f32 1.0, %v5196
      %v5198 = vrcp.pop %v4760
      %v5199 = vmul.f32 %v4760, %v5198
      %v5200 = vsub.f32 1.0, %v5199
      %v5201 = vmul.f32 %v5198, %v5200
      %v5202 = vadd.f32 %v5198, %v5201
      %vm5203 = vweird.f32 %v4760
      %vm5204 = vweird.f32 %v5198
      %vm5205 = vmor %vm5203, %vm5204
      %v5206 = vsel %vm5205, %v5198, %v5202
      %v5207 = vand.u32 2147483647, %v4760
      %vm5208 = vcmp.eq.f32.partialorder %v5207, 8.507059e+37
      %v5209 = vand.u32 %v4760, 2147483648
      %v5210 = vor.u32 1.1754944e-38, %v5209
      %v5211 = vsel %vm5208, %v5210, %v5206
      %v5212 = vmul.f32 1.0, %v5211
      %v5213 = vrcp.pop %v4761
      %v5214 = vmul.f32 %v4761, %v5213
      %v5215 = vsub.f32 1.0, %v5214
      %v5216 = vmul.f32 %v5213, %v5215
      %v5217 = vadd.f32 %v5213, %v5216
      %vm5218 = vweird.f32 %v4761
      %vm5219 = vweird.f32 %v5213
      %vm5220 = vmor %vm5218, %vm5219
      %v5221 = vsel %vm5220, %v5213, %v5217
      %v5222 = vand.u32 2147483647, %v4761
      %vm5223 = vcmp.eq.f32.partialorder %v5222, 8.507059e+37
      %v5224 = vand.u32 %v4761, 2147483648
      %v5225 = vor.u32 1.1754944e-38, %v5224
      %v5226 = vsel %vm5223, %v5225, %v5221
      %v5227 = vmul.f32 1.0, %v5226
      %v5228 = vrcp.pop %v4762
      %v5229 = vmul.f32 %v4762, %v5228
      %v5230 = vsub.f32 1.0, %v5229
      %v5231 = vmul.f32 %v5228, %v5230
      %v5232 = vadd.f32 %v5228, %v5231
      %vm5233 = vweird.f32 %v4762
      %vm5234 = vweird.f32 %v5228
      %vm5235 = vmor %vm5233, %vm5234
      %v5236 = vsel %vm5235, %v5228, %v5232
      %v5237 = vand.u32 2147483647, %v4762
      %vm5238 = vcmp.eq.f32.partialorder %v5237, 8.507059e+37
      %v5239 = vand.u32 %v4762, 2147483648
      %v5240 = vor.u32 1.1754944e-38, %v5239
      %v5241 = vsel %vm5238, %v5240, %v5236
      %v5242 = vmul.f32 1.0, %v5241
      %v5243 = vmul.f32 %v4603, %v4777
      %v5244 = vmul.f32 %v4604, %v4792
      %v5245 = vmul.f32 %v4605, %v4807
      %v5246 = vmul.f32 %v4606, %v4822
      %v5247 = vmul.f32 %v4607, %v4837
      %v5248 = vmul.f32 %v4608, %v4852
      %v5249 = vmul.f32 %v4609, %v4867
      %v5250 = vmul.f32 %v4610, %v4882
      %v5251 = vmul.f32 %v4611, %v4897
      %v5252 = vmul.f32 %v4612, %v4912
      %v5253 = vmul.f32 %v4613, %v4927
      %v5254 = vmul.f32 %v4614, %v4942
      %v5255 = vmul.f32 %v4615, %v4957
      %v5256 = vmul.f32 %v4616, %v4972
      %v5257 = vmul.f32 %v4617, %v4987
      %v5258 = vmul.f32 %v4618, %v5002
      %v5259 = vmul.f32 %v4619, %v5017
      %v5260 = vmul.f32 %v4620, %v5032
      %v5261 = vmul.f32 %v4621, %v5047
      %v5262 = vmul.f32 %v4622, %v5062
      %v5263 = vmul.f32 %v4623, %v5077
      %v5264 = vmul.f32 %v4624, %v5092
      %v5265 = vmul.f32 %v4625, %v5107
      %v5266 = vmul.f32 %v4626, %v5122
      %v5267 = vmul.f32 %v4627, %v5137
      %v5268 = vmul.f32 %v4628, %v5152
      %v5269 = vmul.f32 %v4629, %v5167
      %v5270 = vmul.f32 %v4630, %v5182
      %v5271 = vmul.f32 %v4631, %v5197
      %v5272 = vmul.f32 %v4632, %v5212
      %v5273 = vmul.f32 %v4633, %v5227
      %v5274 = vmul.f32 %v4634, %v5242
      %5275 = vst.msk [vmem:[%s352] sm:$0xff] %vm4301, %v5243
      %5276 = vst.msk [vmem:[%s352 + $0x8] sm:$0xff] %vm4301, %v5244
      %5277 = vst.msk [vmem:[%s352 + $0x10] sm:$0xff] %vm4301, %v5245
      %5278 = vst.msk [vmem:[%s352 + $0x18] sm:$0xff] %vm4301, %v5246
      %5279 = vst.msk [vmem:[%s352 + $0x20] sm:$0xff] %vm4301, %v5247
      %5280 = vst.msk [vmem:[%s352 + $0x28] sm:$0xff] %vm4301, %v5248
      %5281 = vst.msk [vmem:[%s352 + $0x30] sm:$0xff] %vm4301, %v5249
      %5282 = vst.msk [vmem:[%s352 + $0x38] sm:$0xff] %vm4301, %v5250
      %5283 = vst.msk [vmem:[%s352 + $0x40] sm:$0xff] %vm4301, %v5251
      %5284 = vst.msk [vmem:[%s352 + $0x48] sm:$0xff] %vm4301, %v5252
      %5285 = vst.msk [vmem:[%s352 + $0x50] sm:$0xff] %vm4301, %v5253
      %5286 = vst.msk [vmem:[%s352 + $0x58] sm:$0xff] %vm4301, %v5254
      %5287 = vst.msk [vmem:[%s352 + $0x60] sm:$0xff] %vm4301, %v5255
      %5288 = vst.msk [vmem:[%s352 + $0x68] sm:$0xff] %vm4301, %v5256
      %5289 = vst.msk [vmem:[%s352 + $0x70] sm:$0xff] %vm4301, %v5257
      %5290 = vst.msk [vmem:[%s352 + $0x78] sm:$0xff] %vm4301, %v5258
      %5291 = vst.msk [vmem:[%s352 + $0x80] sm:$0xff] %vm4301, %v5259
      %5292 = vst.msk [vmem:[%s352 + $0x88] sm:$0xff] %vm4301, %v5260
      %5293 = vst.msk [vmem:[%s352 + $0x90] sm:$0xff] %vm4301, %v5261
      %5294 = vst.msk [vmem:[%s352 + $0x98] sm:$0xff] %vm4301, %v5262
      %5295 = vst.msk [vmem:[%s352 + $0xa0] sm:$0xff] %vm4301, %v5263
      %5296 = vst.msk [vmem:[%s352 + $0xa8] sm:$0xff] %vm4301, %v5264
      %5297 = vst.msk [vmem:[%s352 + $0xb0] sm:$0xff] %vm4301, %v5265
      %5298 = vst.msk [vmem:[%s352 + $0xb8] sm:$0xff] %vm4301, %v5266
      %5299 = vst.msk [vmem:[%s352 + $0xc0] sm:$0xff] %vm4301, %v5267
      %5300 = vst.msk [vmem:[%s352 + $0xc8] sm:$0xff] %vm4301, %v5268
      %5301 = vst.msk [vmem:[%s352 + $0xd0] sm:$0xff] %vm4301, %v5269
      %5302 = vst.msk [vmem:[%s352 + $0xd8] sm:$0xff] %vm4301, %v5270
      %5303 = vst.msk [vmem:[%s352 + $0xe0] sm:$0xff] %vm4301, %v5271
      %5304 = vst.msk [vmem:[%s352 + $0xe8] sm:$0xff] %vm4301, %v5272
      %5305 = vst.msk [vmem:[%s352 + $0xf0] sm:$0xff] %vm4301, %v5273
      %5306 = vst.msk [vmem:[%s352 + $0xf8] sm:$0xff] %vm4301, %v5274
      %p5307 = scmp.lt.s32.totalorder %s21, 1
      %s5308 = scalar_select %p5307, %s21, 1
      %p5309 = scmp.lt.s32.totalorder %s22, 0
      %s5310 = scalar_select %p5309, %s22, 0
      %s5311 = smul.addr %s5308, 32
      %s5312 = sadd.s32 %s5310, %s5311
      %s5313 = smul.addr %s5312, 8
      %s5314 = scalar_lea.vmem %s6, %s5313
      // Predicated region
      $region45: #{block_forward.1} parent=43 // pred_check
        %p5315 = pneg %p204
      $region46: #{block_forward.1} parent=43 // pred_check_branch
        %5317 = sbr.rel (%p5315) target = $region48
      $region47: #{block_forward.1} parent=43 // pred_region
        _
      $region48: #{block_forward.1} parent=43 // pred_fallthru
        _
    $region44: #{block_forward.1} parent=5 // pred_fallthru
      _
    %p5318 = scmp.le.s32.totalorder 2, %s12
    // Predicated region
    $region49: #{block_forward.1} parent=5 // pred_check
      %p5319 = pneg %p5318
    $region50: #{block_forward.1} parent=5 // pred_check_branch
      %5321 = sbr.rel (%p5319) target = $region52
    $region51: #{block_forward.1} parent=5 // pred_region
      %s5322 = ssub.s32 %s12, 2
      // Predicated region
      $region53: #{block_forward.1} parent=51 // pred_check
        %p5323 = pneg %p210
      $region54: #{block_forward.1} parent=51 // pred_check_branch
        %5325 = sbr.rel (%p5323) target = $region56
      $region55: #{block_forward.1} parent=51 // pred_region
        %p5326 = scmp.lt.s32.totalorder %s23, 1
        %s5327 = scalar_select %p5326, %s23, 1
        %p5328 = scmp.lt.s32.totalorder %s24, 0
        %s5329 = scalar_select %p5328, %s24, 0
        %s5330 = smul.addr %s5327, 32
        %s5331 = sadd.s32 %s5329, %s5330
        %s5332 = smul.addr %s5331, 8
        %s5333 = scalar_lea.vmem %s6, %s5332
      $region56: #{block_forward.1} parent=51 // pred_fallthru
        _
    $region52: #{block_forward.1} parent=5 // pred_fallthru
      _
  $region6: #{block_forward.1} parent=0 // loop_footer
    %s16 = sadd.s32 1, %s12
  $region7: #{block_forward.1} parent=0 // loop_footer_branch
    %11 = sbr.rel target = $region3
  $region8: #{block_forward.1} parent=0 // loop_exit
    _

</llo_original>
